<compile_context>
chip_gen: v7x
topology: tpu7x:2x2x1
jax: 0.10.0
libtpu: 0.0.40
codegen_flags: <defaults>
</compile_context>

<pallas_src>
import functools
import math

import jax
import jax.numpy as jnp
from jax.experimental import pallas as pl
from jax.experimental.pallas import tpu as pltpu

NEG_SLOPE = 0.01    # F.leaky_relu default
BN_EPS = 1e-5       # BatchNorm1d default eps
PNA_STD_EPS = 1e-5  # PNA 'std' aggregator eps

# bf16 MXU operands (f32 accumulate, f32 bias/epilogue).
_MXU_DTYPE = jnp.bfloat16
_SUB = 16               # sublane multiple for bf16-packed row tiles
_MAX_ROW_TILE = 1024    # raised per perf review (tiles are small: F <= 208)


def _pick_vmem_limit():
    """Generation-aware scoped-VMEM limit: 64 MiB on the 128-MiB parts
    (v5e/v6e), 32 MiB on v7x (64 MiB physical) and unknown parts."""
    try:
        kind = jax.devices()[0].device_kind.lower()
    except Exception:
        return 32 * 1024 * 1024
    if any(t in kind for t in ("v5 lite", "v5e", "v6")):
        return 64 * 1024 * 1024
    return 32 * 1024 * 1024


_VMEM_LIMIT = _pick_vmem_limit()


def _cp(semantics=("parallel",)):
    return pltpu.CompilerParams(dimension_semantics=semantics,
                                vmem_limit_bytes=_VMEM_LIMIT)


def _round_up(v, m):
    return (v + m - 1) // m * m


def _row_tiling(m, max_tile=_MAX_ROW_TILE):
    """Rows padded to a multiple of 16; tile count chosen so that the total
    padding waste stays < 16 rows per tile (no rounding mp up to a full
    max_tile, per perf review)."""
    mp = _round_up(max(m, 1), _SUB)
    g = (mp + max_tile - 1) // max_tile
    tm = _round_up((mp + g - 1) // g, _SUB)
    return tm * g, tm, g


def _pad_rc(a, rows, cols, dtype=None):
    """Pad a 2-D array up to (rows, cols) and optionally cast; pad+convert fuse
    into one XLA op under jit (single copy, bf16 bytes in HBM)."""
    r, c = a.shape
    pr, pc = rows - r, cols - c
    if pr or pc:
        a = jnp.pad(a, ((0, pr), (0, pc)))
    if dtype is not None and a.dtype != dtype:
        a = a.astype(dtype)
    return a


def _act(y, name):
    if name == "relu":
        return jnp.maximum(y, 0.0)
    if name == "leaky_relu":
        return jnp.where(y > 0, y, NEG_SLOPE * y)
    if name == "sigmoid":
        return jax.nn.sigmoid(y)
    return y


# ----------------------------------------------------------------------------
# Pallas kernels
# ----------------------------------------------------------------------------
def _linear_kernel(x_ref, w_ref, b_ref, o_ref, *, activation):
    # bf16 operands arrive from HBM, f32 accumulate / bias / epilogue.
    y = jnp.dot(x_ref[...], w_ref[...], preferred_element_type=jnp.float32)
    o_ref[...] = _act(y + b_ref[...], activation)


def linear_pallas(x, w, b=None, activation="none"):
    """y = act(x @ w + b).  Rows tiled ("parallel"); output stored at its true
    width (consumers here are row-wise gathers / segment ops, so a narrow store
    beats a 128-wide store followed by a slice copy)."""
    m, k = x.shape
    kw, n = w.shape
    assert k == kw
    kp = _round_up(k, _SUB)
    mp, tm, gm = _row_tiling(m)
    xp = _pad_rc(x, mp, kp, _MXU_DTYPE)
    wp = _pad_rc(w, kp, n, _MXU_DTYPE)
    bp = (jnp.zeros((1, n), jnp.float32) if b is None
          else b.astype(jnp.float32).reshape(1, n))
    out = pl.pallas_call(
        functools.partial(_linear_kernel, activation=activation),
        out_shape=jax.ShapeDtypeStruct((mp, n), jnp.float32),
        grid=(gm,),
        in_specs=[
            pl.BlockSpec((tm, kp), lambda i: (i, 0)),
            pl.BlockSpec((kp, n), lambda i: (0, 0)),   # weights resident
            pl.BlockSpec((1, n), lambda i: (0, 0)),    # bias resident
        ],
        out_specs=pl.BlockSpec((tm, n), lambda i: (i, 0)),
        compiler_params=_cp(),
    )(xp, wp, bp)
    return out[:m] if mp != m else out


def _linear2_kernel(x_ref, w1_ref, b1_ref, w2_ref, b2_ref, o_ref, *, act1, act2):
    y = jnp.dot(x_ref[...], w1_ref[...],
                preferred_element_type=jnp.float32) + b1_ref[...]
    y = _act(y, act1)
    # VMEM-resident intermediate; re-cast to bf16 only for the second MXU pass.
    z = jnp.dot(y.astype(_MXU_DTYPE), w2_ref[...],
                preferred_element_type=jnp.float32) + b2_ref[...]
    o_ref[...] = _act(z, act2)


def linear2_pallas(x, w1, b1, w2, b2, act1="none", act2="none"):
    """Fused y = act2(act1(x@w1+b1)@w2+b2); the intermediate never leaves VMEM."""
    m, k = x.shape
    _, h = w1.shape
    _, n = w2.shape
    kp = _round_up(k, _SUB)
    hp = _round_up(h, _SUB)
    mp, tm, gm = _row_tiling(m)
    xp = _pad_rc(x, mp, kp, _MXU_DTYPE)
    w1p = _pad_rc(w1, kp, hp, _MXU_DTYPE)
    w2p = _pad_rc(w2, hp, n, _MXU_DTYPE)
    b1p = jnp.pad(b1.astype(jnp.float32), (0, hp - h)).reshape(1, hp)
    b2p = b2.astype(jnp.float32).reshape(1, n)
    out = pl.pallas_call(
        functools.partial(_linear2_kernel, act1=act1, act2=act2),
        out_shape=jax.ShapeDtypeStruct((mp, n), jnp.float32),
        grid=(gm,),
        in_specs=[
            pl.BlockSpec((tm, kp), lambda i: (i, 0)),
            pl.BlockSpec((kp, hp), lambda i: (0, 0)),
            pl.BlockSpec((1, hp), lambda i: (0, 0)),
            pl.BlockSpec((hp, n), lambda i: (0, 0)),
            pl.BlockSpec((1, n), lambda i: (0, 0)),
        ],
        out_specs=pl.BlockSpec((tm, n), lambda i: (i, 0)),
        compiler_params=_cp(),
    )(xp, w1p, b1p, w2p, b2p)
    return out[:m] if mp != m else out


def _pna_post_lin_kernel(x_ref, agg_ref, amp_ref, att_ref, wx_ref, wa_ref,
                         wb_ref, wc_ref, pb_ref, lw_ref, lb_ref, o_ref):
    # [x, agg, agg*amp, agg*att] @ W_post == x@Wx + agg@Wa + amp*(agg@Wb)
    #                                        + att*(agg@Wc)  (amp/att per-row)
    agg = agg_ref[...]
    y = jnp.dot(x_ref[...], wx_ref[...], preferred_element_type=jnp.float32)
    y = y + jnp.dot(agg, wa_ref[...], preferred_element_type=jnp.float32)
    y = y + amp_ref[...] * jnp.dot(agg, wb_ref[...],
                                   preferred_element_type=jnp.float32)
    y = y + att_ref[...] * jnp.dot(agg, wc_ref[...],
                                   preferred_element_type=jnp.float32)
    y = y + pb_ref[...]
    o_ref[...] = (jnp.dot(y.astype(_MXU_DTYPE), lw_ref[...],
                          preferred_element_type=jnp.float32) + lb_ref[...])


def pna_post_lin_pallas(x, agg, amp, att, wx, wa, wb, wc, post_b, lin_w, lin_b):
    """Fused PNA post-linear (scaler algebra applied in-kernel, no (N,13F)
    concat) + final lin.  agg is read from HBM once; intermediate stays in VMEM."""
    n, f = x.shape
    fa = agg.shape[1]
    h = wx.shape[1]
    h2 = lin_w.shape[1]
    kx = _round_up(f, _SUB)
    ka = _round_up(fa, _SUB)
    hp = _round_up(h, _SUB)
    mp, tm, gm = _row_tiling(n)
    xp = _pad_rc(x, mp, kx, _MXU_DTYPE)
    aggp = _pad_rc(agg, mp, ka, _MXU_DTYPE)
    ampp = _pad_rc(amp.astype(jnp.float32), mp, 1)
    attp = _pad_rc(att.astype(jnp.float32), mp, 1)
    wxp = _pad_rc(wx, kx, hp, _MXU_DTYPE)
    wap = _pad_rc(wa, ka, hp, _MXU_DTYPE)
    wbp = _pad_rc(wb, ka, hp, _MXU_DTYPE)
    wcp = _pad_rc(wc, ka, hp, _MXU_DTYPE)
    pbp = jnp.pad(post_b.astype(jnp.float32), (0, hp - h)).reshape(1, hp)
    lwp = _pad_rc(lin_w, hp, h2, _MXU_DTYPE)
    lbp = lin_b.astype(jnp.float32).reshape(1, h2)
    out = pl.pallas_call(
        _pna_post_lin_kernel,
        out_shape=jax.ShapeDtypeStruct((mp, h2), jnp.float32),
        grid=(gm,),
        in_specs=[
            pl.BlockSpec((tm, kx), lambda i: (i, 0)),
            pl.BlockSpec((tm, ka), lambda i: (i, 0)),
            pl.BlockSpec((tm, 1), lambda i: (i, 0)),
            pl.BlockSpec((tm, 1), lambda i: (i, 0)),
            pl.BlockSpec((kx, hp), lambda i: (0, 0)),
            pl.BlockSpec((ka, hp), lambda i: (0, 0)),
            pl.BlockSpec((ka, hp), lambda i: (0, 0)),
            pl.BlockSpec((ka, hp), lambda i: (0, 0)),
            pl.BlockSpec((1, hp), lambda i: (0, 0)),
            pl.BlockSpec((hp, h2), lambda i: (0, 0)),
            pl.BlockSpec((1, h2), lambda i: (0, 0)),
        ],
        out_specs=pl.BlockSpec((tm, h2), lambda i: (i, 0)),
        compiler_params=_cp(),
    )(xp, aggp, ampp, attp, wxp, wap, wbp, wcp, pbp, lwp, lbp)
    return out[:n] if mp != n else out


def _bn_stats_kernel(x_ref, mean_ref, rstd_ref, s_ref, q_ref, *, count):
    @pl.when(pl.program_id(0) == 0)
    def _():
        s_ref[...] = jnp.zeros_like(s_ref)
        q_ref[...] = jnp.zeros_like(q_ref)
    x = x_ref[...]
    s_ref[...] += jnp.sum(x, axis=0, keepdims=True)
    q_ref[...] += jnp.sum(x * x, axis=0, keepdims=True)

    @pl.when(pl.program_id(0) == pl.num_programs(0) - 1)
    def _():
        inv = 1.0 / count
        mean = s_ref[...] * inv
        var = jnp.maximum(q_ref[...] * inv - mean * mean, 0.0)  # biased var
        mean_ref[...] = mean
        rstd_ref[...] = jax.lax.rsqrt(var + BN_EPS)


def _scale_shift_lrelu_kernel(x_ref, sc_ref, sh_ref, o_ref):
    y = x_ref[...] * sc_ref[...] + sh_ref[...]
    o_ref[...] = jnp.where(y > 0, y, NEG_SLOPE * y)


def bn_leaky_relu_pallas(x, gamma, beta):
    """Training-mode BatchNorm1d (batch statistics) fused with leaky_relu as a
    two-pass tiled pipeline: (1) per-column sum/sumsq accumulation over row
    tiles ("arbitrary" axis), (2) a "parallel" scale-shift + leaky apply.
    Padded rows are zero and the true row count is a compile-time constant, so
    the statistics are exact."""
    m, c = x.shape
    mp, tm, gm = _row_tiling(m)
    xp = _pad_rc(x.astype(jnp.float32), mp, c)
    mean, rstd = pl.pallas_call(
        functools.partial(_bn_stats_kernel, count=float(m)),
        out_shape=(jax.ShapeDtypeStruct((1, c), jnp.float32),
                   jax.ShapeDtypeStruct((1, c), jnp.float32)),
        grid=(gm,),
        in_specs=[pl.BlockSpec((tm, c), lambda i: (i, 0))],
        out_specs=[pl.BlockSpec((1, c), lambda i: (0, 0)),
                   pl.BlockSpec((1, c), lambda i: (0, 0))],
        scratch_shapes=[pltpu.VMEM((1, c), jnp.float32),
                        pltpu.VMEM((1, c), jnp.float32)],
        compiler_params=_cp(("arbitrary",)),
    )(xp)
    scale = gamma.astype(jnp.float32).reshape(1, c) * rstd
    shift = beta.astype(jnp.float32).reshape(1, c) - mean * scale
    out = pl.pallas_call(
        _scale_shift_lrelu_kernel,
        out_shape=jax.ShapeDtypeStruct((mp, c), jnp.float32),
        grid=(gm,),
        in_specs=[
            pl.BlockSpec((tm, c), lambda i: (i, 0)),
            pl.BlockSpec((1, c), lambda i: (0, 0)),
            pl.BlockSpec((1, c), lambda i: (0, 0)),
        ],
        out_specs=pl.BlockSpec((tm, c), lambda i: (i, 0)),
        compiler_params=_cp(),
    )(xp, scale, shift)
    return out[:m] if mp != m else out


def _pdist_kernel(x_ref, yt_ref, xx_ref, yy_ref, o_ref):
    # Plain (M,K)@(K,N) on the MXU (y pre-transposed in the wrapper -> no
    # per-tile relayout); norms precomputed outside the grid.
    inner = jnp.dot(x_ref[...], yt_ref[...], preferred_element_type=jnp.float32)
    o_ref[...] = 2.0 * inner - yy_ref[...] - xx_ref[...]   # == -(||x-y||^2)


def neg_pairwise_sqdist_pallas(x, y):
    """-(||x_i - y_j||^2), as computed inside knn().  2-D grid: query rows
    ("parallel", feeds both v7x TensorCores) x neighbor tiles.  Kept in f32 so
    the subsequent top_k ordering matches the reference."""
    x = x.astype(jnp.float32)
    y = y.astype(jnp.float32)
    m, d = x.shape
    n, _ = y.shape
    dp = _round_up(d, 8)
    mp, tm, gm = _row_tiling(m, max_tile=256)
    np_ = _round_up(n, 128)
    tn = min(np_, 512)
    np_ = _round_up(np_, tn)
    gn = np_ // tn
    xp = _pad_rc(x, mp, dp)
    ytp = _pad_rc(y, np_, dp).T                       # (dp, N) lane-dense
    xx = jnp.sum(xp * xp, axis=1, keepdims=True)      # (mp, 1), computed once
    yy = jnp.sum(ytp * ytp, axis=0, keepdims=True)    # (1, N),  computed once
    out = pl.pallas_call(
        _pdist_kernel,
        out_shape=jax.ShapeDtypeStruct((mp, np_), jnp.float32),
        grid=(gm, gn),
        in_specs=[
            pl.BlockSpec((tm, dp), lambda i, j: (i, 0)),
            pl.BlockSpec((dp, tn), lambda i, j: (0, j)),
            pl.BlockSpec((tm, 1), lambda i, j: (i, 0)),
            pl.BlockSpec((1, tn), lambda i, j: (0, j)),
        ],
        out_specs=pl.BlockSpec((tm, tn), lambda i, j: (i, j)),
        compiler_params=_cp(("parallel", "arbitrary")),
    )(xp, ytp, xx, yy)
    return out[:m, :n]


# ----------------------------------------------------------------------------
# Graph-op glue (scatter / gather / top_k in plain JAX)
# ----------------------------------------------------------------------------
def knn_jax(x, x_neig, k=20):
    """Faithful port of the reference knn(): chunked in steps of 1000, so with
    fewer than 1000 query nodes the loop never runs and zeros are returned
    (mirroring the PyTorch reference, including float indices)."""
    n = x.shape[0]
    all_neigs = jnp.zeros((n, k), jnp.float32)
    step = 1000
    for i in range(n // step):
        start = i * step
        end = (i + 1) * step
        if i == n // step - 1:
            end = n
        x_part = x[start:end, :]
        pairwise = neg_pairwise_sqdist_pallas(x_part, x_neig)
        _, indices = jax.lax.top_k(pairwise, k)
        all_neigs = all_neigs.at[start:end, :].set(indices.astype(jnp.float32))
    return all_neigs


def get_graph_feature_jax(x_orig, x_neig, k=10):
    num_points = x_orig.shape[0]
    idx = knn_jax(x_orig, x_neig, k=k)
    idx = idx + x_orig.shape[0]
    edges_x = jnp.tile(jnp.arange(num_points, dtype=jnp.int32).reshape(num_points, 1), (1, k))
    idx = idx.reshape(1, -1)
    edges_x = edges_x.reshape(1, -1)
    e1 = jnp.concatenate([edges_x.astype(jnp.int32), idx.astype(jnp.int32)], axis=0)
    e2 = jnp.concatenate([idx.astype(jnp.int32), edges_x.astype(jnp.int32)], axis=0)
    new_edges = jnp.concatenate([e1, e2], axis=1)
    return new_edges, idx


def pna_conv(params, x, edge_index, edge_attr, avg_deg_log):
    """PNAConv, towers=1, pre/post_layers=1, divide_input=False,
    aggregators=[mean,min,max,std], scalers=[identity,amplification,attenuation].
    The edge encoder is folded into the pre weight at init; the scaler concat is
    folded into the post+lin kernel."""
    src = edge_index[0]
    dst = edge_index[1]
    n = x.shape[0]
    e = edge_attr.shape[0]

    # TODO(synk): move these edge gathers + the segment reductions below into a
    # scalar-prefetched Pallas SpMM-style kernel (x kept VMEM-resident, src/dst
    # via PrefetchScalarGridSpec) to remove the (E,2F+1) HBM materialization.
    xe = jnp.concatenate([x[dst], x[src], edge_attr.astype(x.dtype)], axis=1)
    h = linear_pallas(xe, params["pre_w"], params["pre_b"])        # (E, F)

    ones = jnp.ones((e,), jnp.float32)
    cnt = jax.ops.segment_sum(ones, dst, num_segments=n)
    deg = jnp.maximum(cnt, 1.0)

    s = jax.ops.segment_sum(h, dst, num_segments=n)
    mean = s / deg[:, None]
    ssq = jax.ops.segment_sum(h * h, dst, num_segments=n)
    var = jnp.maximum(ssq / deg[:, None] - mean * mean, 0.0)
    std = jnp.sqrt(var + PNA_STD_EPS)
    has = (cnt > 0.0)[:, None]
    # PyG yields 0 for empty neighborhoods; mask the +-inf segment identities.
    mn = jnp.where(has, jax.ops.segment_min(h, dst, num_segments=n), 0.0)
    mx = jnp.where(has, jax.ops.segment_max(h, dst, num_segments=n), 0.0)

    agg = jnp.concatenate([mean, mn, mx, std], axis=-1)            # (N, 4F)
    logd = jnp.log(deg + 1.0)
    amp = (logd / avg_deg_log)[:, None]
    att = (avg_deg_log / logd)[:, None]

    return pna_post_lin_pallas(x, agg, amp, att,
                               params["post_wx"], params["post_wa"],
                               params["post_wb"], params["post_wc"],
                               params["post_b"], params["lin_w"], params["lin_b"])


def gcn_conv(params, x, edge_index):
    """GCNConv with self-loops and symmetric normalization (edge_weight = 1)."""
    n = x.shape[0]
    loop = jnp.arange(n, dtype=jnp.int32)
    src = jnp.concatenate([edge_index[0], loop])
    dst = jnp.concatenate([edge_index[1], loop])
    ew = jnp.ones((src.shape[0],), jnp.float32)
    deg = jax.ops.segment_sum(ew, dst, num_segments=n)
    dinv = jnp.where(deg > 0, jax.lax.rsqrt(deg), 0.0)
    norm = dinv[src] * ew * dinv[dst]
    xw = linear_pallas(x, params["w"])
    msg = xw[src] * norm[:, None]
    out = jax.ops.segment_sum(msg, dst, num_segments=n)
    return out + params["b"]


# ----------------------------------------------------------------------------
# Parameter initialization (deterministic, synthetic).  Weights are pre-cast to
# bf16 (MXU operands) at init time; biases / BN affine stay f32.
# ----------------------------------------------------------------------------
def init_linear_params(key, fan_in, fan_out):
    kw, kb = jax.random.split(key)
    bound = 1.0 / math.sqrt(fan_in)
    w = jax.random.uniform(kw, (fan_in, fan_out), jnp.float32, -bound, bound)
    b = jax.random.uniform(kb, (fan_out,), jnp.float32, -bound, bound)
    return w, b


def init_pna_params(key, in_channels, out_channels):
    f = in_channels  # towers=1, divide_input=False
    keys = jax.random.split(key, 4)
    edge_w, edge_b = init_linear_params(keys[0], 1, f)
    pre_w, pre_b = init_linear_params(keys[1], 3 * f, f)
    post_w, post_b = init_linear_params(keys[2], (4 * 3 + 1) * f, out_channels)
    lin_w, lin_b = init_linear_params(keys[3], out_channels, out_channels)
    # Fold the (E,1)@(1,F) edge encoder into the pre-linear (rank-1 fold done
    # once in f32, then cast):
    #   pre([x_i, x_j, ea@We+be]) = [x_i, x_j, ea] @ [W0; W1; We@W2] + (be@W2 + b_pre)
    w2 = pre_w[2 * f:]
    pre_w_fused = jnp.concatenate([pre_w[:2 * f], edge_w @ w2], axis=0)  # (2F+1, F)
    pre_b_fused = pre_b + (edge_b @ w2).reshape(-1)
    return dict(
        pre_w=pre_w_fused.astype(_MXU_DTYPE), pre_b=pre_b_fused,
        post_wx=post_w[:f].astype(_MXU_DTYPE),
        post_wa=post_w[f:5 * f].astype(_MXU_DTYPE),
        post_wb=post_w[5 * f:9 * f].astype(_MXU_DTYPE),
        post_wc=post_w[9 * f:].astype(_MXU_DTYPE),
        post_b=post_b,
        lin_w=lin_w.astype(_MXU_DTYPE), lin_b=lin_b)


def init_gcn(key, nfeat, nhid, degree_hist):
    keys = jax.random.split(key, 5)

    def dense(k, fi, fo):
        w, b = init_linear_params(k, fi, fo)
        return dict(w=w.astype(_MXU_DTYPE), b=b)

    params = {
        "conv1": init_pna_params(keys[0], nfeat, nhid // 2),
        "conv1_bn": dict(gamma=jnp.ones((nhid // 2,), jnp.float32),
                         beta=jnp.zeros((nhid // 2,), jnp.float32)),
        "conv1_sec": init_pna_params(keys[1], nhid // 2, nhid),
        "conv1_sec_bn": dict(gamma=jnp.ones((nhid,), jnp.float32),
                             beta=jnp.zeros((nhid,), jnp.float32)),
        "conv3": dense(keys[2], 32, 64),
        "mlp1": dense(keys[3], 64, 32),
        "mlp2": dense(keys[4], 32, 1),
    }
    bins = jnp.arange(degree_hist.shape[0], dtype=jnp.float32)
    avg_deg_log = (jnp.log(bins + 1.0) * degree_hist).sum() / degree_hist.sum()
    return params, avg_deg_log


# ----------------------------------------------------------------------------
# GCN.forward
# ----------------------------------------------------------------------------
def gcn_forward(params, avg_deg_log, graph_packet, neig_dict):
    x = graph_packet["ft_graph"]
    edge_list = graph_packet["graph"]
    weights = graph_packet["weights"]

    sel_feats, sel_img_idx, sel_vox = [], [], []
    for i, nb in enumerate(neig_dict):
        xn = pna_conv(params["conv1"], nb["ft_graph"], nb["graph"],
                      nb["weights"].reshape(-1, 1), avg_deg_log)
        xn = bn_leaky_relu_pallas(xn, params["conv1_bn"]["gamma"], params["conv1_bn"]["beta"])
        xn = pna_conv(params["conv1_sec"], xn, nb["graph"],
                      nb["weights"].reshape(-1, 1), avg_deg_log)
        xn = bn_leaky_relu_pallas(xn, params["conv1_sec_bn"]["gamma"],
                                  params["conv1_sec_bn"]["beta"])
        idx = nb["index"]
        sel_feats.append(xn[idx, :])
        sel_img_idx.append(i * jnp.ones((idx.shape[0],), jnp.float32))
        sel_vox.append(nb["node_voxel"][idx, :])
    selected_neig_features = jnp.concatenate(sel_feats, axis=0)
    selected_neig_img_indices = jnp.concatenate(sel_img_idx, axis=0)
    selected_neig_img_voxel_positions = jnp.concatenate(sel_vox, axis=0)

    x_orig_node_count = x.shape[0]
    x_orig = pna_conv(params["conv1"], x, edge_list, weights.reshape(-1, 1), avg_deg_log)
    x_orig = bn_leaky_relu_pallas(x_orig, params["conv1_bn"]["gamma"], params["conv1_bn"]["beta"])
    x_orig = pna_conv(params["conv1_sec"], x_orig, edge_list, weights.reshape(-1, 1), avg_deg_log)
    x_orig = bn_leaky_relu_pallas(x_orig, params["conv1_sec_bn"]["gamma"],
                                  params["conv1_sec_bn"]["beta"])

    new_edges, selected_ids = get_graph_feature_jax(x_orig, selected_neig_features, k=5)
    extended_features = jnp.concatenate([x_orig, selected_neig_features], axis=0)
    extended_edges = jnp.concatenate([edge_list, new_edges], axis=1)

    x3 = gcn_conv(params["conv3"], extended_features, extended_edges)
    x3 = jnp.where(x3 > 0, x3, NEG_SLOPE * x3)  # F.leaky_relu
    extended_features = x3[0:x_orig_node_count, :]

    # TODO(synk): torch.nn.Dropout(0.5) is stochastic in train mode; applied as identity (eval).
    out = linear2_pallas(extended_features,
                         params["mlp1"]["w"], params["mlp1"]["b"],
                         params["mlp2"]["w"], params["mlp2"]["b"],
                         act1="relu", act2="sigmoid")
    out = jnp.squeeze(out)
    return (out, selected_neig_img_indices, selected_neig_img_voxel_positions, selected_ids)


# ----------------------------------------------------------------------------
# Demo
# ----------------------------------------------------------------------------
if __name__ == "__main__":
    key = jax.random.PRNGKey(0)
    nfeat, nhid = 16, 32  # nhid=32 so that conv3 = GCNConv(32, 64) matches
    deg_hist = jnp.array([0.0, 2.0, 8.0, 4.0, 1.0], jnp.float32)
    k_param, k_data = jax.random.split(key)
    params, avg_deg_log = init_gcn(k_param, nfeat, nhid, deg_hist)

    def ring_edges(n):
        a = jnp.arange(n, dtype=jnp.int32)
        src = jnp.concatenate([a, (a + 1) % n])
        dst = jnp.concatenate([(a + 1) % n, a])
        return jnp.stack([src, dst])

    ks = jax.random.split(k_data, 10)
    n_main = 12
    graph_packet = {
        "ft_graph": jax.random.normal(ks[0], (n_main, nfeat), jnp.float32),
        "graph": ring_edges(n_main),
        "weights": jax.random.uniform(ks[1], (2 * n_main,), jnp.float32),
    }
    neig_dict = []
    n_neig = 10
    for j in range(2):
        neig_dict.append({
            "ft_graph": jax.random.normal(ks[2 + 3 * j], (n_neig, nfeat), jnp.float32),
            "graph": ring_edges(n_neig),
            "weights": jax.random.uniform(ks[3 + 3 * j], (2 * n_neig,), jnp.float32),
            "node_voxel": jax.random.uniform(ks[4 + 3 * j], (n_neig, 3), jnp.float32),
            "index": jnp.array([0, 3, 5, 7], jnp.int32),
        })

    fwd = jax.jit(gcn_forward)  # lets XLA fuse the pad/cast/slice glue around the kernels
    outs = fwd(params, avg_deg_log, graph_packet, neig_dict)
    outs = jax.block_until_ready(outs)
    assert outs[0].shape == (n_main,)
    assert outs[1].shape == (8,)
    assert outs[2].shape == (8, 3)
    assert outs[3].shape == (1, n_main * 5)
    assert bool(jnp.all(jnp.isfinite(outs[0])))

    # Smoke-test the pairwise-distance kernel (the knn chunk loop only triggers
    # for >= 1000 query nodes, mirroring the reference, so exercise it here).
    pd = neg_pairwise_sqdist_pallas(jax.random.normal(ks[8], (12, nhid), jnp.float32),
                                    jax.random.normal(ks[9], (8, nhid), jnp.float32))
    pd = jax.block_until_ready(pd)
    assert pd.shape == (12, 8)
    assert bool(jnp.all(jnp.isfinite(pd)))

    print("KERNEL_OK")
</pallas_src>

<mosaic_0001>
module attributes {stable_mosaic.version = 11 : i64} {
  func.func @_linear_kernel(%arg0: i32, %arg1: memref<32x48xbf16, #tpu.memory_space<vmem>>, %arg2: memref<48x16xbf16, #tpu.memory_space<vmem>>, %arg3: memref<1x16xf32, #tpu.memory_space<vmem>>, %arg4: memref<32x16xf32, #tpu.memory_space<vmem>>) attributes {dimension_semantics = [#tpu.dimension_semantics<parallel>], iteration_bounds = array<i64: 1>, scalar_prefetch = 0 : i64, scratch_operands = 0 : i64, tpu.core_type = #tpu.core_type<tc>, window_params = [{transform_indices = @transform_0, window_bounds = array<i64: 32, 48>}, {pipeline_mode = #tpu.pipeline_mode<synchronous>, transform_indices = @transform_1, window_bounds = array<i64: 48, 16>}, {pipeline_mode = #tpu.pipeline_mode<synchronous>, transform_indices = @transform_2, window_bounds = array<i64: 1, 16>}, {transform_indices = @transform_3, window_bounds = array<i64: 32, 16>}]} {
    %c0 = arith.constant 0 : index
    %c0_0 = arith.constant 0 : index
    %0 = vector.load %arg1[%c0, %c0_0] : memref<32x48xbf16, #tpu.memory_space<vmem>>, vector<32x48xbf16>
    %c0_1 = arith.constant 0 : index
    %c0_2 = arith.constant 0 : index
    %1 = vector.load %arg2[%c0_1, %c0_2] : memref<48x16xbf16, #tpu.memory_space<vmem>>, vector<48x16xbf16>
    %cst = arith.constant dense<0.000000e+00> : vector<32x16xf32>
    %2 = tpu.matmul %0, %1, %cst {dimension_numbers = #tpu.dot_dimension_numbers<[1], [0], [0], [1], [0, 0, 1, 1], [], []>} : vector<32x48xbf16>, vector<48x16xbf16>, vector<32x16xf32> -> vector<32x16xf32>
    %c0_3 = arith.constant 0 : index
    %c0_4 = arith.constant 0 : index
    %3 = vector.load %arg3[%c0_3, %c0_4] : memref<1x16xf32, #tpu.memory_space<vmem>>, vector<1x16xf32>
    %4 = vector.broadcast %3 : vector<1x16xf32> to vector<32x16xf32>
    %5 = arith.addf %2, %4 : vector<32x16xf32>
    %c0_5 = arith.constant 0 : index
    %c0_6 = arith.constant 0 : index
    %6 = vector.load %arg4[%c0_5, %c0_6] : memref<32x16xf32, #tpu.memory_space<vmem>>, vector<32x16xf32>
    tpu.vector_store %arg4[%c0_5, %c0_6], %5 {strides = array<i32>} : memref<32x16xf32, #tpu.memory_space<vmem>>, vector<32x16xf32>,
    return
  }
  func.func @transform_0(%arg0: i32) -> (i32, i32) {
    %c0_i32 = arith.constant 0 : i32
    %c0_i32_0 = arith.constant 0 : i32
    return %arg0, %c0_i32 : i32, i32
  }
  func.func @transform_1(%arg0: i32) -> (i32, i32) {
    %c0_i32 = arith.constant 0 : i32
    %c0_i32_0 = arith.constant 0 : i32
    %c0_i32_1 = arith.constant 0 : i32
    return %c0_i32, %c0_i32_0 : i32, i32
  }
  func.func @transform_2(%arg0: i32) -> (i32, i32) {
    %c0_i32 = arith.constant 0 : i32
    %c0_i32_0 = arith.constant 0 : i32
    %c0_i32_1 = arith.constant 0 : i32
    return %c0_i32, %c0_i32_0 : i32, i32
  }
  func.func @transform_3(%arg0: i32) -> (i32, i32) {
    %c0_i32 = arith.constant 0 : i32
    %c0_i32_0 = arith.constant 0 : i32
    return %arg0, %c0_i32 : i32, i32
  }
}

module attributes {stable_mosaic.version = 11 : i64} {
  func.func @_pna_post_lin_kernel(%arg0: i32, %arg1: memref<16x16xbf16, #tpu.memory_space<vmem>>, %arg2: memref<16x64xbf16, #tpu.memory_space<vmem>>, %arg3: memref<16x1xf32, #tpu.memory_space<vmem>>, %arg4: memref<16x1xf32, #tpu.memory_space<vmem>>, %arg5: memref<16x16xbf16, #tpu.memory_space<vmem>>, %arg6: memref<64x16xbf16, #tpu.memory_space<vmem>>, %arg7: memref<64x16xbf16, #tpu.memory_space<vmem>>, %arg8: memref<64x16xbf16, #tpu.memory_space<vmem>>, %arg9: memref<1x16xf32, #tpu.memory_space<vmem>>, %arg10: memref<16x16xbf16, #tpu.memory_space<vmem>>, %arg11: memref<1x16xf32, #tpu.memory_space<vmem>>, %arg12: memref<16x16xf32, #tpu.memory_space<vmem>>) attributes {dimension_semantics = [#tpu.dimension_semantics<parallel>], iteration_bounds = array<i64: 1>, scalar_prefetch = 0 : i64, scratch_operands = 0 : i64, tpu.core_type = #tpu.core_type<tc>, window_params = [{transform_indices = @transform_0, window_bounds = array<i64: 16, 16>}, {transform_indices = @transform_1, window_bounds = array<i64: 16, 64>}, {transform_indices = @transform_2, window_bounds = array<i64: 16, 1>}, {transform_indices = @transform_3, window_bounds = array<i64: 16, 1>}, {pipeline_mode = #tpu.pipeline_mode<synchronous>, transform_indices = @transform_4, window_bounds = array<i64: 16, 16>}, {pipeline_mode = #tpu.pipeline_mode<synchronous>, transform_indices = @transform_5, window_bounds = array<i64: 64, 16>}, {pipeline_mode = #tpu.pipeline_mode<synchronous>, transform_indices = @transform_6, window_bounds = array<i64: 64, 16>}, {pipeline_mode = #tpu.pipeline_mode<synchronous>, transform_indices = @transform_7, window_bounds = array<i64: 64, 16>}, {pipeline_mode = #tpu.pipeline_mode<synchronous>, transform_indices = @transform_8, window_bounds = array<i64: 1, 16>}, {pipeline_mode = #tpu.pipeline_mode<synchronous>, transform_indices = @transform_9, window_bounds = array<i64: 16, 16>}, {pipeline_mode = #tpu.pipeline_mode<synchronous>, transform_indices = @transform_10, window_bounds = array<i64: 1, 16>}, {transform_indices = @transform_11, window_bounds = array<i64: 16, 16>}]} {
    %c0 = arith.constant 0 : index
    %c0_0 = arith.constant 0 : index
    %0 = vector.load %arg2[%c0, %c0_0] : memref<16x64xbf16, #tpu.memory_space<vmem>>, vector<16x64xbf16>
    %c0_1 = arith.constant 0 : index
    %c0_2 = arith.constant 0 : index
    %1 = vector.load %arg1[%c0_1, %c0_2] : memref<16x16xbf16, #tpu.memory_space<vmem>>, vector<16x16xbf16>
    %c0_3 = arith.constant 0 : index
    %c0_4 = arith.constant 0 : index
    %2 = vector.load %arg5[%c0_3, %c0_4] : memref<16x16xbf16, #tpu.memory_space<vmem>>, vector<16x16xbf16>
    %cst = arith.constant dense<0.000000e+00> : vector<16x16xf32>
    %3 = tpu.matmul %1, %2, %cst {dimension_numbers = #tpu.dot_dimension_numbers<[1], [0], [0], [1], [0, 0, 1, 1], [], []>} : vector<16x16xbf16>, vector<16x16xbf16>, vector<16x16xf32> -> vector<16x16xf32>
    %c0_5 = arith.constant 0 : index
    %c0_6 = arith.constant 0 : index
    %4 = vector.load %arg6[%c0_5, %c0_6] : memref<64x16xbf16, #tpu.memory_space<vmem>>, vector<64x16xbf16>
    %cst_7 = arith.constant dense<0.000000e+00> : vector<16x16xf32>
    %5 = tpu.matmul %0, %4, %cst_7 {dimension_numbers = #tpu.dot_dimension_numbers<[1], [0], [0], [1], [0, 0, 1, 1], [], []>} : vector<16x64xbf16>, vector<64x16xbf16>, vector<16x16xf32> -> vector<16x16xf32>
    %6 = arith.addf %3, %5 : vector<16x16xf32>
    %c0_8 = arith.constant 0 : index
    %c0_9 = arith.constant 0 : index
    %7 = vector.load %arg3[%c0_8, %c0_9] : memref<16x1xf32, #tpu.memory_space<vmem>>, vector<16x1xf32>
    %c0_10 = arith.constant 0 : index
    %c0_11 = arith.constant 0 : index
    %8 = vector.load %arg7[%c0_10, %c0_11] : memref<64x16xbf16, #tpu.memory_space<vmem>>, vector<64x16xbf16>
    %cst_12 = arith.constant dense<0.000000e+00> : vector<16x16xf32>
    %9 = tpu.matmul %0, %8, %cst_12 {dimension_numbers = #tpu.dot_dimension_numbers<[1], [0], [0], [1], [0, 0, 1, 1], [], []>} : vector<16x64xbf16>, vector<64x16xbf16>, vector<16x16xf32> -> vector<16x16xf32>
    %10 = vector.broadcast %7 : vector<16x1xf32> to vector<16x16xf32>
    %11 = arith.mulf %10, %9 : vector<16x16xf32>
    %12 = arith.addf %6, %11 : vector<16x16xf32>
    %c0_13 = arith.constant 0 : index
    %c0_14 = arith.constant 0 : index
    %13 = vector.load %arg4[%c0_13, %c0_14] : memref<16x1xf32, #tpu.memory_space<vmem>>, vector<16x1xf32>
    %c0_15 = arith.constant 0 : index
    %c0_16 = arith.constant 0 : index
    %14 = vector.load %arg8[%c0_15, %c0_16] : memref<64x16xbf16, #tpu.memory_space<vmem>>, vector<64x16xbf16>
    %cst_17 = arith.constant dense<0.000000e+00> : vector<16x16xf32>
    %15 = tpu.matmul %0, %14, %cst_17 {dimension_numbers = #tpu.dot_dimension_numbers<[1], [0], [0], [1], [0, 0, 1, 1], [], []>} : vector<16x64xbf16>, vector<64x16xbf16>, vector<16x16xf32> -> vector<16x16xf32>
    %16 = vector.broadcast %13 : vector<16x1xf32> to vector<16x16xf32>
    %17 = arith.mulf %16, %15 : vector<16x16xf32>
    %18 = arith.addf %12, %17 : vector<16x16xf32>
    %c0_18 = arith.constant 0 : index
    %c0_19 = arith.constant 0 : index
    %19 = vector.load %arg9[%c0_18, %c0_19] : memref<1x16xf32, #tpu.memory_space<vmem>>, vector<1x16xf32>
    %20 = vector.broadcast %19 : vector<1x16xf32> to vector<16x16xf32>
    %21 = arith.addf %18, %20 : vector<16x16xf32>
    %22 = arith.truncf %21 : vector<16x16xf32> to vector<16x16xbf16>
    %c0_20 = arith.constant 0 : index
    %c0_21 = arith.constant 0 : index
    %23 = vector.load %arg10[%c0_20, %c0_21] : memref<16x16xbf16, #tpu.memory_space<vmem>>, vector<16x16xbf16>
    %cst_22 = arith.constant dense<0.000000e+00> : vector<16x16xf32>
    %24 = tpu.matmul %22, %23, %cst_22 {dimension_numbers = #tpu.dot_dimension_numbers<[1], [0], [0], [1], [0, 0, 1, 1], [], []>} : vector<16x16xbf16>, vector<16x16xbf16>, vector<16x16xf32> -> vector<16x16xf32>
    %c0_23 = arith.constant 0 : index
    %c0_24 = arith.constant 0 : index
    %25 = vector.load %arg11[%c0_23, %c0_24] : memref<1x16xf32, #tpu.memory_space<vmem>>, vector<1x16xf32>
    %26 = vector.broadcast %25 : vector<1x16xf32> to vector<16x16xf32>
    %27 = arith.addf %24, %26 : vector<16x16xf32>
    %c0_25 = arith.constant 0 : index
    %c0_26 = arith.constant 0 : index
    %28 = vector.load %arg12[%c0_25, %c0_26] : memref<16x16xf32, #tpu.memory_space<vmem>>, vector<16x16xf32>
    tpu.vector_store %arg12[%c0_25, %c0_26], %27 {strides = array<i32>} : memref<16x16xf32, #tpu.memory_space<vmem>>, vector<16x16xf32>,
    return
  }
  func.func @transform_0(%arg0: i32) -> (i32, i32) {
    %c0_i32 = arith.constant 0 : i32
    %c0_i32_0 = arith.constant 0 : i32
    return %arg0, %c0_i32 : i32, i32
  }
  func.func @transform_1(%arg0: i32) -> (i32, i32) {
    %c0_i32 = arith.constant 0 : i32
    %c0_i32_0 = arith.constant 0 : i32
    return %arg0, %c0_i32 : i32, i32
  }
  func.func @transform_2(%arg0: i32) -> (i32, i32) {
    %c0_i32 = arith.constant 0 : i32
    %c0_i32_0 = arith.constant 0 : i32
    return %arg0, %c0_i32 : i32, i32
  }
  func.func @transform_3(%arg0: i32) -> (i32, i32) {
    %c0_i32 = arith.constant 0 : i32
    %c0_i32_0 = arith.constant 0 : i32
    return %arg0, %c0_i32 : i32, i32
  }
  func.func @transform_4(%arg0: i32) -> (i32, i32) {
    %c0_i32 = arith.constant 0 : i32
    %c0_i32_0 = arith.constant 0 : i32
    %c0_i32_1 = arith.constant 0 : i32
    return %c0_i32, %c0_i32_0 : i32, i32
  }
  func.func @transform_5(%arg0: i32) -> (i32, i32) {
    %c0_i32 = arith.constant 0 : i32
    %c0_i32_0 = arith.constant 0 : i32
    %c0_i32_1 = arith.constant 0 : i32
    return %c0_i32, %c0_i32_0 : i32, i32
  }
  func.func @transform_6(%arg0: i32) -> (i32, i32) {
    %c0_i32 = arith.constant 0 : i32
    %c0_i32_0 = arith.constant 0 : i32
    %c0_i32_1 = arith.constant 0 : i32
    return %c0_i32, %c0_i32_0 : i32, i32
  }
  func.func @transform_7(%arg0: i32) -> (i32, i32) {
    %c0_i32 = arith.constant 0 : i32
    %c0_i32_0 = arith.constant 0 : i32
    %c0_i32_1 = arith.constant 0 : i32
    return %c0_i32, %c0_i32_0 : i32, i32
  }
  func.func @transform_8(%arg0: i32) -> (i32, i32) {
    %c0_i32 = arith.constant 0 : i32
    %c0_i32_0 = arith.constant 0 : i32
    %c0_i32_1 = arith.constant 0 : i32
    return %c0_i32, %c0_i32_0 : i32, i32
  }
  func.func @transform_9(%arg0: i32) -> (i32, i32) {
    %c0_i32 = arith.constant 0 : i32
    %c0_i32_0 = arith.constant 0 : i32
    %c0_i32_1 = arith.constant 0 : i32
    return %c0_i32, %c0_i32_0 : i32, i32
  }
  func.func @transform_10(%arg0: i32) -> (i32, i32) {
    %c0_i32 = arith.constant 0 : i32
    %c0_i32_0 = arith.constant 0 : i32
    %c0_i32_1 = arith.constant 0 : i32
    return %c0_i32, %c0_i32_0 : i32, i32
  }
  func.func @transform_11(%arg0: i32) -> (i32, i32) {
    %c0_i32 = arith.constant 0 : i32
    %c0_i32_0 = arith.constant 0 : i32
    return %arg0, %c0_i32 : i32, i32
  }
}

module attributes {stable_mosaic.version = 11 : i64} {
  func.func @_bn_stats_kernel(%arg0: i32, %arg1: memref<16x16xf32, #tpu.memory_space<vmem>>, %arg2: memref<1x16xf32, #tpu.memory_space<vmem>>, %arg3: memref<1x16xf32, #tpu.memory_space<vmem>>, %arg4: memref<1x16xf32, #tpu.memory_space<vmem>>, %arg5: memref<1x16xf32, #tpu.memory_space<vmem>>) attributes {dimension_semantics = [#tpu.dimension_semantics<arbitrary>], iteration_bounds = array<i64: 1>, scalar_prefetch = 0 : i64, scratch_operands = 2 : i64, tpu.core_type = #tpu.core_type<tc>, window_params = [{transform_indices = @transform_0, window_bounds = array<i64: 16, 16>}, {pipeline_mode = #tpu.pipeline_mode<synchronous>, transform_indices = @transform_1, window_bounds = array<i64: 1, 16>}, {pipeline_mode = #tpu.pipeline_mode<synchronous>, transform_indices = @transform_2, window_bounds = array<i64: 1, 16>}]} {
    %c0_i32 = arith.constant 0 : i32
    %0 = arith.cmpi eq, %arg0, %c0_i32 : i32
    %1 = arith.extui %0 : i1 to i32
    %c0_i32_0 = arith.constant 0 : i32
    %2 = arith.cmpi ne, %1, %c0_i32_0 : i32
    scf.if %2 {
      %cst_13 = arith.constant 0.000000e+00 : f32
      %18 = vector.broadcast %cst_13 : f32 to vector<1x16xf32>
      %c0_14 = arith.constant 0 : index
      %c0_15 = arith.constant 0 : index
      %19 = vector.load %arg4[%c0_14, %c0_15] : memref<1x16xf32, #tpu.memory_space<vmem>>, vector<1x16xf32>
      tpu.vector_store %arg4[%c0_14, %c0_15], %18 {strides = array<i32>} : memref<1x16xf32, #tpu.memory_space<vmem>>, vector<1x16xf32>,
      %cst_16 = arith.constant 0.000000e+00 : f32
      %20 = vector.broadcast %cst_16 : f32 to vector<1x16xf32>
      %c0_17 = arith.constant 0 : index
      %c0_18 = arith.constant 0 : index
      %21 = vector.load %arg5[%c0_17, %c0_18] : memref<1x16xf32, #tpu.memory_space<vmem>>, vector<1x16xf32>
      tpu.vector_store %arg5[%c0_17, %c0_18], %20 {strides = array<i32>} : memref<1x16xf32, #tpu.memory_space<vmem>>, vector<1x16xf32>,
    } else {
    }
    %c0 = arith.constant 0 : index
    %c0_1 = arith.constant 0 : index
    %3 = vector.load %arg1[%c0, %c0_1] : memref<16x16xf32, #tpu.memory_space<vmem>>, vector<16x16xf32>
    %c0_2 = arith.constant 0 : index
    %c0_3 = arith.constant 0 : index
    %4 = vector.load %arg4[%c0_2, %c0_3] : memref<1x16xf32, #tpu.memory_space<vmem>>, vector<1x16xf32>
    %cst = arith.constant dense<0.000000e+00> : vector<16xf32>
    %5 = vector.multi_reduction <add>, %3, %cst [0] : vector<16x16xf32> to vector<16xf32>
    %6 = vector.shape_cast %5 : vector<16xf32> to vector<1x16xf32>
    %7 = arith.addf %4, %6 : vector<1x16xf32>
    %c0_4 = arith.constant 0 : index
    %c0_5 = arith.constant 0 : index
    %8 = vector.load %arg4[%c0_4, %c0_5] : memref<1x16xf32, #tpu.memory_space<vmem>>, vector<1x16xf32>
    tpu.vector_store %arg4[%c0_4, %c0_5], %7 {strides = array<i32>} : memref<1x16xf32, #tpu.memory_space<vmem>>, vector<1x16xf32>,
    %c0_6 = arith.constant 0 : index
    %c0_7 = arith.constant 0 : index
    %9 = vector.load %arg5[%c0_6, %c0_7] : memref<1x16xf32, #tpu.memory_space<vmem>>, vector<1x16xf32>
    %10 = arith.mulf %3, %3 : vector<16x16xf32>
    %cst_8 = arith.constant dense<0.000000e+00> : vector<16xf32>
    %11 = vector.multi_reduction <add>, %10, %cst_8 [0] : vector<16x16xf32> to vector<16xf32>
    %12 = vector.shape_cast %11 : vector<16xf32> to vector<1x16xf32>
    %13 = arith.addf %9, %12 : vector<1x16xf32>
    %c0_9 = arith.constant 0 : index
    %c0_10 = arith.constant 0 : index
    %14 = vector.load %arg5[%c0_9, %c0_10] : memref<1x16xf32, #tpu.memory_space<vmem>>, vector<1x16xf32>
    tpu.vector_store %arg5[%c0_9, %c0_10], %13 {strides = array<i32>} : memref<1x16xf32, #tpu.memory_space<vmem>>, vector<1x16xf32>,
    %c0_i32_11 = arith.constant 0 : i32
    %15 = arith.cmpi eq, %arg0, %c0_i32_11 : i32
    %16 = arith.extui %15 : i1 to i32
    %c0_i32_12 = arith.constant 0 : i32
    %17 = arith.cmpi ne, %16, %c0_i32_12 : i32
    scf.if %17 {
      %c0_13 = arith.constant 0 : index
      %c0_14 = arith.constant 0 : index
      %18 = vector.load %arg4[%c0_13, %c0_14] : memref<1x16xf32, #tpu.memory_space<vmem>>, vector<1x16xf32>
      %cst_15 = arith.constant 1.000000e-01 : f32
      %19 = vector.broadcast %cst_15 : f32 to vector<1x16xf32>
      %20 = arith.mulf %18, %19 : vector<1x16xf32>
      %c0_16 = arith.constant 0 : index
      %c0_17 = arith.constant 0 : index
      %21 = vector.load %arg5[%c0_16, %c0_17] : memref<1x16xf32, #tpu.memory_space<vmem>>, vector<1x16xf32>
      %cst_18 = arith.constant 1.000000e-01 : f32
      %22 = vector.broadcast %cst_18 : f32 to vector<1x16xf32>
      %23 = arith.mulf %21, %22 : vector<1x16xf32>
      %24 = arith.mulf %20, %20 : vector<1x16xf32>
      %25 = arith.subf %23, %24 : vector<1x16xf32>
      %cst_19 = arith.constant 0.000000e+00 : f32
      %26 = vector.broadcast %cst_19 : f32 to vector<1x16xf32>
      %27 = arith.maximumf %25, %26 : vector<1x16xf32>
      %c0_20 = arith.constant 0 : index
      %c0_21 = arith.constant 0 : index
      %28 = vector.load %arg2[%c0_20, %c0_21] : memref<1x16xf32, #tpu.memory_space<vmem>>, vector<1x16xf32>
      tpu.vector_store %arg2[%c0_20, %c0_21], %20 {strides = array<i32>} : memref<1x16xf32, #tpu.memory_space<vmem>>, vector<1x16xf32>,
      %cst_22 = arith.constant 9.99999974E-6 : f32
      %29 = vector.broadcast %cst_22 : f32 to vector<1x16xf32>
      %30 = arith.addf %27, %29 : vector<1x16xf32>
      %31 = math.rsqrt %30 : vector<1x16xf32>
      %c0_23 = arith.constant 0 : index
      %c0_24 = arith.constant 0 : index
      %32 = vector.load %arg3[%c0_23, %c0_24] : memref<1x16xf32, #tpu.memory_space<vmem>>, vector<1x16xf32>
      tpu.vector_store %arg3[%c0_23, %c0_24], %31 {strides = array<i32>} : memref<1x16xf32, #tpu.memory_space<vmem>>, vector<1x16xf32>,
    } else {
    }
    return
  }
  func.func @transform_0(%arg0: i32) -> (i32, i32) {
    %c0_i32 = arith.constant 0 : i32
    %c0_i32_0 = arith.constant 0 : i32
    return %arg0, %c0_i32 : i32, i32
  }
  func.func @transform_1(%arg0: i32) -> (i32, i32) {
    %c0_i32 = arith.constant 0 : i32
    %c0_i32_0 = arith.constant 0 : i32
    %c0_i32_1 = arith.constant 0 : i32
    return %c0_i32, %c0_i32_0 : i32, i32
  }
  func.func @transform_2(%arg0: i32) -> (i32, i32) {
    %c0_i32 = arith.constant 0 : i32
    %c0_i32_0 = arith.constant 0 : i32
    %c0_i32_1 = arith.constant 0 : i32
    return %c0_i32, %c0_i32_0 : i32, i32
  }
}

module attributes {stable_mosaic.version = 11 : i64} {
  func.func @_scale_shift_lrelu_kernel(%arg0: i32, %arg1: memref<16x16xf32, #tpu.memory_space<vmem>>, %arg2: memref<1x16xf32, #tpu.memory_space<vmem>>, %arg3: memref<1x16xf32, #tpu.memory_space<vmem>>, %arg4: memref<16x16xf32, #tpu.memory_space<vmem>>) attributes {dimension_semantics = [#tpu.dimension_semantics<parallel>], iteration_bounds = array<i64: 1>, scalar_prefetch = 0 : i64, scratch_operands = 0 : i64, tpu.core_type = #tpu.core_type<tc>, window_params = [{transform_indices = @transform_0, window_bounds = array<i64: 16, 16>}, {pipeline_mode = #tpu.pipeline_mode<synchronous>, transform_indices = @transform_1, window_bounds = array<i64: 1, 16>}, {pipeline_mode = #tpu.pipeline_mode<synchronous>, transform_indices = @transform_2, window_bounds = array<i64: 1, 16>}, {transform_indices = @transform_3, window_bounds = array<i64: 16, 16>}]} {
    %c0 = arith.constant 0 : index
    %c0_0 = arith.constant 0 : index
    %0 = vector.load %arg1[%c0, %c0_0] : memref<16x16xf32, #tpu.memory_space<vmem>>, vector<16x16xf32>
    %c0_1 = arith.constant 0 : index
    %c0_2 = arith.constant 0 : index
    %1 = vector.load %arg2[%c0_1, %c0_2] : memref<1x16xf32, #tpu.memory_space<vmem>>, vector<1x16xf32>
    %2 = vector.broadcast %1 : vector<1x16xf32> to vector<16x16xf32>
    %3 = arith.mulf %0, %2 : vector<16x16xf32>
    %c0_3 = arith.constant 0 : index
    %c0_4 = arith.constant 0 : index
    %4 = vector.load %arg3[%c0_3, %c0_4] : memref<1x16xf32, #tpu.memory_space<vmem>>, vector<1x16xf32>
    %5 = vector.broadcast %4 : vector<1x16xf32> to vector<16x16xf32>
    %6 = arith.addf %3, %5 : vector<16x16xf32>
    %cst = arith.constant 0.000000e+00 : f32
    %7 = vector.broadcast %cst : f32 to vector<16x16xf32>
    %8 = arith.cmpf ogt, %6, %7 : vector<16x16xf32>
    %cst_5 = arith.constant 0.00999999977 : f32
    %9 = vector.broadcast %cst_5 : f32 to vector<16x16xf32>
    %10 = arith.mulf %9, %6 : vector<16x16xf32>
    %11 = arith.select %8, %6, %10 : vector<16x16xi1>, vector<16x16xf32>
    %c0_6 = arith.constant 0 : index
    %c0_7 = arith.constant 0 : index
    %12 = vector.load %arg4[%c0_6, %c0_7] : memref<16x16xf32, #tpu.memory_space<vmem>>, vector<16x16xf32>
    tpu.vector_store %arg4[%c0_6, %c0_7], %11 {strides = array<i32>} : memref<16x16xf32, #tpu.memory_space<vmem>>, vector<16x16xf32>,
    return
  }
  func.func @transform_0(%arg0: i32) -> (i32, i32) {
    %c0_i32 = arith.constant 0 : i32
    %c0_i32_0 = arith.constant 0 : i32
    return %arg0, %c0_i32 : i32, i32
  }
  func.func @transform_1(%arg0: i32) -> (i32, i32) {
    %c0_i32 = arith.constant 0 : i32
    %c0_i32_0 = arith.constant 0 : i32
    %c0_i32_1 = arith.constant 0 : i32
    return %c0_i32, %c0_i32_0 : i32, i32
  }
  func.func @transform_2(%arg0: i32) -> (i32, i32) {
    %c0_i32 = arith.constant 0 : i32
    %c0_i32_0 = arith.constant 0 : i32
    %c0_i32_1 = arith.constant 0 : i32
    return %c0_i32, %c0_i32_0 : i32, i32
  }
  func.func @transform_3(%arg0: i32) -> (i32, i32) {
    %c0_i32 = arith.constant 0 : i32
    %c0_i32_0 = arith.constant 0 : i32
    return %arg0, %c0_i32 : i32, i32
  }
}

module attributes {stable_mosaic.version = 11 : i64} {
  func.func @_bn_stats_kernel(%arg0: i32, %arg1: memref<16x16xf32, #tpu.memory_space<vmem>>, %arg2: memref<1x16xf32, #tpu.memory_space<vmem>>, %arg3: memref<1x16xf32, #tpu.memory_space<vmem>>, %arg4: memref<1x16xf32, #tpu.memory_space<vmem>>, %arg5: memref<1x16xf32, #tpu.memory_space<vmem>>) attributes {dimension_semantics = [#tpu.dimension_semantics<arbitrary>], iteration_bounds = array<i64: 1>, scalar_prefetch = 0 : i64, scratch_operands = 2 : i64, tpu.core_type = #tpu.core_type<tc>, window_params = [{transform_indices = @transform_0, window_bounds = array<i64: 16, 16>}, {pipeline_mode = #tpu.pipeline_mode<synchronous>, transform_indices = @transform_1, window_bounds = array<i64: 1, 16>}, {pipeline_mode = #tpu.pipeline_mode<synchronous>, transform_indices = @transform_2, window_bounds = array<i64: 1, 16>}]} {
    %c0_i32 = arith.constant 0 : i32
    %0 = arith.cmpi eq, %arg0, %c0_i32 : i32
    %1 = arith.extui %0 : i1 to i32
    %c0_i32_0 = arith.constant 0 : i32
    %2 = arith.cmpi ne, %1, %c0_i32_0 : i32
    scf.if %2 {
      %cst_13 = arith.constant 0.000000e+00 : f32
      %18 = vector.broadcast %cst_13 : f32 to vector<1x16xf32>
      %c0_14 = arith.constant 0 : index
      %c0_15 = arith.constant 0 : index
      %19 = vector.load %arg4[%c0_14, %c0_15] : memref<1x16xf32, #tpu.memory_space<vmem>>, vector<1x16xf32>
      tpu.vector_store %arg4[%c0_14, %c0_15], %18 {strides = array<i32>} : memref<1x16xf32, #tpu.memory_space<vmem>>, vector<1x16xf32>,
      %cst_16 = arith.constant 0.000000e+00 : f32
      %20 = vector.broadcast %cst_16 : f32 to vector<1x16xf32>
      %c0_17 = arith.constant 0 : index
      %c0_18 = arith.constant 0 : index
      %21 = vector.load %arg5[%c0_17, %c0_18] : memref<1x16xf32, #tpu.memory_space<vmem>>, vector<1x16xf32>
      tpu.vector_store %arg5[%c0_17, %c0_18], %20 {strides = array<i32>} : memref<1x16xf32, #tpu.memory_space<vmem>>, vector<1x16xf32>,
    } else {
    }
    %c0 = arith.constant 0 : index
    %c0_1 = arith.constant 0 : index
    %3 = vector.load %arg1[%c0, %c0_1] : memref<16x16xf32, #tpu.memory_space<vmem>>, vector<16x16xf32>
    %c0_2 = arith.constant 0 : index
    %c0_3 = arith.constant 0 : index
    %4 = vector.load %arg4[%c0_2, %c0_3] : memref<1x16xf32, #tpu.memory_space<vmem>>, vector<1x16xf32>
    %cst = arith.constant dense<0.000000e+00> : vector<16xf32>
    %5 = vector.multi_reduction <add>, %3, %cst [0] : vector<16x16xf32> to vector<16xf32>
    %6 = vector.shape_cast %5 : vector<16xf32> to vector<1x16xf32>
    %7 = arith.addf %4, %6 : vector<1x16xf32>
    %c0_4 = arith.constant 0 : index
    %c0_5 = arith.constant 0 : index
    %8 = vector.load %arg4[%c0_4, %c0_5] : memref<1x16xf32, #tpu.memory_space<vmem>>, vector<1x16xf32>
    tpu.vector_store %arg4[%c0_4, %c0_5], %7 {strides = array<i32>} : memref<1x16xf32, #tpu.memory_space<vmem>>, vector<1x16xf32>,
    %c0_6 = arith.constant 0 : index
    %c0_7 = arith.constant 0 : index
    %9 = vector.load %arg5[%c0_6, %c0_7] : memref<1x16xf32, #tpu.memory_space<vmem>>, vector<1x16xf32>
    %10 = arith.mulf %3, %3 : vector<16x16xf32>
    %cst_8 = arith.constant dense<0.000000e+00> : vector<16xf32>
    %11 = vector.multi_reduction <add>, %10, %cst_8 [0] : vector<16x16xf32> to vector<16xf32>
    %12 = vector.shape_cast %11 : vector<16xf32> to vector<1x16xf32>
    %13 = arith.addf %9, %12 : vector<1x16xf32>
    %c0_9 = arith.constant 0 : index
    %c0_10 = arith.constant 0 : index
    %14 = vector.load %arg5[%c0_9, %c0_10] : memref<1x16xf32, #tpu.memory_space<vmem>>, vector<1x16xf32>
    tpu.vector_store %arg5[%c0_9, %c0_10], %13 {strides = array<i32>} : memref<1x16xf32, #tpu.memory_space<vmem>>, vector<1x16xf32>,
    %c0_i32_11 = arith.constant 0 : i32
    %15 = arith.cmpi eq, %arg0, %c0_i32_11 : i32
    %16 = arith.extui %15 : i1 to i32
    %c0_i32_12 = arith.constant 0 : i32
    %17 = arith.cmpi ne, %16, %c0_i32_12 : i32
    scf.if %17 {
      %c0_13 = arith.constant 0 : index
      %c0_14 = arith.constant 0 : index
      %18 = vector.load %arg4[%c0_13, %c0_14] : memref<1x16xf32, #tpu.memory_space<vmem>>, vector<1x16xf32>
      %cst_15 = arith.constant 0.0833333358 : f32
      %19 = vector.broadcast %cst_15 : f32 to vector<1x16xf32>
      %20 = arith.mulf %18, %19 : vector<1x16xf32>
      %c0_16 = arith.constant 0 : index
      %c0_17 = arith.constant 0 : index
      %21 = vector.load %arg5[%c0_16, %c0_17] : memref<1x16xf32, #tpu.memory_space<vmem>>, vector<1x16xf32>
      %cst_18 = arith.constant 0.0833333358 : f32
      %22 = vector.broadcast %cst_18 : f32 to vector<1x16xf32>
      %23 = arith.mulf %21, %22 : vector<1x16xf32>
      %24 = arith.mulf %20, %20 : vector<1x16xf32>
      %25 = arith.subf %23, %24 : vector<1x16xf32>
      %cst_19 = arith.constant 0.000000e+00 : f32
      %26 = vector.broadcast %cst_19 : f32 to vector<1x16xf32>
      %27 = arith.maximumf %25, %26 : vector<1x16xf32>
      %c0_20 = arith.constant 0 : index
      %c0_21 = arith.constant 0 : index
      %28 = vector.load %arg2[%c0_20, %c0_21] : memref<1x16xf32, #tpu.memory_space<vmem>>, vector<1x16xf32>
      tpu.vector_store %arg2[%c0_20, %c0_21], %20 {strides = array<i32>} : memref<1x16xf32, #tpu.memory_space<vmem>>, vector<1x16xf32>,
      %cst_22 = arith.constant 9.99999974E-6 : f32
      %29 = vector.broadcast %cst_22 : f32 to vector<1x16xf32>
      %30 = arith.addf %27, %29 : vector<1x16xf32>
      %31 = math.rsqrt %30 : vector<1x16xf32>
      %c0_23 = arith.constant 0 : index
      %c0_24 = arith.constant 0 : index
      %32 = vector.load %arg3[%c0_23, %c0_24] : memref<1x16xf32, #tpu.memory_space<vmem>>, vector<1x16xf32>
      tpu.vector_store %arg3[%c0_23, %c0_24], %31 {strides = array<i32>} : memref<1x16xf32, #tpu.memory_space<vmem>>, vector<1x16xf32>,
    } else {
    }
    return
  }
  func.func @transform_0(%arg0: i32) -> (i32, i32) {
    %c0_i32 = arith.constant 0 : i32
    %c0_i32_0 = arith.constant 0 : i32
    return %arg0, %c0_i32 : i32, i32
  }
  func.func @transform_1(%arg0: i32) -> (i32, i32) {
    %c0_i32 = arith.constant 0 : i32
    %c0_i32_0 = arith.constant 0 : i32
    %c0_i32_1 = arith.constant 0 : i32
    return %c0_i32, %c0_i32_0 : i32, i32
  }
  func.func @transform_2(%arg0: i32) -> (i32, i32) {
    %c0_i32 = arith.constant 0 : i32
    %c0_i32_0 = arith.constant 0 : i32
    %c0_i32_1 = arith.constant 0 : i32
    return %c0_i32, %c0_i32_0 : i32, i32
  }
}

module attributes {stable_mosaic.version = 11 : i64} {
  func.func @_bn_stats_kernel(%arg0: i32, %arg1: memref<16x32xf32, #tpu.memory_space<vmem>>, %arg2: memref<1x32xf32, #tpu.memory_space<vmem>>, %arg3: memref<1x32xf32, #tpu.memory_space<vmem>>, %arg4: memref<1x32xf32, #tpu.memory_space<vmem>>, %arg5: memref<1x32xf32, #tpu.memory_space<vmem>>) attributes {dimension_semantics = [#tpu.dimension_semantics<arbitrary>], iteration_bounds = array<i64: 1>, scalar_prefetch = 0 : i64, scratch_operands = 2 : i64, tpu.core_type = #tpu.core_type<tc>, window_params = [{transform_indices = @transform_0, window_bounds = array<i64: 16, 32>}, {pipeline_mode = #tpu.pipeline_mode<synchronous>, transform_indices = @transform_1, window_bounds = array<i64: 1, 32>}, {pipeline_mode = #tpu.pipeline_mode<synchronous>, transform_indices = @transform_2, window_bounds = array<i64: 1, 32>}]} {
    %c0_i32 = arith.constant 0 : i32
    %0 = arith.cmpi eq, %arg0, %c0_i32 : i32
    %1 = arith.extui %0 : i1 to i32
    %c0_i32_0 = arith.constant 0 : i32
    %2 = arith.cmpi ne, %1, %c0_i32_0 : i32
    scf.if %2 {
      %cst_13 = arith.constant 0.000000e+00 : f32
      %18 = vector.broadcast %cst_13 : f32 to vector<1x32xf32>
      %c0_14 = arith.constant 0 : index
      %c0_15 = arith.constant 0 : index
      %19 = vector.load %arg4[%c0_14, %c0_15] : memref<1x32xf32, #tpu.memory_space<vmem>>, vector<1x32xf32>
      tpu.vector_store %arg4[%c0_14, %c0_15], %18 {strides = array<i32>} : memref<1x32xf32, #tpu.memory_space<vmem>>, vector<1x32xf32>,
      %cst_16 = arith.constant 0.000000e+00 : f32
      %20 = vector.broadcast %cst_16 : f32 to vector<1x32xf32>
      %c0_17 = arith.constant 0 : index
      %c0_18 = arith.constant 0 : index
      %21 = vector.load %arg5[%c0_17, %c0_18] : memref<1x32xf32, #tpu.memory_space<vmem>>, vector<1x32xf32>
      tpu.vector_store %arg5[%c0_17, %c0_18], %20 {strides = array<i32>} : memref<1x32xf32, #tpu.memory_space<vmem>>, vector<1x32xf32>,
    } else {
    }
    %c0 = arith.constant 0 : index
    %c0_1 = arith.constant 0 : index
    %3 = vector.load %arg1[%c0, %c0_1] : memref<16x32xf32, #tpu.memory_space<vmem>>, vector<16x32xf32>
    %c0_2 = arith.constant 0 : index
    %c0_3 = arith.constant 0 : index
    %4 = vector.load %arg4[%c0_2, %c0_3] : memref<1x32xf32, #tpu.memory_space<vmem>>, vector<1x32xf32>
    %cst = arith.constant dense<0.000000e+00> : vector<32xf32>
    %5 = vector.multi_reduction <add>, %3, %cst [0] : vector<16x32xf32> to vector<32xf32>
    %6 = vector.shape_cast %5 : vector<32xf32> to vector<1x32xf32>
    %7 = arith.addf %4, %6 : vector<1x32xf32>
    %c0_4 = arith.constant 0 : index
    %c0_5 = arith.constant 0 : index
    %8 = vector.load %arg4[%c0_4, %c0_5] : memref<1x32xf32, #tpu.memory_space<vmem>>, vector<1x32xf32>
    tpu.vector_store %arg4[%c0_4, %c0_5], %7 {strides = array<i32>} : memref<1x32xf32, #tpu.memory_space<vmem>>, vector<1x32xf32>,
    %c0_6 = arith.constant 0 : index
    %c0_7 = arith.constant 0 : index
    %9 = vector.load %arg5[%c0_6, %c0_7] : memref<1x32xf32, #tpu.memory_space<vmem>>, vector<1x32xf32>
    %10 = arith.mulf %3, %3 : vector<16x32xf32>
    %cst_8 = arith.constant dense<0.000000e+00> : vector<32xf32>
    %11 = vector.multi_reduction <add>, %10, %cst_8 [0] : vector<16x32xf32> to vector<32xf32>
    %12 = vector.shape_cast %11 : vector<32xf32> to vector<1x32xf32>
    %13 = arith.addf %9, %12 : vector<1x32xf32>
    %c0_9 = arith.constant 0 : index
    %c0_10 = arith.constant 0 : index
    %14 = vector.load %arg5[%c0_9, %c0_10] : memref<1x32xf32, #tpu.memory_space<vmem>>, vector<1x32xf32>
    tpu.vector_store %arg5[%c0_9, %c0_10], %13 {strides = array<i32>} : memref<1x32xf32, #tpu.memory_space<vmem>>, vector<1x32xf32>,
    %c0_i32_11 = arith.constant 0 : i32
    %15 = arith.cmpi eq, %arg0, %c0_i32_11 : i32
    %16 = arith.extui %15 : i1 to i32
    %c0_i32_12 = arith.constant 0 : i32
    %17 = arith.cmpi ne, %16, %c0_i32_12 : i32
    scf.if %17 {
      %c0_13 = arith.constant 0 : index
      %c0_14 = arith.constant 0 : index
      %18 = vector.load %arg4[%c0_13, %c0_14] : memref<1x32xf32, #tpu.memory_space<vmem>>, vector<1x32xf32>
      %cst_15 = arith.constant 0.0833333358 : f32
      %19 = vector.broadcast %cst_15 : f32 to vector<1x32xf32>
      %20 = arith.mulf %18, %19 : vector<1x32xf32>
      %c0_16 = arith.constant 0 : index
      %c0_17 = arith.constant 0 : index
      %21 = vector.load %arg5[%c0_16, %c0_17] : memref<1x32xf32, #tpu.memory_space<vmem>>, vector<1x32xf32>
      %cst_18 = arith.constant 0.0833333358 : f32
      %22 = vector.broadcast %cst_18 : f32 to vector<1x32xf32>
      %23 = arith.mulf %21, %22 : vector<1x32xf32>
      %24 = arith.mulf %20, %20 : vector<1x32xf32>
      %25 = arith.subf %23, %24 : vector<1x32xf32>
      %cst_19 = arith.constant 0.000000e+00 : f32
      %26 = vector.broadcast %cst_19 : f32 to vector<1x32xf32>
      %27 = arith.maximumf %25, %26 : vector<1x32xf32>
      %c0_20 = arith.constant 0 : index
      %c0_21 = arith.constant 0 : index
      %28 = vector.load %arg2[%c0_20, %c0_21] : memref<1x32xf32, #tpu.memory_space<vmem>>, vector<1x32xf32>
      tpu.vector_store %arg2[%c0_20, %c0_21], %20 {strides = array<i32>} : memref<1x32xf32, #tpu.memory_space<vmem>>, vector<1x32xf32>,
      %cst_22 = arith.constant 9.99999974E-6 : f32
      %29 = vector.broadcast %cst_22 : f32 to vector<1x32xf32>
      %30 = arith.addf %27, %29 : vector<1x32xf32>
      %31 = math.rsqrt %30 : vector<1x32xf32>
      %c0_23 = arith.constant 0 : index
      %c0_24 = arith.constant 0 : index
      %32 = vector.load %arg3[%c0_23, %c0_24] : memref<1x32xf32, #tpu.memory_space<vmem>>, vector<1x32xf32>
      tpu.vector_store %arg3[%c0_23, %c0_24], %31 {strides = array<i32>} : memref<1x32xf32, #tpu.memory_space<vmem>>, vector<1x32xf32>,
    } else {
    }
    return
  }
  func.func @transform_0(%arg0: i32) -> (i32, i32) {
    %c0_i32 = arith.constant 0 : i32
    %c0_i32_0 = arith.constant 0 : i32
    return %arg0, %c0_i32 : i32, i32
  }
  func.func @transform_1(%arg0: i32) -> (i32, i32) {
    %c0_i32 = arith.constant 0 : i32
    %c0_i32_0 = arith.constant 0 : i32
    %c0_i32_1 = arith.constant 0 : i32
    return %c0_i32, %c0_i32_0 : i32, i32
  }
  func.func @transform_2(%arg0: i32) -> (i32, i32) {
    %c0_i32 = arith.constant 0 : i32
    %c0_i32_0 = arith.constant 0 : i32
    %c0_i32_1 = arith.constant 0 : i32
    return %c0_i32, %c0_i32_0 : i32, i32
  }
}

module attributes {stable_mosaic.version = 11 : i64} {
  func.func @_pna_post_lin_kernel(%arg0: i32, %arg1: memref<16x16xbf16, #tpu.memory_space<vmem>>, %arg2: memref<16x64xbf16, #tpu.memory_space<vmem>>, %arg3: memref<16x1xf32, #tpu.memory_space<vmem>>, %arg4: memref<16x1xf32, #tpu.memory_space<vmem>>, %arg5: memref<16x32xbf16, #tpu.memory_space<vmem>>, %arg6: memref<64x32xbf16, #tpu.memory_space<vmem>>, %arg7: memref<64x32xbf16, #tpu.memory_space<vmem>>, %arg8: memref<64x32xbf16, #tpu.memory_space<vmem>>, %arg9: memref<1x32xf32, #tpu.memory_space<vmem>>, %arg10: memref<32x32xbf16, #tpu.memory_space<vmem>>, %arg11: memref<1x32xf32, #tpu.memory_space<vmem>>, %arg12: memref<16x32xf32, #tpu.memory_space<vmem>>) attributes {dimension_semantics = [#tpu.dimension_semantics<parallel>], iteration_bounds = array<i64: 1>, scalar_prefetch = 0 : i64, scratch_operands = 0 : i64, tpu.core_type = #tpu.core_type<tc>, window_params = [{transform_indices = @transform_0, window_bounds = array<i64: 16, 16>}, {transform_indices = @transform_1, window_bounds = array<i64: 16, 64>}, {transform_indices = @transform_2, window_bounds = array<i64: 16, 1>}, {transform_indices = @transform_3, window_bounds = array<i64: 16, 1>}, {pipeline_mode = #tpu.pipeline_mode<synchronous>, transform_indices = @transform_4, window_bounds = array<i64: 16, 32>}, {pipeline_mode = #tpu.pipeline_mode<synchronous>, transform_indices = @transform_5, window_bounds = array<i64: 64, 32>}, {pipeline_mode = #tpu.pipeline_mode<synchronous>, transform_indices = @transform_6, window_bounds = array<i64: 64, 32>}, {pipeline_mode = #tpu.pipeline_mode<synchronous>, transform_indices = @transform_7, window_bounds = array<i64: 64, 32>}, {pipeline_mode = #tpu.pipeline_mode<synchronous>, transform_indices = @transform_8, window_bounds = array<i64: 1, 32>}, {pipeline_mode = #tpu.pipeline_mode<synchronous>, transform_indices = @transform_9, window_bounds = array<i64: 32, 32>}, {pipeline_mode = #tpu.pipeline_mode<synchronous>, transform_indices = @transform_10, window_bounds = array<i64: 1, 32>}, {transform_indices = @transform_11, window_bounds = array<i64: 16, 32>}]} {
    %c0 = arith.constant 0 : index
    %c0_0 = arith.constant 0 : index
    %0 = vector.load %arg2[%c0, %c0_0] : memref<16x64xbf16, #tpu.memory_space<vmem>>, vector<16x64xbf16>
    %c0_1 = arith.constant 0 : index
    %c0_2 = arith.constant 0 : index
    %1 = vector.load %arg1[%c0_1, %c0_2] : memref<16x16xbf16, #tpu.memory_space<vmem>>, vector<16x16xbf16>
    %c0_3 = arith.constant 0 : index
    %c0_4 = arith.constant 0 : index
    %2 = vector.load %arg5[%c0_3, %c0_4] : memref<16x32xbf16, #tpu.memory_space<vmem>>, vector<16x32xbf16>
    %cst = arith.constant dense<0.000000e+00> : vector<16x32xf32>
    %3 = tpu.matmul %1, %2, %cst {dimension_numbers = #tpu.dot_dimension_numbers<[1], [0], [0], [1], [0, 0, 1, 1], [], []>} : vector<16x16xbf16>, vector<16x32xbf16>, vector<16x32xf32> -> vector<16x32xf32>
    %c0_5 = arith.constant 0 : index
    %c0_6 = arith.constant 0 : index
    %4 = vector.load %arg6[%c0_5, %c0_6] : memref<64x32xbf16, #tpu.memory_space<vmem>>, vector<64x32xbf16>
    %cst_7 = arith.constant dense<0.000000e+00> : vector<16x32xf32>
    %5 = tpu.matmul %0, %4, %cst_7 {dimension_numbers = #tpu.dot_dimension_numbers<[1], [0], [0], [1], [0, 0, 1, 1], [], []>} : vector<16x64xbf16>, vector<64x32xbf16>, vector<16x32xf32> -> vector<16x32xf32>
    %6 = arith.addf %3, %5 : vector<16x32xf32>
    %c0_8 = arith.constant 0 : index
    %c0_9 = arith.constant 0 : index
    %7 = vector.load %arg3[%c0_8, %c0_9] : memref<16x1xf32, #tpu.memory_space<vmem>>, vector<16x1xf32>
    %c0_10 = arith.constant 0 : index
    %c0_11 = arith.constant 0 : index
    %8 = vector.load %arg7[%c0_10, %c0_11] : memref<64x32xbf16, #tpu.memory_space<vmem>>, vector<64x32xbf16>
    %cst_12 = arith.constant dense<0.000000e+00> : vector<16x32xf32>
    %9 = tpu.matmul %0, %8, %cst_12 {dimension_numbers = #tpu.dot_dimension_numbers<[1], [0], [0], [1], [0, 0, 1, 1], [], []>} : vector<16x64xbf16>, vector<64x32xbf16>, vector<16x32xf32> -> vector<16x32xf32>
    %10 = vector.broadcast %7 : vector<16x1xf32> to vector<16x32xf32>
    %11 = arith.mulf %10, %9 : vector<16x32xf32>
    %12 = arith.addf %6, %11 : vector<16x32xf32>
    %c0_13 = arith.constant 0 : index
    %c0_14 = arith.constant 0 : index
    %13 = vector.load %arg4[%c0_13, %c0_14] : memref<16x1xf32, #tpu.memory_space<vmem>>, vector<16x1xf32>
    %c0_15 = arith.constant 0 : index
    %c0_16 = arith.constant 0 : index
    %14 = vector.load %arg8[%c0_15, %c0_16] : memref<64x32xbf16, #tpu.memory_space<vmem>>, vector<64x32xbf16>
    %cst_17 = arith.constant dense<0.000000e+00> : vector<16x32xf32>
    %15 = tpu.matmul %0, %14, %cst_17 {dimension_numbers = #tpu.dot_dimension_numbers<[1], [0], [0], [1], [0, 0, 1, 1], [], []>} : vector<16x64xbf16>, vector<64x32xbf16>, vector<16x32xf32> -> vector<16x32xf32>
    %16 = vector.broadcast %13 : vector<16x1xf32> to vector<16x32xf32>
    %17 = arith.mulf %16, %15 : vector<16x32xf32>
    %18 = arith.addf %12, %17 : vector<16x32xf32>
    %c0_18 = arith.constant 0 : index
    %c0_19 = arith.constant 0 : index
    %19 = vector.load %arg9[%c0_18, %c0_19] : memref<1x32xf32, #tpu.memory_space<vmem>>, vector<1x32xf32>
    %20 = vector.broadcast %19 : vector<1x32xf32> to vector<16x32xf32>
    %21 = arith.addf %18, %20 : vector<16x32xf32>
    %22 = arith.truncf %21 : vector<16x32xf32> to vector<16x32xbf16>
    %c0_20 = arith.constant 0 : index
    %c0_21 = arith.constant 0 : index
    %23 = vector.load %arg10[%c0_20, %c0_21] : memref<32x32xbf16, #tpu.memory_space<vmem>>, vector<32x32xbf16>
    %cst_22 = arith.constant dense<0.000000e+00> : vector<16x32xf32>
    %24 = tpu.matmul %22, %23, %cst_22 {dimension_numbers = #tpu.dot_dimension_numbers<[1], [0], [0], [1], [0, 0, 1, 1], [], []>} : vector<16x32xbf16>, vector<32x32xbf16>, vector<16x32xf32> -> vector<16x32xf32>
    %c0_23 = arith.constant 0 : index
    %c0_24 = arith.constant 0 : index
    %25 = vector.load %arg11[%c0_23, %c0_24] : memref<1x32xf32, #tpu.memory_space<vmem>>, vector<1x32xf32>
    %26 = vector.broadcast %25 : vector<1x32xf32> to vector<16x32xf32>
    %27 = arith.addf %24, %26 : vector<16x32xf32>
    %c0_25 = arith.constant 0 : index
    %c0_26 = arith.constant 0 : index
    %28 = vector.load %arg12[%c0_25, %c0_26] : memref<16x32xf32, #tpu.memory_space<vmem>>, vector<16x32xf32>
    tpu.vector_store %arg12[%c0_25, %c0_26], %27 {strides = array<i32>} : memref<16x32xf32, #tpu.memory_space<vmem>>, vector<16x32xf32>,
    return
  }
  func.func @transform_0(%arg0: i32) -> (i32, i32) {
    %c0_i32 = arith.constant 0 : i32
    %c0_i32_0 = arith.constant 0 : i32
    return %arg0, %c0_i32 : i32, i32
  }
  func.func @transform_1(%arg0: i32) -> (i32, i32) {
    %c0_i32 = arith.constant 0 : i32
    %c0_i32_0 = arith.constant 0 : i32
    return %arg0, %c0_i32 : i32, i32
  }
  func.func @transform_2(%arg0: i32) -> (i32, i32) {
    %c0_i32 = arith.constant 0 : i32
    %c0_i32_0 = arith.constant 0 : i32
    return %arg0, %c0_i32 : i32, i32
  }
  func.func @transform_3(%arg0: i32) -> (i32, i32) {
    %c0_i32 = arith.constant 0 : i32
    %c0_i32_0 = arith.constant 0 : i32
    return %arg0, %c0_i32 : i32, i32
  }
  func.func @transform_4(%arg0: i32) -> (i32, i32) {
    %c0_i32 = arith.constant 0 : i32
    %c0_i32_0 = arith.constant 0 : i32
    %c0_i32_1 = arith.constant 0 : i32
    return %c0_i32, %c0_i32_0 : i32, i32
  }
  func.func @transform_5(%arg0: i32) -> (i32, i32) {
    %c0_i32 = arith.constant 0 : i32
    %c0_i32_0 = arith.constant 0 : i32
    %c0_i32_1 = arith.constant 0 : i32
    return %c0_i32, %c0_i32_0 : i32, i32
  }
  func.func @transform_6(%arg0: i32) -> (i32, i32) {
    %c0_i32 = arith.constant 0 : i32
    %c0_i32_0 = arith.constant 0 : i32
    %c0_i32_1 = arith.constant 0 : i32
    return %c0_i32, %c0_i32_0 : i32, i32
  }
  func.func @transform_7(%arg0: i32) -> (i32, i32) {
    %c0_i32 = arith.constant 0 : i32
    %c0_i32_0 = arith.constant 0 : i32
    %c0_i32_1 = arith.constant 0 : i32
    return %c0_i32, %c0_i32_0 : i32, i32
  }
  func.func @transform_8(%arg0: i32) -> (i32, i32) {
    %c0_i32 = arith.constant 0 : i32
    %c0_i32_0 = arith.constant 0 : i32
    %c0_i32_1 = arith.constant 0 : i32
    return %c0_i32, %c0_i32_0 : i32, i32
  }
  func.func @transform_9(%arg0: i32) -> (i32, i32) {
    %c0_i32 = arith.constant 0 : i32
    %c0_i32_0 = arith.constant 0 : i32
    %c0_i32_1 = arith.constant 0 : i32
    return %c0_i32, %c0_i32_0 : i32, i32
  }
  func.func @transform_10(%arg0: i32) -> (i32, i32) {
    %c0_i32 = arith.constant 0 : i32
    %c0_i32_0 = arith.constant 0 : i32
    %c0_i32_1 = arith.constant 0 : i32
    return %c0_i32, %c0_i32_0 : i32, i32
  }
  func.func @transform_11(%arg0: i32) -> (i32, i32) {
    %c0_i32 = arith.constant 0 : i32
    %c0_i32_0 = arith.constant 0 : i32
    return %arg0, %c0_i32 : i32, i32
  }
}

module attributes {stable_mosaic.version = 11 : i64} {
  func.func @_bn_stats_kernel(%arg0: i32, %arg1: memref<16x32xf32, #tpu.memory_space<vmem>>, %arg2: memref<1x32xf32, #tpu.memory_space<vmem>>, %arg3: memref<1x32xf32, #tpu.memory_space<vmem>>, %arg4: memref<1x32xf32, #tpu.memory_space<vmem>>, %arg5: memref<1x32xf32, #tpu.memory_space<vmem>>) attributes {dimension_semantics = [#tpu.dimension_semantics<arbitrary>], iteration_bounds = array<i64: 1>, scalar_prefetch = 0 : i64, scratch_operands = 2 : i64, tpu.core_type = #tpu.core_type<tc>, window_params = [{transform_indices = @transform_0, window_bounds = array<i64: 16, 32>}, {pipeline_mode = #tpu.pipeline_mode<synchronous>, transform_indices = @transform_1, window_bounds = array<i64: 1, 32>}, {pipeline_mode = #tpu.pipeline_mode<synchronous>, transform_indices = @transform_2, window_bounds = array<i64: 1, 32>}]} {
    %c0_i32 = arith.constant 0 : i32
    %0 = arith.cmpi eq, %arg0, %c0_i32 : i32
    %1 = arith.extui %0 : i1 to i32
    %c0_i32_0 = arith.constant 0 : i32
    %2 = arith.cmpi ne, %1, %c0_i32_0 : i32
    scf.if %2 {
      %cst_13 = arith.constant 0.000000e+00 : f32
      %18 = vector.broadcast %cst_13 : f32 to vector<1x32xf32>
      %c0_14 = arith.constant 0 : index
      %c0_15 = arith.constant 0 : index
      %19 = vector.load %arg4[%c0_14, %c0_15] : memref<1x32xf32, #tpu.memory_space<vmem>>, vector<1x32xf32>
      tpu.vector_store %arg4[%c0_14, %c0_15], %18 {strides = array<i32>} : memref<1x32xf32, #tpu.memory_space<vmem>>, vector<1x32xf32>,
      %cst_16 = arith.constant 0.000000e+00 : f32
      %20 = vector.broadcast %cst_16 : f32 to vector<1x32xf32>
      %c0_17 = arith.constant 0 : index
      %c0_18 = arith.constant 0 : index
      %21 = vector.load %arg5[%c0_17, %c0_18] : memref<1x32xf32, #tpu.memory_space<vmem>>, vector<1x32xf32>
      tpu.vector_store %arg5[%c0_17, %c0_18], %20 {strides = array<i32>} : memref<1x32xf32, #tpu.memory_space<vmem>>, vector<1x32xf32>,
    } else {
    }
    %c0 = arith.constant 0 : index
    %c0_1 = arith.constant 0 : index
    %3 = vector.load %arg1[%c0, %c0_1] : memref<16x32xf32, #tpu.memory_space<vmem>>, vector<16x32xf32>
    %c0_2 = arith.constant 0 : index
    %c0_3 = arith.constant 0 : index
    %4 = vector.load %arg4[%c0_2, %c0_3] : memref<1x32xf32, #tpu.memory_space<vmem>>, vector<1x32xf32>
    %cst = arith.constant dense<0.000000e+00> : vector<32xf32>
    %5 = vector.multi_reduction <add>, %3, %cst [0] : vector<16x32xf32> to vector<32xf32>
    %6 = vector.shape_cast %5 : vector<32xf32> to vector<1x32xf32>
    %7 = arith.addf %4, %6 : vector<1x32xf32>
    %c0_4 = arith.constant 0 : index
    %c0_5 = arith.constant 0 : index
    %8 = vector.load %arg4[%c0_4, %c0_5] : memref<1x32xf32, #tpu.memory_space<vmem>>, vector<1x32xf32>
    tpu.vector_store %arg4[%c0_4, %c0_5], %7 {strides = array<i32>} : memref<1x32xf32, #tpu.memory_space<vmem>>, vector<1x32xf32>,
    %c0_6 = arith.constant 0 : index
    %c0_7 = arith.constant 0 : index
    %9 = vector.load %arg5[%c0_6, %c0_7] : memref<1x32xf32, #tpu.memory_space<vmem>>, vector<1x32xf32>
    %10 = arith.mulf %3, %3 : vector<16x32xf32>
    %cst_8 = arith.constant dense<0.000000e+00> : vector<32xf32>
    %11 = vector.multi_reduction <add>, %10, %cst_8 [0] : vector<16x32xf32> to vector<32xf32>
    %12 = vector.shape_cast %11 : vector<32xf32> to vector<1x32xf32>
    %13 = arith.addf %9, %12 : vector<1x32xf32>
    %c0_9 = arith.constant 0 : index
    %c0_10 = arith.constant 0 : index
    %14 = vector.load %arg5[%c0_9, %c0_10] : memref<1x32xf32, #tpu.memory_space<vmem>>, vector<1x32xf32>
    tpu.vector_store %arg5[%c0_9, %c0_10], %13 {strides = array<i32>} : memref<1x32xf32, #tpu.memory_space<vmem>>, vector<1x32xf32>,
    %c0_i32_11 = arith.constant 0 : i32
    %15 = arith.cmpi eq, %arg0, %c0_i32_11 : i32
    %16 = arith.extui %15 : i1 to i32
    %c0_i32_12 = arith.constant 0 : i32
    %17 = arith.cmpi ne, %16, %c0_i32_12 : i32
    scf.if %17 {
      %c0_13 = arith.constant 0 : index
      %c0_14 = arith.constant 0 : index
      %18 = vector.load %arg4[%c0_13, %c0_14] : memref<1x32xf32, #tpu.memory_space<vmem>>, vector<1x32xf32>
      %cst_15 = arith.constant 1.000000e-01 : f32
      %19 = vector.broadcast %cst_15 : f32 to vector<1x32xf32>
      %20 = arith.mulf %18, %19 : vector<1x32xf32>
      %c0_16 = arith.constant 0 : index
      %c0_17 = arith.constant 0 : index
      %21 = vector.load %arg5[%c0_16, %c0_17] : memref<1x32xf32, #tpu.memory_space<vmem>>, vector<1x32xf32>
      %cst_18 = arith.constant 1.000000e-01 : f32
      %22 = vector.broadcast %cst_18 : f32 to vector<1x32xf32>
      %23 = arith.mulf %21, %22 : vector<1x32xf32>
      %24 = arith.mulf %20, %20 : vector<1x32xf32>
      %25 = arith.subf %23, %24 : vector<1x32xf32>
      %cst_19 = arith.constant 0.000000e+00 : f32
      %26 = vector.broadcast %cst_19 : f32 to vector<1x32xf32>
      %27 = arith.maximumf %25, %26 : vector<1x32xf32>
      %c0_20 = arith.constant 0 : index
      %c0_21 = arith.constant 0 : index
      %28 = vector.load %arg2[%c0_20, %c0_21] : memref<1x32xf32, #tpu.memory_space<vmem>>, vector<1x32xf32>
      tpu.vector_store %arg2[%c0_20, %c0_21], %20 {strides = array<i32>} : memref<1x32xf32, #tpu.memory_space<vmem>>, vector<1x32xf32>,
      %cst_22 = arith.constant 9.99999974E-6 : f32
      %29 = vector.broadcast %cst_22 : f32 to vector<1x32xf32>
      %30 = arith.addf %27, %29 : vector<1x32xf32>
      %31 = math.rsqrt %30 : vector<1x32xf32>
      %c0_23 = arith.constant 0 : index
      %c0_24 = arith.constant 0 : index
      %32 = vector.load %arg3[%c0_23, %c0_24] : memref<1x32xf32, #tpu.memory_space<vmem>>, vector<1x32xf32>
      tpu.vector_store %arg3[%c0_23, %c0_24], %31 {strides = array<i32>} : memref<1x32xf32, #tpu.memory_space<vmem>>, vector<1x32xf32>,
    } else {
    }
    return
  }
  func.func @transform_0(%arg0: i32) -> (i32, i32) {
    %c0_i32 = arith.constant 0 : i32
    %c0_i32_0 = arith.constant 0 : i32
    return %arg0, %c0_i32 : i32, i32
  }
  func.func @transform_1(%arg0: i32) -> (i32, i32) {
    %c0_i32 = arith.constant 0 : i32
    %c0_i32_0 = arith.constant 0 : i32
    %c0_i32_1 = arith.constant 0 : i32
    return %c0_i32, %c0_i32_0 : i32, i32
  }
  func.func @transform_2(%arg0: i32) -> (i32, i32) {
    %c0_i32 = arith.constant 0 : i32
    %c0_i32_0 = arith.constant 0 : i32
    %c0_i32_1 = arith.constant 0 : i32
    return %c0_i32, %c0_i32_0 : i32, i32
  }
}

module attributes {stable_mosaic.version = 11 : i64} {
  func.func @_scale_shift_lrelu_kernel(%arg0: i32, %arg1: memref<16x32xf32, #tpu.memory_space<vmem>>, %arg2: memref<1x32xf32, #tpu.memory_space<vmem>>, %arg3: memref<1x32xf32, #tpu.memory_space<vmem>>, %arg4: memref<16x32xf32, #tpu.memory_space<vmem>>) attributes {dimension_semantics = [#tpu.dimension_semantics<parallel>], iteration_bounds = array<i64: 1>, scalar_prefetch = 0 : i64, scratch_operands = 0 : i64, tpu.core_type = #tpu.core_type<tc>, window_params = [{transform_indices = @transform_0, window_bounds = array<i64: 16, 32>}, {pipeline_mode = #tpu.pipeline_mode<synchronous>, transform_indices = @transform_1, window_bounds = array<i64: 1, 32>}, {pipeline_mode = #tpu.pipeline_mode<synchronous>, transform_indices = @transform_2, window_bounds = array<i64: 1, 32>}, {transform_indices = @transform_3, window_bounds = array<i64: 16, 32>}]} {
    %c0 = arith.constant 0 : index
    %c0_0 = arith.constant 0 : index
    %0 = vector.load %arg1[%c0, %c0_0] : memref<16x32xf32, #tpu.memory_space<vmem>>, vector<16x32xf32>
    %c0_1 = arith.constant 0 : index
    %c0_2 = arith.constant 0 : index
    %1 = vector.load %arg2[%c0_1, %c0_2] : memref<1x32xf32, #tpu.memory_space<vmem>>, vector<1x32xf32>
    %2 = vector.broadcast %1 : vector<1x32xf32> to vector<16x32xf32>
    %3 = arith.mulf %0, %2 : vector<16x32xf32>
    %c0_3 = arith.constant 0 : index
    %c0_4 = arith.constant 0 : index
    %4 = vector.load %arg3[%c0_3, %c0_4] : memref<1x32xf32, #tpu.memory_space<vmem>>, vector<1x32xf32>
    %5 = vector.broadcast %4 : vector<1x32xf32> to vector<16x32xf32>
    %6 = arith.addf %3, %5 : vector<16x32xf32>
    %cst = arith.constant 0.000000e+00 : f32
    %7 = vector.broadcast %cst : f32 to vector<16x32xf32>
    %8 = arith.cmpf ogt, %6, %7 : vector<16x32xf32>
    %cst_5 = arith.constant 0.00999999977 : f32
    %9 = vector.broadcast %cst_5 : f32 to vector<16x32xf32>
    %10 = arith.mulf %9, %6 : vector<16x32xf32>
    %11 = arith.select %8, %6, %10 : vector<16x32xi1>, vector<16x32xf32>
    %c0_6 = arith.constant 0 : index
    %c0_7 = arith.constant 0 : index
    %12 = vector.load %arg4[%c0_6, %c0_7] : memref<16x32xf32, #tpu.memory_space<vmem>>, vector<16x32xf32>
    tpu.vector_store %arg4[%c0_6, %c0_7], %11 {strides = array<i32>} : memref<16x32xf32, #tpu.memory_space<vmem>>, vector<16x32xf32>,
    return
  }
  func.func @transform_0(%arg0: i32) -> (i32, i32) {
    %c0_i32 = arith.constant 0 : i32
    %c0_i32_0 = arith.constant 0 : i32
    return %arg0, %c0_i32 : i32, i32
  }
  func.func @transform_1(%arg0: i32) -> (i32, i32) {
    %c0_i32 = arith.constant 0 : i32
    %c0_i32_0 = arith.constant 0 : i32
    %c0_i32_1 = arith.constant 0 : i32
    return %c0_i32, %c0_i32_0 : i32, i32
  }
  func.func @transform_2(%arg0: i32) -> (i32, i32) {
    %c0_i32 = arith.constant 0 : i32
    %c0_i32_0 = arith.constant 0 : i32
    %c0_i32_1 = arith.constant 0 : i32
    return %c0_i32, %c0_i32_0 : i32, i32
  }
  func.func @transform_3(%arg0: i32) -> (i32, i32) {
    %c0_i32 = arith.constant 0 : i32
    %c0_i32_0 = arith.constant 0 : i32
    return %arg0, %c0_i32 : i32, i32
  }
}

module attributes {stable_mosaic.version = 11 : i64} {
  func.func @_linear_kernel(%arg0: i32, %arg1: memref<32x32xbf16, #tpu.memory_space<vmem>>, %arg2: memref<32x64xbf16, #tpu.memory_space<vmem>>, %arg3: memref<1x64xf32, #tpu.memory_space<vmem>>, %arg4: memref<32x64xf32, #tpu.memory_space<vmem>>) attributes {dimension_semantics = [#tpu.dimension_semantics<parallel>], iteration_bounds = array<i64: 1>, scalar_prefetch = 0 : i64, scratch_operands = 0 : i64, tpu.core_type = #tpu.core_type<tc>, window_params = [{transform_indices = @transform_0, window_bounds = array<i64: 32, 32>}, {pipeline_mode = #tpu.pipeline_mode<synchronous>, transform_indices = @transform_1, window_bounds = array<i64: 32, 64>}, {pipeline_mode = #tpu.pipeline_mode<synchronous>, transform_indices = @transform_2, window_bounds = array<i64: 1, 64>}, {transform_indices = @transform_3, window_bounds = array<i64: 32, 64>}]} {
    %c0 = arith.constant 0 : index
    %c0_0 = arith.constant 0 : index
    %0 = vector.load %arg1[%c0, %c0_0] : memref<32x32xbf16, #tpu.memory_space<vmem>>, vector<32x32xbf16>
    %c0_1 = arith.constant 0 : index
    %c0_2 = arith.constant 0 : index
    %1 = vector.load %arg2[%c0_1, %c0_2] : memref<32x64xbf16, #tpu.memory_space<vmem>>, vector<32x64xbf16>
    %cst = arith.constant dense<0.000000e+00> : vector<32x64xf32>
    %2 = tpu.matmul %0, %1, %cst {dimension_numbers = #tpu.dot_dimension_numbers<[1], [0], [0], [1], [0, 0, 1, 1], [], []>} : vector<32x32xbf16>, vector<32x64xbf16>, vector<32x64xf32> -> vector<32x64xf32>
    %c0_3 = arith.constant 0 : index
    %c0_4 = arith.constant 0 : index
    %3 = vector.load %arg3[%c0_3, %c0_4] : memref<1x64xf32, #tpu.memory_space<vmem>>, vector<1x64xf32>
    %4 = vector.broadcast %3 : vector<1x64xf32> to vector<32x64xf32>
    %5 = arith.addf %2, %4 : vector<32x64xf32>
    %c0_5 = arith.constant 0 : index
    %c0_6 = arith.constant 0 : index
    %6 = vector.load %arg4[%c0_5, %c0_6] : memref<32x64xf32, #tpu.memory_space<vmem>>, vector<32x64xf32>
    tpu.vector_store %arg4[%c0_5, %c0_6], %5 {strides = array<i32>} : memref<32x64xf32, #tpu.memory_space<vmem>>, vector<32x64xf32>,
    return
  }
  func.func @transform_0(%arg0: i32) -> (i32, i32) {
    %c0_i32 = arith.constant 0 : i32
    %c0_i32_0 = arith.constant 0 : i32
    return %arg0, %c0_i32 : i32, i32
  }
  func.func @transform_1(%arg0: i32) -> (i32, i32) {
    %c0_i32 = arith.constant 0 : i32
    %c0_i32_0 = arith.constant 0 : i32
    %c0_i32_1 = arith.constant 0 : i32
    return %c0_i32, %c0_i32_0 : i32, i32
  }
  func.func @transform_2(%arg0: i32) -> (i32, i32) {
    %c0_i32 = arith.constant 0 : i32
    %c0_i32_0 = arith.constant 0 : i32
    %c0_i32_1 = arith.constant 0 : i32
    return %c0_i32, %c0_i32_0 : i32, i32
  }
  func.func @transform_3(%arg0: i32) -> (i32, i32) {
    %c0_i32 = arith.constant 0 : i32
    %c0_i32_0 = arith.constant 0 : i32
    return %arg0, %c0_i32 : i32, i32
  }
}

module attributes {stable_mosaic.version = 11 : i64} {
  func.func @_linear2_kernel(%arg0: i32, %arg1: memref<16x64xbf16, #tpu.memory_space<vmem>>, %arg2: memref<64x32xbf16, #tpu.memory_space<vmem>>, %arg3: memref<1x32xf32, #tpu.memory_space<vmem>>, %arg4: memref<32x1xbf16, #tpu.memory_space<vmem>>, %arg5: memref<1x1xf32, #tpu.memory_space<vmem>>, %arg6: memref<16x1xf32, #tpu.memory_space<vmem>>) attributes {dimension_semantics = [#tpu.dimension_semantics<parallel>], iteration_bounds = array<i64: 1>, scalar_prefetch = 0 : i64, scratch_operands = 0 : i64, tpu.core_type = #tpu.core_type<tc>, window_params = [{transform_indices = @transform_0, window_bounds = array<i64: 16, 64>}, {pipeline_mode = #tpu.pipeline_mode<synchronous>, transform_indices = @transform_1, window_bounds = array<i64: 64, 32>}, {pipeline_mode = #tpu.pipeline_mode<synchronous>, transform_indices = @transform_2, window_bounds = array<i64: 1, 32>}, {pipeline_mode = #tpu.pipeline_mode<synchronous>, transform_indices = @transform_3, window_bounds = array<i64: 32, 1>}, {pipeline_mode = #tpu.pipeline_mode<synchronous>, transform_indices = @transform_4, window_bounds = array<i64: 1, 1>}, {transform_indices = @transform_5, window_bounds = array<i64: 16, 1>}]} {
    %c0 = arith.constant 0 : index
    %c0_0 = arith.constant 0 : index
    %0 = vector.load %arg1[%c0, %c0_0] : memref<16x64xbf16, #tpu.memory_space<vmem>>, vector<16x64xbf16>
    %c0_1 = arith.constant 0 : index
    %c0_2 = arith.constant 0 : index
    %1 = vector.load %arg2[%c0_1, %c0_2] : memref<64x32xbf16, #tpu.memory_space<vmem>>, vector<64x32xbf16>
    %cst = arith.constant dense<0.000000e+00> : vector<16x32xf32>
    %2 = tpu.matmul %0, %1, %cst {dimension_numbers = #tpu.dot_dimension_numbers<[1], [0], [0], [1], [0, 0, 1, 1], [], []>} : vector<16x64xbf16>, vector<64x32xbf16>, vector<16x32xf32> -> vector<16x32xf32>
    %c0_3 = arith.constant 0 : index
    %c0_4 = arith.constant 0 : index
    %3 = vector.load %arg3[%c0_3, %c0_4] : memref<1x32xf32, #tpu.memory_space<vmem>>, vector<1x32xf32>
    %4 = vector.broadcast %3 : vector<1x32xf32> to vector<16x32xf32>
    %5 = arith.addf %2, %4 : vector<16x32xf32>
    %cst_5 = arith.constant 0.000000e+00 : f32
    %6 = vector.broadcast %cst_5 : f32 to vector<16x32xf32>
    %7 = arith.maximumf %5, %6 : vector<16x32xf32>
    %8 = arith.truncf %7 : vector<16x32xf32> to vector<16x32xbf16>
    %c0_6 = arith.constant 0 : index
    %c0_7 = arith.constant 0 : index
    %9 = vector.load %arg4[%c0_6, %c0_7] : memref<32x1xbf16, #tpu.memory_space<vmem>>, vector<32x1xbf16>
    %cst_8 = arith.constant dense<0.000000e+00> : vector<16x1xf32>
    %10 = tpu.matmul %8, %9, %cst_8 {dimension_numbers = #tpu.dot_dimension_numbers<[1], [0], [0], [1], [0, 0, 1, 1], [], []>} : vector<16x32xbf16>, vector<32x1xbf16>, vector<16x1xf32> -> vector<16x1xf32>
    %c0_9 = arith.constant 0 : index
    %c0_10 = arith.constant 0 : index
    %11 = vector.load %arg5[%c0_9, %c0_10] : memref<1x1xf32, #tpu.memory_space<vmem>>, vector<1x1xf32>
    %12 = vector.broadcast %11 : vector<1x1xf32> to vector<16x1xf32>
    %13 = arith.addf %10, %12 : vector<16x1xf32>
    %14 = arith.negf %13 : vector<16x1xf32>
    %15 = math.exp %14 : vector<16x1xf32>
    %cst_11 = arith.constant 1.000000e+00 : f32
    %16 = vector.broadcast %cst_11 : f32 to vector<16x1xf32>
    %17 = arith.addf %16, %15 : vector<16x1xf32>
    %18 = arith.divf %16, %17 : vector<16x1xf32>
    %c0_12 = arith.constant 0 : index
    %c0_13 = arith.constant 0 : index
    %19 = vector.load %arg6[%c0_12, %c0_13] : memref<16x1xf32, #tpu.memory_space<vmem>>, vector<16x1xf32>
    tpu.vector_store %arg6[%c0_12, %c0_13], %18 {strides = array<i32>} : memref<16x1xf32, #tpu.memory_space<vmem>>, vector<16x1xf32>,
    return
  }
  func.func @transform_0(%arg0: i32) -> (i32, i32) {
    %c0_i32 = arith.constant 0 : i32
    %c0_i32_0 = arith.constant 0 : i32
    return %arg0, %c0_i32 : i32, i32
  }
  func.func @transform_1(%arg0: i32) -> (i32, i32) {
    %c0_i32 = arith.constant 0 : i32
    %c0_i32_0 = arith.constant 0 : i32
    %c0_i32_1 = arith.constant 0 : i32
    return %c0_i32, %c0_i32_0 : i32, i32
  }
  func.func @transform_2(%arg0: i32) -> (i32, i32) {
    %c0_i32 = arith.constant 0 : i32
    %c0_i32_0 = arith.constant 0 : i32
    %c0_i32_1 = arith.constant 0 : i32
    return %c0_i32, %c0_i32_0 : i32, i32
  }
  func.func @transform_3(%arg0: i32) -> (i32, i32) {
    %c0_i32 = arith.constant 0 : i32
    %c0_i32_0 = arith.constant 0 : i32
    %c0_i32_1 = arith.constant 0 : i32
    return %c0_i32, %c0_i32_0 : i32, i32
  }
  func.func @transform_4(%arg0: i32) -> (i32, i32) {
    %c0_i32 = arith.constant 0 : i32
    %c0_i32_0 = arith.constant 0 : i32
    %c0_i32_1 = arith.constant 0 : i32
    return %c0_i32, %c0_i32_0 : i32, i32
  }
  func.func @transform_5(%arg0: i32) -> (i32, i32) {
    %c0_i32 = arith.constant 0 : i32
    %c0_i32_0 = arith.constant 0 : i32
    return %arg0, %c0_i32 : i32, i32
  }
}

</mosaic_0001>

<llo_original>
// kernel: gcn_forward.34
$region0: #{gcn_forward.34}
  #allocation0 [shape = 'u32[]', space=smem, size = 0x4, offset = 0x4, fixed_abs, tag = 'smem constant byte address 0x4 - core index']
  #allocation1 [shape = 'u32[144,128]{1,0:T(1,128)}', space=vmem, size = 0x12000, scoped, tag = 'internal scratch']
  %s0 = inlined_call_operand.vmem [shape: bf16[32,48], index: 0, kind: input, shape index: {}]
  %s1 = inlined_call_operand.vmem [shape: bf16[48,16], index: 1, kind: input, shape index: {}]
  %s2 = inlined_call_operand.vmem [shape: f32[1,16], index: 2, kind: input, shape index: {}]
  %s3 = inlined_call_operand.vmem [shape: f32[32,16], index: 3, kind: output, shape index: {}]
  %s4 = sld [smem:[#allocation0]]
  $region22: #{gcn_forward.34} parent=0
    _
  %s6 = ssub.s32 1, %s4
  %s7 = scalar_select 0, %s6, %s4
  // Predicated region
  $region2: #{gcn_forward.34} parent=0 // pred_check
    _
  $region3: #{gcn_forward.34} parent=0 // pred_check_branch
    %9 = sbr.rel (0) target = $region5
  $region4: #{gcn_forward.34} parent=0 // pred_region
    _
  $region5: #{gcn_forward.34} parent=0 // pred_fallthru
    _
  // Predicated region
  $region6: #{gcn_forward.34} parent=0 // pred_check
    _
  $region7: #{gcn_forward.34} parent=0 // pred_check_branch
    %11 = sbr.rel (0) target = $region9
  $region8: #{gcn_forward.34} parent=0 // pred_region
    _
  $region9: #{gcn_forward.34} parent=0 // pred_fallthru
    _
  // Predicated region
  $region10: #{gcn_forward.34} parent=0 // pred_check
    _
  $region11: #{gcn_forward.34} parent=0 // pred_check_branch
    %13 = sbr.rel (0) target = $region13
  $region12: #{gcn_forward.34} parent=0 // pred_region
    _
  $region13: #{gcn_forward.34} parent=0 // pred_fallthru
    _
  %v15 = vld [vmem:[%s0] sm:$0xf]
  %v16 = vld [vmem:[%s0 + $0x4] sm:$0xf]
  %v17 = vld [vmem:[%s0 + $0x8] sm:$0xf]
  %v18 = vld [vmem:[%s0 + $0xc] sm:$0xf]
  %v19 = vld [vmem:[%s1] sm:$0xf]
  %v20 = vld [vmem:[%s1 + $0x4] sm:$0xf]
  %v21 = vld [vmem:[%s1 + $0x8] sm:$0xf]
  %v22 = vld [vmem:[%s1 + $0xc] sm:$0xf]
  %v23 = vld [vmem:[%s1 + $0x10] sm:$0xf]
  %v24 = vld [vmem:[%s1 + $0x14] sm:$0xf]
  %v25 = vld [vmem:[%s2] sm:$0x1]
  %v27 = vlaneseq
  %v28 = vshrl.u32 %v27, 7
  %v29 = vsub.s32 0, %v28
  %v30 = vrot.slane %v25, %v29
  %v36 = vunpack.c.l.b16 %v15
  %v37 = vunpack.c.l.b16 %v16
  %v38 = vunpack.c.l.b16 %v17
  %v39 = vunpack.c.l.b16 %v18
  %v40 = vpack.c.b16 %v37, %v36
  %v41 = vpack.c.b16 %v39, %v38
  %v48 = vunpack.c.l.b16 %v19
  %v49 = vunpack.c.l.b16 %v20
  %v50 = vunpack.c.l.b16 %v21
  %v51 = vunpack.c.l.b16 %v22
  %v52 = vunpack.c.l.b16 %v23
  %v53 = vunpack.c.l.b16 %v24
  %v54 = vpack.c.b16 %v49, %v48
  %v55 = vpack.c.b16 %v51, %v50
  %v56 = vpack.c.b16 %v53, %v52
  %vm60 = vcmask 392192
  %v62 = vsel %vm60, %v40, 0
  %v65 = vsel %vm60, %v41, 0
  %67 = vmatprep.subr.bf16.mxu0 0
  %68 = vmatpush1.bf16.msra.mxu0 %v54
  %69 = vmatprep.subr.bf16.mxu0 0
  %70 = vmatpush1.bf16.msra.mxu0 %v55
  %71 = vmatprep.subr.bf16.mxu0 0
  %72 = vmatpush1.bf16.msra.mxu0 %v56
  %73 = vmatprep.subr.bf16.mxu0 0
  %74 = vmatpush1.bf16.msra.mxu0 0
  %75 = vmatprep.subr.bf16.mxu0 0
  %76 = vmatpush1.bf16.msra.mxu0 0
  %77 = vmatprep.subr.bf16.mxu0 0
  %78 = vmatpush1.bf16.msra.mxu0 0
  %79 = vmatprep.subr.bf16.mxu0 0
  %80 = vmatpush1.bf16.msra.mxu0 0
  %81 = vmatprep.subr.bf16.mxu0 0
  %82 = vmatpush1.bf16.msra.mxu0 0
  %83 = vmatprep.subr.bf16.mxu0 0
  %84 = vmatpush1.bf16.msra.mxu0 0
  %85 = vmatprep.subr.bf16.mxu0 0
  %86 = vmatpush1.bf16.msra.mxu0 0
  %87 = vmatprep.subr.bf16.mxu0 0
  %88 = vmatpush1.bf16.msra.mxu0 0
  %89 = vmatprep.subr.bf16.mxu0 0
  %90 = vmatpush1.bf16.msra.mxu0 0
  %91 = vmatprep.subr.bf16.mxu0 0
  %92 = vmatpush1.bf16.msra.mxu0 0
  %93 = vmatprep.subr.bf16.mxu0 0
  %94 = vmatpush1.bf16.msra.mxu0 0
  %95 = vmatprep.subr.bf16.mxu0 0
  %96 = vmatpush1.bf16.msra.mxu0 0
  %97 = vmatprep.subr.bf16.mxu0 0
  %98 = vmatpush1.bf16.msra.mxu0 0
  %99 = vmatprep.mubr.bf16.mxu0 0
  %100 = vmatmul.mubr.bf16.gmra.mrb[0].mxu0 %v62
  %v101 = vpop.f32.mrb[0].mxu0
  %v102 = vadd.f32 %v30, %v101
  %v103 = vpop.f32.mrb[0].mxu0
  %v104 = vpop.f32.mrb[0].mxu0
  %v105 = vadd.f32 %v30, %v104
  %v106 = vpop.f32.mrb[0].mxu0
  %107 = vmatprep.mubr.bf16.mxu0 0
  %108 = vmatmul.mubr.bf16.gmra.mrb[0].mxu0 %v65
  %v109 = vpop.f32.mrb[0].mxu0
  %v110 = vadd.f32 %v30, %v109
  %v111 = vpop.f32.mrb[0].mxu0
  %v112 = vpop.f32.mrb[0].mxu0
  %v113 = vadd.f32 %v30, %v112
  %v114 = vpop.f32.mrb[0].mxu0
  %115 = vdwg.mxu0
  %vm116 = vcmask 130048
  %117 = vst.msk [vmem:[%s3] sm:$0xff] %vm116, %v102
  %118 = vst.msk [vmem:[%s3 + $0x8] sm:$0xff] %vm116, %v105
  %119 = vst.msk [vmem:[%s3 + $0x10] sm:$0xff] %vm116, %v110
  %120 = vst.msk [vmem:[%s3 + $0x18] sm:$0xff] %vm116, %v113
  // Predicated region
  $region14: #{gcn_forward.34} parent=0 // pred_check
    _
  $region15: #{gcn_forward.34} parent=0 // pred_check_branch
    %122 = sbr.rel (0) target = $region17
  $region16: #{gcn_forward.34} parent=0 // pred_region
    _
  $region17: #{gcn_forward.34} parent=0 // pred_fallthru
    _
  // Predicated region
  $region18: #{gcn_forward.34} parent=0 // pred_check
    _
  $region19: #{gcn_forward.34} parent=0 // pred_check_branch
    %124 = sbr.rel (0) target = $region21
  $region20: #{gcn_forward.34} parent=0 // pred_region
    _
  $region21: #{gcn_forward.34} parent=0 // pred_fallthru
    _

// kernel: gcn_forward.28
$region0: #{gcn_forward.28}
  #allocation0 [shape = 'u32[]', space=smem, size = 0x4, offset = 0x4, fixed_abs, tag = 'smem constant byte address 0x4 - core index']
  #allocation1 [shape = 'u32[144,128]{1,0:T(1,128)}', space=vmem, size = 0x12000, scoped, tag = 'internal scratch']
  #allocation2 [shape = 'f32[1,16]{1,0:T(1,128)}', space=vmem, size = 0x200, scoped, tag = 'scratch operand']
  #allocation3 [shape = 'f32[1,16]{1,0:T(1,128)}', space=vmem, size = 0x200, scoped, tag = 'scratch operand']
  %s0 = inlined_call_operand.vmem [shape: f32[16,16], index: 0, kind: input, shape index: {}]
  %s1 = inlined_call_operand.vmem [shape: f32[1,16], index: 1, kind: output, shape index: {0}]
  %s2 = inlined_call_operand.vmem [shape: f32[1,16], index: 2, kind: output, shape index: {1}]
  %3 = xla_tuple %s1, %s2
  %s4 = sld [smem:[#allocation0]]
  $region30: #{gcn_forward.28} parent=0
    _
  %s6 = ssub.s32 1, %s4
  %s7 = scalar_select 0, %s6, %s4
  // Predicated region
  $region2: #{gcn_forward.28} parent=0 // pred_check
    _
  $region3: #{gcn_forward.28} parent=0 // pred_check_branch
    %9 = sbr.rel (0) target = $region5
  $region4: #{gcn_forward.28} parent=0 // pred_region
    _
  $region5: #{gcn_forward.28} parent=0 // pred_fallthru
    _
  %p10 = scmp.eq.s32.totalorder 0, 0
  // Predicated region
  $region6: #{gcn_forward.28} parent=0 // pred_check
    %p11 = pneg %p10
  $region7: #{gcn_forward.28} parent=0 // pred_check_branch
    %13 = sbr.rel (%p11) target = $region9
  $region8: #{gcn_forward.28} parent=0 // pred_region
    %vm14 = vcmask 122880
    %15 = vst.msk [vmem:[#allocation2] sm:$0x1] %vm14, 0.0
    %16 = vst.msk [vmem:[#allocation3] sm:$0x1] %vm14, 0.0
  $region9: #{gcn_forward.28} parent=0 // pred_fallthru
    _
  %v17 = vld [vmem:[%s0] sm:$0xff]
  %v18 = vld [vmem:[%s0 + $0x8] sm:$0xff]
  %v19 = vld [vmem:[#allocation2] sm:$0x1]
  %vm20 = vcmask 130048
  %v21 = vsel %vm20, %v17, 0.0
  %v22 = vsel %vm20, %v18, 0.0
  %v23 = vadd.f32 %v21, %v22
  %v24 = vrot.slane %v23, 4
  %v25 = vadd.f32 %v23, %v24
  %v26 = vrot.slane %v25, 2
  %v27 = vadd.f32 %v25, %v26
  %v28 = vrot.slane %v27, 1
  %v29 = vadd.f32 %v27, %v28
  %v30 = vadd.f32 %v19, %v29
  %vm31 = vcmask 122880
  %32 = vst.msk [vmem:[#allocation2] sm:$0x1] %vm31, %v30
  %v33 = vld [vmem:[#allocation3] sm:$0x1]
  %v34 = vmul.f32 %v17, %v17
  %v35 = vmul.f32 %v18, %v18
  %v36 = vsel %vm20, %v34, 0.0
  %v37 = vsel %vm20, %v35, 0.0
  %v38 = vadd.f32 %v36, %v37
  %v39 = vrot.slane %v38, 4
  %v40 = vadd.f32 %v38, %v39
  %v41 = vrot.slane %v40, 2
  %v42 = vadd.f32 %v40, %v41
  %v43 = vrot.slane %v42, 1
  %v44 = vadd.f32 %v42, %v43
  %v45 = vadd.f32 %v33, %v44
  %46 = vst.msk [vmem:[#allocation3] sm:$0x1] %vm31, %v45
  // Predicated region
  $region10: #{gcn_forward.28} parent=0 // pred_check
    %p47 = pneg %p10
  $region11: #{gcn_forward.28} parent=0 // pred_check_branch
    %49 = sbr.rel (%p47) target = $region13
  $region12: #{gcn_forward.28} parent=0 // pred_region
    %v50 = vld [vmem:[#allocation2] sm:$0x1]
    %v51 = vmul.f32 %v50, 0.1
    %v52 = vld [vmem:[#allocation3] sm:$0x1]
    %v53 = vmul.f32 %v52, 0.1
    %v54 = vmul.f32 %v51, %v51
    %v55 = vsub.f32 %v53, %v54
    %v56 = vmax.f32 %v55, 0.0
    %57 = vst.msk [vmem:[%s1] sm:$0x1] %vm31, %v51
    %v58 = vadd.f32 %v56, 1e-05
    %v59 = vrsqrt.pop %v58
    %60 = vst.msk [vmem:[%s2] sm:$0x1] %vm31, %v59
  $region13: #{gcn_forward.28} parent=0 // pred_fallthru
    _
  // Predicated region
  $region14: #{gcn_forward.28} parent=0 // pred_check
    _
  $region15: #{gcn_forward.28} parent=0 // pred_check_branch
    %62 = sbr.rel (0) target = $region17
  $region16: #{gcn_forward.28} parent=0 // pred_region
    _
  $region17: #{gcn_forward.28} parent=0 // pred_fallthru
    _
  // Predicated region
  $region18: #{gcn_forward.28} parent=0 // pred_check
    _
  $region19: #{gcn_forward.28} parent=0 // pred_check_branch
    %64 = sbr.rel (0) target = $region21
  $region20: #{gcn_forward.28} parent=0 // pred_region
    _
  $region21: #{gcn_forward.28} parent=0 // pred_fallthru
    _
  // Predicated region
  $region22: #{gcn_forward.28} parent=0 // pred_check
    _
  $region23: #{gcn_forward.28} parent=0 // pred_check_branch
    %66 = sbr.rel (0) target = $region25
  $region24: #{gcn_forward.28} parent=0 // pred_region
    _
  $region25: #{gcn_forward.28} parent=0 // pred_fallthru
    _
  // Predicated region
  $region26: #{gcn_forward.28} parent=0 // pred_check
    _
  $region27: #{gcn_forward.28} parent=0 // pred_check_branch
    %68 = sbr.rel (0) target = $region29
  $region28: #{gcn_forward.28} parent=0 // pred_region
    _
  $region29: #{gcn_forward.28} parent=0 // pred_fallthru
    _

// kernel: gcn_forward.35
$region0: #{gcn_forward.35}
  #allocation0 [shape = 'u32[]', space=smem, size = 0x4, offset = 0x4, fixed_abs, tag = 'smem constant byte address 0x4 - core index']
  #allocation1 [shape = 'u32[144,128]{1,0:T(1,128)}', space=vmem, size = 0x12000, scoped, tag = 'internal scratch']
  %s0 = inlined_call_operand.vmem [shape: bf16[16,16], index: 0, kind: input, shape index: {}]
  %s1 = inlined_call_operand.vmem [shape: bf16[16,64], index: 1, kind: input, shape index: {}]
  %s2 = inlined_call_operand.vmem [shape: f32[16,1], index: 2, kind: input, shape index: {}]
  %s3 = inlined_call_operand.vmem [shape: f32[16,1], index: 3, kind: input, shape index: {}]
  %s4 = inlined_call_operand.vmem [shape: bf16[16,16], index: 4, kind: input, shape index: {}]
  %s5 = inlined_call_operand.vmem [shape: bf16[64,16], index: 5, kind: input, shape index: {}]
  %s6 = inlined_call_operand.vmem [shape: bf16[64,16], index: 6, kind: input, shape index: {}]
  %s7 = inlined_call_operand.vmem [shape: bf16[64,16], index: 7, kind: input, shape index: {}]
  %s8 = inlined_call_operand.vmem [shape: f32[1,16], index: 8, kind: input, shape index: {}]
  %s9 = inlined_call_operand.vmem [shape: bf16[16,16], index: 9, kind: input, shape index: {}]
  %s10 = inlined_call_operand.vmem [shape: f32[1,16], index: 10, kind: input, shape index: {}]
  %s11 = inlined_call_operand.vmem [shape: f32[16,16], index: 11, kind: output, shape index: {}]
  %s12 = sld [smem:[#allocation0]]
  $region54: #{gcn_forward.35} parent=0
    _
  %s14 = ssub.s32 1, %s12
  %s15 = scalar_select 0, %s14, %s12
  // Predicated region
  $region2: #{gcn_forward.35} parent=0 // pred_check
    _
  $region3: #{gcn_forward.35} parent=0 // pred_check_branch
    %17 = sbr.rel (0) target = $region5
  $region4: #{gcn_forward.35} parent=0 // pred_region
    _
  $region5: #{gcn_forward.35} parent=0 // pred_fallthru
    _
  // Predicated region
  $region6: #{gcn_forward.35} parent=0 // pred_check
    _
  $region7: #{gcn_forward.35} parent=0 // pred_check_branch
    %19 = sbr.rel (0) target = $region9
  $region8: #{gcn_forward.35} parent=0 // pred_region
    _
  $region9: #{gcn_forward.35} parent=0 // pred_fallthru
    _
  // Predicated region
  $region10: #{gcn_forward.35} parent=0 // pred_check
    _
  $region11: #{gcn_forward.35} parent=0 // pred_check_branch
    %21 = sbr.rel (0) target = $region13
  $region12: #{gcn_forward.35} parent=0 // pred_region
    _
  $region13: #{gcn_forward.35} parent=0 // pred_fallthru
    _
  // Predicated region
  $region14: #{gcn_forward.35} parent=0 // pred_check
    _
  $region15: #{gcn_forward.35} parent=0 // pred_check_branch
    %23 = sbr.rel (0) target = $region17
  $region16: #{gcn_forward.35} parent=0 // pred_region
    _
  $region17: #{gcn_forward.35} parent=0 // pred_fallthru
    _
  // Predicated region
  $region18: #{gcn_forward.35} parent=0 // pred_check
    _
  $region19: #{gcn_forward.35} parent=0 // pred_check_branch
    %25 = sbr.rel (0) target = $region21
  $region20: #{gcn_forward.35} parent=0 // pred_region
    _
  $region21: #{gcn_forward.35} parent=0 // pred_fallthru
    _
  // Predicated region
  $region22: #{gcn_forward.35} parent=0 // pred_check
    _
  $region23: #{gcn_forward.35} parent=0 // pred_check_branch
    %27 = sbr.rel (0) target = $region25
  $region24: #{gcn_forward.35} parent=0 // pred_region
    _
  $region25: #{gcn_forward.35} parent=0 // pred_fallthru
    _
  // Predicated region
  $region26: #{gcn_forward.35} parent=0 // pred_check
    _
  $region27: #{gcn_forward.35} parent=0 // pred_check_branch
    %29 = sbr.rel (0) target = $region29
  $region28: #{gcn_forward.35} parent=0 // pred_region
    _
  $region29: #{gcn_forward.35} parent=0 // pred_fallthru
    _
  // Predicated region
  $region30: #{gcn_forward.35} parent=0 // pred_check
    _
  $region31: #{gcn_forward.35} parent=0 // pred_check_branch
    %31 = sbr.rel (0) target = $region33
  $region32: #{gcn_forward.35} parent=0 // pred_region
    _
  $region33: #{gcn_forward.35} parent=0 // pred_fallthru
    _
  // Predicated region
  $region34: #{gcn_forward.35} parent=0 // pred_check
    _
  $region35: #{gcn_forward.35} parent=0 // pred_check_branch
    %33 = sbr.rel (0) target = $region37
  $region36: #{gcn_forward.35} parent=0 // pred_region
    _
  $region37: #{gcn_forward.35} parent=0 // pred_fallthru
    _
  // Predicated region
  $region38: #{gcn_forward.35} parent=0 // pred_check
    _
  $region39: #{gcn_forward.35} parent=0 // pred_check_branch
    %35 = sbr.rel (0) target = $region41
  $region40: #{gcn_forward.35} parent=0 // pred_region
    _
  $region41: #{gcn_forward.35} parent=0 // pred_fallthru
    _
  // Predicated region
  $region42: #{gcn_forward.35} parent=0 // pred_check
    _
  $region43: #{gcn_forward.35} parent=0 // pred_check_branch
    %37 = sbr.rel (0) target = $region45
  $region44: #{gcn_forward.35} parent=0 // pred_region
    _
  $region45: #{gcn_forward.35} parent=0 // pred_fallthru
    _
  %v39 = vld [vmem:[%s1] sm:$0xf]
  %v40 = vld [vmem:[%s1 + $0x4] sm:$0xf]
  %v41 = vld [vmem:[%s0] sm:$0xf]
  %v42 = vld [vmem:[%s0 + $0x4] sm:$0xf]
  %v43 = vld [vmem:[%s4] sm:$0xf]
  %v44 = vld [vmem:[%s4 + $0x4] sm:$0xf]
  %v45 = vld [vmem:[%s5] sm:$0xf]
  %v46 = vld [vmem:[%s5 + $0x4] sm:$0xf]
  %v47 = vld [vmem:[%s5 + $0x8] sm:$0xf]
  %v48 = vld [vmem:[%s5 + $0xc] sm:$0xf]
  %v49 = vld [vmem:[%s5 + $0x10] sm:$0xf]
  %v50 = vld [vmem:[%s5 + $0x14] sm:$0xf]
  %v51 = vld [vmem:[%s5 + $0x18] sm:$0xf]
  %v52 = vld [vmem:[%s5 + $0x1c] sm:$0xf]
  %v55 = vunpack.c.l.b16 %v39
  %v56 = vunpack.c.l.b16 %v40
  %v57 = vpack.c.b16 %v56, %v55
  %v66 = vunpack.c.l.b16 %v45
  %v67 = vunpack.c.l.b16 %v46
  %v68 = vunpack.c.l.b16 %v47
  %v69 = vunpack.c.l.b16 %v48
  %v70 = vunpack.c.l.b16 %v49
  %v71 = vunpack.c.l.b16 %v50
  %v72 = vunpack.c.l.b16 %v51
  %v73 = vunpack.c.l.b16 %v52
  %v74 = vpack.c.b16 %v67, %v66
  %v75 = vpack.c.b16 %v69, %v68
  %v76 = vpack.c.b16 %v71, %v70
  %v77 = vpack.c.b16 %v73, %v72
  %vm82 = vcmask 523264
  %v84 = vsel %vm82, %v57, 0
  %86 = vmatprep.subr.bf16.mxu0 0
  %87 = vmatpush1.bf16.msra.mxu0 %v74
  %88 = vmatprep.subr.bf16.mxu0 0
  %89 = vmatpush1.bf16.msra.mxu0 %v75
  %90 = vmatprep.subr.bf16.mxu0 0
  %91 = vmatpush1.bf16.msra.mxu0 %v76
  %92 = vmatprep.subr.bf16.mxu0 0
  %93 = vmatpush1.bf16.msra.mxu0 %v77
  %94 = vmatprep.subr.bf16.mxu0 0
  %95 = vmatpush1.bf16.msra.mxu0 0
  %96 = vmatprep.subr.bf16.mxu0 0
  %97 = vmatpush1.bf16.msra.mxu0 0
  %98 = vmatprep.subr.bf16.mxu0 0
  %99 = vmatpush1.bf16.msra.mxu0 0
  %100 = vmatprep.subr.bf16.mxu0 0
  %101 = vmatpush1.bf16.msra.mxu0 0
  %102 = vmatprep.subr.bf16.mxu0 0
  %103 = vmatpush1.bf16.msra.mxu0 0
  %104 = vmatprep.subr.bf16.mxu0 0
  %105 = vmatpush1.bf16.msra.mxu0 0
  %106 = vmatprep.subr.bf16.mxu0 0
  %107 = vmatpush1.bf16.msra.mxu0 0
  %108 = vmatprep.subr.bf16.mxu0 0
  %109 = vmatpush1.bf16.msra.mxu0 0
  %110 = vmatprep.subr.bf16.mxu0 0
  %111 = vmatpush1.bf16.msra.mxu0 0
  %112 = vmatprep.subr.bf16.mxu0 0
  %113 = vmatpush1.bf16.msra.mxu0 0
  %114 = vmatprep.subr.bf16.mxu0 0
  %115 = vmatpush1.bf16.msra.mxu0 0
  %116 = vmatprep.subr.bf16.mxu0 0
  %117 = vmatpush1.bf16.msra.mxu0 0
  %118 = vmatprep.mubr.bf16.mxu0 0
  %119 = vmatmul.mubr.bf16.gmra.mrb[0].mxu0 %v84
  %v120 = vpop.f32.mrb[0].mxu0
  %v121 = vadd.f32 0.0, %v120
  %v122 = vpop.f32.mrb[0].mxu0
  %v123 = vpop.f32.mrb[0].mxu0
  %v124 = vadd.f32 0.0, %v123
  %v125 = vpop.f32.mrb[0].mxu0
  %126 = vdwg.mxu0
  %v129 = vunpack.c.l.b16 %v41
  %v130 = vunpack.c.l.b16 %v42
  %v131 = vpack.c.b16 %v130, %v129
  %v134 = vunpack.c.l.b16 %v43
  %v135 = vunpack.c.l.b16 %v44
  %v136 = vpack.c.b16 %v135, %v134
  %vm138 = vcmask 130048
  %v140 = vsel %vm138, %v131, 0
  %142 = vmatprep.subr.bf16.mxu0 0
  %143 = vmatpush1.bf16.msra.mxu0 %v136
  %144 = vmatprep.subr.bf16.mxu0 0
  %145 = vmatpush1.bf16.msra.mxu0 0
  %146 = vmatprep.subr.bf16.mxu0 0
  %147 = vmatpush1.bf16.msra.mxu0 0
  %148 = vmatprep.subr.bf16.mxu0 0
  %149 = vmatpush1.bf16.msra.mxu0 0
  %150 = vmatprep.subr.bf16.mxu0 0
  %151 = vmatpush1.bf16.msra.mxu0 0
  %152 = vmatprep.subr.bf16.mxu0 0
  %153 = vmatpush1.bf16.msra.mxu0 0
  %154 = vmatprep.subr.bf16.mxu0 0
  %155 = vmatpush1.bf16.msra.mxu0 0
  %156 = vmatprep.subr.bf16.mxu0 0
  %157 = vmatpush1.bf16.msra.mxu0 0
  %158 = vmatprep.subr.bf16.mxu0 0
  %159 = vmatpush1.bf16.msra.mxu0 0
  %160 = vmatprep.subr.bf16.mxu0 0
  %161 = vmatpush1.bf16.msra.mxu0 0
  %162 = vmatprep.subr.bf16.mxu0 0
  %163 = vmatpush1.bf16.msra.mxu0 0
  %164 = vmatprep.subr.bf16.mxu0 0
  %165 = vmatpush1.bf16.msra.mxu0 0
  %166 = vmatprep.subr.bf16.mxu0 0
  %167 = vmatpush1.bf16.msra.mxu0 0
  %168 = vmatprep.subr.bf16.mxu0 0
  %169 = vmatpush1.bf16.msra.mxu0 0
  %170 = vmatprep.subr.bf16.mxu0 0
  %171 = vmatpush1.bf16.msra.mxu0 0
  %172 = vmatprep.subr.bf16.mxu0 0
  %173 = vmatpush1.bf16.msra.mxu0 0
  %174 = vmatprep.mubr.bf16.mxu0 0
  %175 = vmatmul.mubr.bf16.gmra.mrb[0].mxu0 %v140
  %v176 = vpop.f32.mrb[0].mxu0
  %v177 = vadd.f32 %v121, %v176
  %v178 = vpop.f32.mrb[0].mxu0
  %v179 = vpop.f32.mrb[0].mxu0
  %v180 = vadd.f32 %v124, %v179
  %v181 = vpop.f32.mrb[0].mxu0
  %182 = vdwg.mxu0
  %v183 = vld [vmem:[%s2] sm:$0xff]
  %v184 = vld [vmem:[%s2 + $0x8] sm:$0xff]
  %v185 = vld [vmem:[%s6] sm:$0xf]
  %v186 = vld [vmem:[%s6 + $0x4] sm:$0xf]
  %v187 = vld [vmem:[%s6 + $0x8] sm:$0xf]
  %v188 = vld [vmem:[%s6 + $0xc] sm:$0xf]
  %v189 = vld [vmem:[%s6 + $0x10] sm:$0xf]
  %v190 = vld [vmem:[%s6 + $0x14] sm:$0xf]
  %v191 = vld [vmem:[%s6 + $0x18] sm:$0xf]
  %v192 = vld [vmem:[%s6 + $0x1c] sm:$0xf]
  %v201 = vunpack.c.l.b16 %v185
  %v202 = vunpack.c.l.b16 %v186
  %v203 = vunpack.c.l.b16 %v187
  %v204 = vunpack.c.l.b16 %v188
  %v205 = vunpack.c.l.b16 %v189
  %v206 = vunpack.c.l.b16 %v190
  %v207 = vunpack.c.l.b16 %v191
  %v208 = vunpack.c.l.b16 %v192
  %v209 = vpack.c.b16 %v202, %v201
  %v210 = vpack.c.b16 %v204, %v203
  %v211 = vpack.c.b16 %v206, %v205
  %v212 = vpack.c.b16 %v208, %v207
  %217 = vmatprep.subr.bf16.mxu0 0
  %218 = vmatpush1.bf16.msra.mxu0 %v209
  %219 = vmatprep.subr.bf16.mxu0 0
  %220 = vmatpush1.bf16.msra.mxu0 %v210
  %221 = vmatprep.subr.bf16.mxu0 0
  %222 = vmatpush1.bf16.msra.mxu0 %v211
  %223 = vmatprep.subr.bf16.mxu0 0
  %224 = vmatpush1.bf16.msra.mxu0 %v212
  %225 = vmatprep.subr.bf16.mxu0 0
  %226 = vmatpush1.bf16.msra.mxu0 0
  %227 = vmatprep.subr.bf16.mxu0 0
  %228 = vmatpush1.bf16.msra.mxu0 0
  %229 = vmatprep.subr.bf16.mxu0 0
  %230 = vmatpush1.bf16.msra.mxu0 0
  %231 = vmatprep.subr.bf16.mxu0 0
  %232 = vmatpush1.bf16.msra.mxu0 0
  %233 = vmatprep.subr.bf16.mxu0 0
  %234 = vmatpush1.bf16.msra.mxu0 0
  %235 = vmatprep.subr.bf16.mxu0 0
  %236 = vmatpush1.bf16.msra.mxu0 0
  %237 = vmatprep.subr.bf16.mxu0 0
  %238 = vmatpush1.bf16.msra.mxu0 0
  %239 = vmatprep.subr.bf16.mxu0 0
  %240 = vmatpush1.bf16.msra.mxu0 0
  %241 = vmatprep.subr.bf16.mxu0 0
  %242 = vmatpush1.bf16.msra.mxu0 0
  %243 = vmatprep.subr.bf16.mxu0 0
  %244 = vmatpush1.bf16.msra.mxu0 0
  %245 = vmatprep.subr.bf16.mxu0 0
  %246 = vmatpush1.bf16.msra.mxu0 0
  %247 = vmatprep.subr.bf16.mxu0 0
  %248 = vmatpush1.bf16.msra.mxu0 0
  %249 = vmatprep.mubr.bf16.mxu0 0
  %250 = vmatmul.mubr.bf16.gmra.mrb[0].mxu0 %v84
  %v251 = vpop.f32.mrb[0].mxu0
  %v252 = vadd.f32 0.0, %v251
  %v253 = vpop.f32.mrb[0].mxu0
  %v254 = vpop.f32.mrb[0].mxu0
  %v255 = vadd.f32 0.0, %v254
  %v256 = vpop.f32.mrb[0].mxu0
  %257 = vdwg.mxu0
  %259 = vset.pattern.permute.xlu0 0
  %260 = vperm.xlu0 %259, %v183
  %v261 = vpop.permute.xlu0 %260
  %264 = vset.pattern.permute.xlu0 0
  %265 = vperm.xlu0 %264, %v184
  %v266 = vpop.permute.xlu0 %265
  %v268 = vmul.f32 %v261, %v252
  %v269 = vmul.f32 %v266, %v255
  %v270 = vadd.f32 %v177, %v268
  %v271 = vadd.f32 %v180, %v269
  %v272 = vld [vmem:[%s3] sm:$0xff]
  %v273 = vld [vmem:[%s3 + $0x8] sm:$0xff]
  %v274 = vld [vmem:[%s7] sm:$0xf]
  %v275 = vld [vmem:[%s7 + $0x4] sm:$0xf]
  %v276 = vld [vmem:[%s7 + $0x8] sm:$0xf]
  %v277 = vld [vmem:[%s7 + $0xc] sm:$0xf]
  %v278 = vld [vmem:[%s7 + $0x10] sm:$0xf]
  %v279 = vld [vmem:[%s7 + $0x14] sm:$0xf]
  %v280 = vld [vmem:[%s7 + $0x18] sm:$0xf]
  %v281 = vld [vmem:[%s7 + $0x1c] sm:$0xf]
  %v290 = vunpack.c.l.b16 %v274
  %v291 = vunpack.c.l.b16 %v275
  %v292 = vunpack.c.l.b16 %v276
  %v293 = vunpack.c.l.b16 %v277
  %v294 = vunpack.c.l.b16 %v278
  %v295 = vunpack.c.l.b16 %v279
  %v296 = vunpack.c.l.b16 %v280
  %v297 = vunpack.c.l.b16 %v281
  %v298 = vpack.c.b16 %v291, %v290
  %v299 = vpack.c.b16 %v293, %v292
  %v300 = vpack.c.b16 %v295, %v294
  %v301 = vpack.c.b16 %v297, %v296
  %306 = vmatprep.subr.bf16.mxu0 0
  %307 = vmatpush1.bf16.msra.mxu0 %v298
  %308 = vmatprep.subr.bf16.mxu0 0
  %309 = vmatpush1.bf16.msra.mxu0 %v299
  %310 = vmatprep.subr.bf16.mxu0 0
  %311 = vmatpush1.bf16.msra.mxu0 %v300
  %312 = vmatprep.subr.bf16.mxu0 0
  %313 = vmatpush1.bf16.msra.mxu0 %v301
  %314 = vmatprep.subr.bf16.mxu0 0
  %315 = vmatpush1.bf16.msra.mxu0 0
  %316 = vmatprep.subr.bf16.mxu0 0
  %317 = vmatpush1.bf16.msra.mxu0 0
  %318 = vmatprep.subr.bf16.mxu0 0
  %319 = vmatpush1.bf16.msra.mxu0 0
  %320 = vmatprep.subr.bf16.mxu0 0
  %321 = vmatpush1.bf16.msra.mxu0 0
  %322 = vmatprep.subr.bf16.mxu0 0
  %323 = vmatpush1.bf16.msra.mxu0 0
  %324 = vmatprep.subr.bf16.mxu0 0
  %325 = vmatpush1.bf16.msra.mxu0 0
  %326 = vmatprep.subr.bf16.mxu0 0
  %327 = vmatpush1.bf16.msra.mxu0 0
  %328 = vmatprep.subr.bf16.mxu0 0
  %329 = vmatpush1.bf16.msra.mxu0 0
  %330 = vmatprep.subr.bf16.mxu0 0
  %331 = vmatpush1.bf16.msra.mxu0 0
  %332 = vmatprep.subr.bf16.mxu0 0
  %333 = vmatpush1.bf16.msra.mxu0 0
  %334 = vmatprep.subr.bf16.mxu0 0
  %335 = vmatpush1.bf16.msra.mxu0 0
  %336 = vmatprep.subr.bf16.mxu0 0
  %337 = vmatpush1.bf16.msra.mxu0 0
  %338 = vmatprep.mubr.bf16.mxu0 0
  %339 = vmatmul.mubr.bf16.gmra.mrb[0].mxu0 %v84
  %v340 = vpop.f32.mrb[0].mxu0
  %v341 = vadd.f32 0.0, %v340
  %v342 = vpop.f32.mrb[0].mxu0
  %v343 = vpop.f32.mrb[0].mxu0
  %v344 = vadd.f32 0.0, %v343
  %v345 = vpop.f32.mrb[0].mxu0
  %346 = vdwg.mxu0
  %348 = vset.pattern.permute.xlu0 0
  %349 = vperm.xlu0 %348, %v272
  %v350 = vpop.permute.xlu0 %349
  %353 = vset.pattern.permute.xlu0 0
  %354 = vperm.xlu0 %353, %v273
  %v355 = vpop.permute.xlu0 %354
  %v357 = vmul.f32 %v350, %v341
  %v358 = vmul.f32 %v355, %v344
  %v359 = vadd.f32 %v270, %v357
  %v360 = vadd.f32 %v271, %v358
  %v361 = vld [vmem:[%s8] sm:$0x1]
  %v363 = vlaneseq
  %v364 = vshrl.u32 %v363, 7
  %v365 = vsub.s32 0, %v364
  %v366 = vrot.slane %v361, %v365
  %v368 = vadd.f32 %v359, %v366
  %v369 = vadd.f32 %v360, %v366
  %v370 = vpack.c.bf16 %v369, %v368
  %v371 = vld [vmem:[%s9] sm:$0xf]
  %v372 = vld [vmem:[%s9 + $0x4] sm:$0xf]
  %v373 = vld [vmem:[%s10] sm:$0x1]
  %v375 = vlaneseq
  %v376 = vshrl.u32 %v375, 7
  %v377 = vsub.s32 0, %v376
  %v378 = vrot.slane %v373, %v377
  %v382 = vunpack.c.l.b16 %v371
  %v383 = vunpack.c.l.b16 %v372
  %v384 = vpack.c.b16 %v383, %v382
  %v387 = vsel %vm138, %v370, 0
  %389 = vmatprep.subr.bf16.mxu0 0
  %390 = vmatpush1.bf16.msra.mxu0 %v384
  %391 = vmatprep.subr.bf16.mxu0 0
  %392 = vmatpush1.bf16.msra.mxu0 0
  %393 = vmatprep.subr.bf16.mxu0 0
  %394 = vmatpush1.bf16.msra.mxu0 0
  %395 = vmatprep.subr.bf16.mxu0 0
  %396 = vmatpush1.bf16.msra.mxu0 0
  %397 = vmatprep.subr.bf16.mxu0 0
  %398 = vmatpush1.bf16.msra.mxu0 0
  %399 = vmatprep.subr.bf16.mxu0 0
  %400 = vmatpush1.bf16.msra.mxu0 0
  %401 = vmatprep.subr.bf16.mxu0 0
  %402 = vmatpush1.bf16.msra.mxu0 0
  %403 = vmatprep.subr.bf16.mxu0 0
  %404 = vmatpush1.bf16.msra.mxu0 0
  %405 = vmatprep.subr.bf16.mxu0 0
  %406 = vmatpush1.bf16.msra.mxu0 0
  %407 = vmatprep.subr.bf16.mxu0 0
  %408 = vmatpush1.bf16.msra.mxu0 0
  %409 = vmatprep.subr.bf16.mxu0 0
  %410 = vmatpush1.bf16.msra.mxu0 0
  %411 = vmatprep.subr.bf16.mxu0 0
  %412 = vmatpush1.bf16.msra.mxu0 0
  %413 = vmatprep.subr.bf16.mxu0 0
  %414 = vmatpush1.bf16.msra.mxu0 0
  %415 = vmatprep.subr.bf16.mxu0 0
  %416 = vmatpush1.bf16.msra.mxu0 0
  %417 = vmatprep.subr.bf16.mxu0 0
  %418 = vmatpush1.bf16.msra.mxu0 0
  %419 = vmatprep.subr.bf16.mxu0 0
  %420 = vmatpush1.bf16.msra.mxu0 0
  %421 = vmatprep.mubr.bf16.mxu0 0
  %422 = vmatmul.mubr.bf16.gmra.mrb[0].mxu0 %v387
  %v423 = vpop.f32.mrb[0].mxu0
  %v424 = vadd.f32 %v378, %v423
  %v425 = vpop.f32.mrb[0].mxu0
  %v426 = vpop.f32.mrb[0].mxu0
  %v427 = vadd.f32 %v378, %v426
  %v428 = vpop.f32.mrb[0].mxu0
  %429 = vdwg.mxu0
  %430 = vst.msk [vmem:[%s11] sm:$0xff] %vm138, %v424
  %431 = vst.msk [vmem:[%s11 + $0x8] sm:$0xff] %vm138, %v427
  // Predicated region
  $region46: #{gcn_forward.35} parent=0 // pred_check
    _
  $region47: #{gcn_forward.35} parent=0 // pred_check_branch
    %433 = sbr.rel (0) target = $region49
  $region48: #{gcn_forward.35} parent=0 // pred_region
    _
  $region49: #{gcn_forward.35} parent=0 // pred_fallthru
    _
  // Predicated region
  $region50: #{gcn_forward.35} parent=0 // pred_check
    _
  $region51: #{gcn_forward.35} parent=0 // pred_check_branch
    %435 = sbr.rel (0) target = $region53
  $region52: #{gcn_forward.35} parent=0 // pred_region
    _
  $region53: #{gcn_forward.35} parent=0 // pred_fallthru
    _

// kernel: gcn_forward.45
$region0: #{gcn_forward.45}
  #allocation0 [shape = 'u32[]', space=smem, size = 0x4, offset = 0x4, fixed_abs, tag = 'smem constant byte address 0x4 - core index']
  #allocation1 [shape = 'u32[144,128]{1,0:T(1,128)}', space=vmem, size = 0x12000, scoped, tag = 'internal scratch']
  %s0 = inlined_call_operand.vmem [shape: f32[16,16], index: 0, kind: input, shape index: {}]
  %s1 = inlined_call_operand.vmem [shape: f32[1,16], index: 1, kind: input, shape index: {}]
  %s2 = inlined_call_operand.vmem [shape: f32[1,16], index: 2, kind: input, shape index: {}]
  %s3 = inlined_call_operand.vmem [shape: f32[16,16], index: 3, kind: output, shape index: {}]
  %s4 = sld [smem:[#allocation0]]
  $region22: #{gcn_forward.45} parent=0
    _
  %s6 = ssub.s32 1, %s4
  %s7 = scalar_select 0, %s6, %s4
  // Predicated region
  $region2: #{gcn_forward.45} parent=0 // pred_check
    _
  $region3: #{gcn_forward.45} parent=0 // pred_check_branch
    %9 = sbr.rel (0) target = $region5
  $region4: #{gcn_forward.45} parent=0 // pred_region
    _
  $region5: #{gcn_forward.45} parent=0 // pred_fallthru
    _
  // Predicated region
  $region6: #{gcn_forward.45} parent=0 // pred_check
    _
  $region7: #{gcn_forward.45} parent=0 // pred_check_branch
    %11 = sbr.rel (0) target = $region9
  $region8: #{gcn_forward.45} parent=0 // pred_region
    _
  $region9: #{gcn_forward.45} parent=0 // pred_fallthru
    _
  // Predicated region
  $region10: #{gcn_forward.45} parent=0 // pred_check
    _
  $region11: #{gcn_forward.45} parent=0 // pred_check_branch
    %13 = sbr.rel (0) target = $region13
  $region12: #{gcn_forward.45} parent=0 // pred_region
    _
  $region13: #{gcn_forward.45} parent=0 // pred_fallthru
    _
  %v14 = vld [vmem:[%s0] sm:$0xff]
  %v15 = vld [vmem:[%s0 + $0x8] sm:$0xff]
  %v16 = vld [vmem:[%s1] sm:$0x1]
  %v18 = vlaneseq
  %v19 = vshrl.u32 %v18, 7
  %v20 = vsub.s32 0, %v19
  %v21 = vrot.slane %v16, %v20
  %v23 = vmul.f32 %v14, %v21
  %v24 = vmul.f32 %v15, %v21
  %v25 = vld [vmem:[%s2] sm:$0x1]
  %v27 = vlaneseq
  %v28 = vshrl.u32 %v27, 7
  %v29 = vsub.s32 0, %v28
  %v30 = vrot.slane %v25, %v29
  %v32 = vadd.f32 %v23, %v30
  %v33 = vadd.f32 %v24, %v30
  %vm34 = vcmp.gt.f32.partialorder %v32, 0.0
  %vm35 = vcmp.gt.f32.partialorder %v33, 0.0
  %v36 = vmul.f32 %v32, 0.01
  %v37 = vmul.f32 %v33, 0.01
  %v38 = vsel %vm34, %v32, %v36
  %v39 = vsel %vm35, %v33, %v37
  %vm40 = vcmask 130048
  %41 = vst.msk [vmem:[%s3] sm:$0xff] %vm40, %v38
  %42 = vst.msk [vmem:[%s3 + $0x8] sm:$0xff] %vm40, %v39
  // Predicated region
  $region14: #{gcn_forward.45} parent=0 // pred_check
    _
  $region15: #{gcn_forward.45} parent=0 // pred_check_branch
    %44 = sbr.rel (0) target = $region17
  $region16: #{gcn_forward.45} parent=0 // pred_region
    _
  $region17: #{gcn_forward.45} parent=0 // pred_fallthru
    _
  // Predicated region
  $region18: #{gcn_forward.45} parent=0 // pred_check
    _
  $region19: #{gcn_forward.45} parent=0 // pred_check_branch
    %46 = sbr.rel (0) target = $region21
  $region20: #{gcn_forward.45} parent=0 // pred_region
    _
  $region21: #{gcn_forward.45} parent=0 // pred_fallthru
    _

// kernel: gcn_forward.44
$region0: #{gcn_forward.44}
  #allocation0 [shape = 'u32[]', space=smem, size = 0x4, offset = 0x4, fixed_abs, tag = 'smem constant byte address 0x4 - core index']
  #allocation1 [shape = 'u32[144,128]{1,0:T(1,128)}', space=vmem, size = 0x12000, scoped, tag = 'internal scratch']
  #allocation2 [shape = 'f32[1,16]{1,0:T(1,128)}', space=vmem, size = 0x200, scoped, tag = 'scratch operand']
  #allocation3 [shape = 'f32[1,16]{1,0:T(1,128)}', space=vmem, size = 0x200, scoped, tag = 'scratch operand']
  %s0 = inlined_call_operand.vmem [shape: f32[16,16], index: 0, kind: input, shape index: {}]
  %s1 = inlined_call_operand.vmem [shape: f32[1,16], index: 1, kind: output, shape index: {0}]
  %s2 = inlined_call_operand.vmem [shape: f32[1,16], index: 2, kind: output, shape index: {1}]
  %3 = xla_tuple %s1, %s2
  %s4 = sld [smem:[#allocation0]]
  $region30: #{gcn_forward.44} parent=0
    _
  %s6 = ssub.s32 1, %s4
  %s7 = scalar_select 0, %s6, %s4
  // Predicated region
  $region2: #{gcn_forward.44} parent=0 // pred_check
    _
  $region3: #{gcn_forward.44} parent=0 // pred_check_branch
    %9 = sbr.rel (0) target = $region5
  $region4: #{gcn_forward.44} parent=0 // pred_region
    _
  $region5: #{gcn_forward.44} parent=0 // pred_fallthru
    _
  %p10 = scmp.eq.s32.totalorder 0, 0
  // Predicated region
  $region6: #{gcn_forward.44} parent=0 // pred_check
    %p11 = pneg %p10
  $region7: #{gcn_forward.44} parent=0 // pred_check_branch
    %13 = sbr.rel (%p11) target = $region9
  $region8: #{gcn_forward.44} parent=0 // pred_region
    %vm14 = vcmask 122880
    %15 = vst.msk [vmem:[#allocation2] sm:$0x1] %vm14, 0.0
    %16 = vst.msk [vmem:[#allocation3] sm:$0x1] %vm14, 0.0
  $region9: #{gcn_forward.44} parent=0 // pred_fallthru
    _
  %v17 = vld [vmem:[%s0] sm:$0xff]
  %v18 = vld [vmem:[%s0 + $0x8] sm:$0xff]
  %v19 = vld [vmem:[#allocation2] sm:$0x1]
  %vm20 = vcmask 130048
  %v21 = vsel %vm20, %v17, 0.0
  %v22 = vsel %vm20, %v18, 0.0
  %v23 = vadd.f32 %v21, %v22
  %v24 = vrot.slane %v23, 4
  %v25 = vadd.f32 %v23, %v24
  %v26 = vrot.slane %v25, 2
  %v27 = vadd.f32 %v25, %v26
  %v28 = vrot.slane %v27, 1
  %v29 = vadd.f32 %v27, %v28
  %v30 = vadd.f32 %v19, %v29
  %vm31 = vcmask 122880
  %32 = vst.msk [vmem:[#allocation2] sm:$0x1] %vm31, %v30
  %v33 = vld [vmem:[#allocation3] sm:$0x1]
  %v34 = vmul.f32 %v17, %v17
  %v35 = vmul.f32 %v18, %v18
  %v36 = vsel %vm20, %v34, 0.0
  %v37 = vsel %vm20, %v35, 0.0
  %v38 = vadd.f32 %v36, %v37
  %v39 = vrot.slane %v38, 4
  %v40 = vadd.f32 %v38, %v39
  %v41 = vrot.slane %v40, 2
  %v42 = vadd.f32 %v40, %v41
  %v43 = vrot.slane %v42, 1
  %v44 = vadd.f32 %v42, %v43
  %v45 = vadd.f32 %v33, %v44
  %46 = vst.msk [vmem:[#allocation3] sm:$0x1] %vm31, %v45
  // Predicated region
  $region10: #{gcn_forward.44} parent=0 // pred_check
    %p47 = pneg %p10
  $region11: #{gcn_forward.44} parent=0 // pred_check_branch
    %49 = sbr.rel (%p47) target = $region13
  $region12: #{gcn_forward.44} parent=0 // pred_region
    %v50 = vld [vmem:[#allocation2] sm:$0x1]
    %v51 = vmul.f32 %v50, 0.083333336
    %v52 = vld [vmem:[#allocation3] sm:$0x1]
    %v53 = vmul.f32 %v52, 0.083333336
    %v54 = vmul.f32 %v51, %v51
    %v55 = vsub.f32 %v53, %v54
    %v56 = vmax.f32 %v55, 0.0
    %57 = vst.msk [vmem:[%s1] sm:$0x1] %vm31, %v51
    %v58 = vadd.f32 %v56, 1e-05
    %v59 = vrsqrt.pop %v58
    %60 = vst.msk [vmem:[%s2] sm:$0x1] %vm31, %v59
  $region13: #{gcn_forward.44} parent=0 // pred_fallthru
    _
  // Predicated region
  $region14: #{gcn_forward.44} parent=0 // pred_check
    _
  $region15: #{gcn_forward.44} parent=0 // pred_check_branch
    %62 = sbr.rel (0) target = $region17
  $region16: #{gcn_forward.44} parent=0 // pred_region
    _
  $region17: #{gcn_forward.44} parent=0 // pred_fallthru
    _
  // Predicated region
  $region18: #{gcn_forward.44} parent=0 // pred_check
    _
  $region19: #{gcn_forward.44} parent=0 // pred_check_branch
    %64 = sbr.rel (0) target = $region21
  $region20: #{gcn_forward.44} parent=0 // pred_region
    _
  $region21: #{gcn_forward.44} parent=0 // pred_fallthru
    _
  // Predicated region
  $region22: #{gcn_forward.44} parent=0 // pred_check
    _
  $region23: #{gcn_forward.44} parent=0 // pred_check_branch
    %66 = sbr.rel (0) target = $region25
  $region24: #{gcn_forward.44} parent=0 // pred_region
    _
  $region25: #{gcn_forward.44} parent=0 // pred_fallthru
    _
  // Predicated region
  $region26: #{gcn_forward.44} parent=0 // pred_check
    _
  $region27: #{gcn_forward.44} parent=0 // pred_check_branch
    %68 = sbr.rel (0) target = $region29
  $region28: #{gcn_forward.44} parent=0 // pred_region
    _
  $region29: #{gcn_forward.44} parent=0 // pred_fallthru
    _

// kernel: gcn_forward.48
$region0: #{gcn_forward.48}
  #allocation0 [shape = 'u32[]', space=smem, size = 0x4, offset = 0x4, fixed_abs, tag = 'smem constant byte address 0x4 - core index']
  #allocation1 [shape = 'u32[144,128]{1,0:T(1,128)}', space=vmem, size = 0x12000, scoped, tag = 'internal scratch']
  #allocation2 [shape = 'f32[1,32]{1,0:T(1,128)}', space=vmem, size = 0x200, scoped, tag = 'scratch operand']
  #allocation3 [shape = 'f32[1,32]{1,0:T(1,128)}', space=vmem, size = 0x200, scoped, tag = 'scratch operand']
  %s0 = inlined_call_operand.vmem [shape: f32[16,32], index: 0, kind: input, shape index: {}]
  %s1 = inlined_call_operand.vmem [shape: f32[1,32], index: 1, kind: output, shape index: {0}]
  %s2 = inlined_call_operand.vmem [shape: f32[1,32], index: 2, kind: output, shape index: {1}]
  %3 = xla_tuple %s1, %s2
  %s4 = sld [smem:[#allocation0]]
  $region30: #{gcn_forward.48} parent=0
    _
  %s6 = ssub.s32 1, %s4
  %s7 = scalar_select 0, %s6, %s4
  // Predicated region
  $region2: #{gcn_forward.48} parent=0 // pred_check
    _
  $region3: #{gcn_forward.48} parent=0 // pred_check_branch
    %9 = sbr.rel (0) target = $region5
  $region4: #{gcn_forward.48} parent=0 // pred_region
    _
  $region5: #{gcn_forward.48} parent=0 // pred_fallthru
    _
  %p10 = scmp.eq.s32.totalorder 0, 0
  // Predicated region
  $region6: #{gcn_forward.48} parent=0 // pred_check
    %p11 = pneg %p10
  $region7: #{gcn_forward.48} parent=0 // pred_check_branch
    %13 = sbr.rel (%p11) target = $region9
  $region8: #{gcn_forward.48} parent=0 // pred_region
    %vm14 = vcmask 253952
    %15 = vst.msk [vmem:[#allocation2] sm:$0x1] %vm14, 0.0
    %16 = vst.msk [vmem:[#allocation3] sm:$0x1] %vm14, 0.0
  $region9: #{gcn_forward.48} parent=0 // pred_fallthru
    _
  %v17 = vld [vmem:[%s0] sm:$0xff]
  %v18 = vld [vmem:[%s0 + $0x8] sm:$0xff]
  %v19 = vld [vmem:[#allocation2] sm:$0x1]
  %vm20 = vcmask 261120
  %v21 = vsel %vm20, %v17, 0.0
  %v22 = vsel %vm20, %v18, 0.0
  %v23 = vadd.f32 %v21, %v22
  %v24 = vrot.slane %v23, 4
  %v25 = vadd.f32 %v23, %v24
  %v26 = vrot.slane %v25, 2
  %v27 = vadd.f32 %v25, %v26
  %v28 = vrot.slane %v27, 1
  %v29 = vadd.f32 %v27, %v28
  %v30 = vadd.f32 %v19, %v29
  %vm31 = vcmask 253952
  %32 = vst.msk [vmem:[#allocation2] sm:$0x1] %vm31, %v30
  %v33 = vld [vmem:[#allocation3] sm:$0x1]
  %v34 = vmul.f32 %v17, %v17
  %v35 = vmul.f32 %v18, %v18
  %v36 = vsel %vm20, %v34, 0.0
  %v37 = vsel %vm20, %v35, 0.0
  %v38 = vadd.f32 %v36, %v37
  %v39 = vrot.slane %v38, 4
  %v40 = vadd.f32 %v38, %v39
  %v41 = vrot.slane %v40, 2
  %v42 = vadd.f32 %v40, %v41
  %v43 = vrot.slane %v42, 1
  %v44 = vadd.f32 %v42, %v43
  %v45 = vadd.f32 %v33, %v44
  %46 = vst.msk [vmem:[#allocation3] sm:$0x1] %vm31, %v45
  // Predicated region
  $region10: #{gcn_forward.48} parent=0 // pred_check
    %p47 = pneg %p10
  $region11: #{gcn_forward.48} parent=0 // pred_check_branch
    %49 = sbr.rel (%p47) target = $region13
  $region12: #{gcn_forward.48} parent=0 // pred_region
    %v50 = vld [vmem:[#allocation2] sm:$0x1]
    %v51 = vmul.f32 %v50, 0.083333336
    %v52 = vld [vmem:[#allocation3] sm:$0x1]
    %v53 = vmul.f32 %v52, 0.083333336
    %v54 = vmul.f32 %v51, %v51
    %v55 = vsub.f32 %v53, %v54
    %v56 = vmax.f32 %v55, 0.0
    %57 = vst.msk [vmem:[%s1] sm:$0x1] %vm31, %v51
    %v58 = vadd.f32 %v56, 1e-05
    %v59 = vrsqrt.pop %v58
    %60 = vst.msk [vmem:[%s2] sm:$0x1] %vm31, %v59
  $region13: #{gcn_forward.48} parent=0 // pred_fallthru
    _
  // Predicated region
  $region14: #{gcn_forward.48} parent=0 // pred_check
    _
  $region15: #{gcn_forward.48} parent=0 // pred_check_branch
    %62 = sbr.rel (0) target = $region17
  $region16: #{gcn_forward.48} parent=0 // pred_region
    _
  $region17: #{gcn_forward.48} parent=0 // pred_fallthru
    _
  // Predicated region
  $region18: #{gcn_forward.48} parent=0 // pred_check
    _
  $region19: #{gcn_forward.48} parent=0 // pred_check_branch
    %64 = sbr.rel (0) target = $region21
  $region20: #{gcn_forward.48} parent=0 // pred_region
    _
  $region21: #{gcn_forward.48} parent=0 // pred_fallthru
    _
  // Predicated region
  $region22: #{gcn_forward.48} parent=0 // pred_check
    _
  $region23: #{gcn_forward.48} parent=0 // pred_check_branch
    %66 = sbr.rel (0) target = $region25
  $region24: #{gcn_forward.48} parent=0 // pred_region
    _
  $region25: #{gcn_forward.48} parent=0 // pred_fallthru
    _
  // Predicated region
  $region26: #{gcn_forward.48} parent=0 // pred_check
    _
  $region27: #{gcn_forward.48} parent=0 // pred_check_branch
    %68 = sbr.rel (0) target = $region29
  $region28: #{gcn_forward.48} parent=0 // pred_region
    _
  $region29: #{gcn_forward.48} parent=0 // pred_fallthru
    _

// kernel: gcn_forward.47
$region0: #{gcn_forward.47}
  #allocation0 [shape = 'u32[]', space=smem, size = 0x4, offset = 0x4, fixed_abs, tag = 'smem constant byte address 0x4 - core index']
  #allocation1 [shape = 'u32[144,128]{1,0:T(1,128)}', space=vmem, size = 0x12000, scoped, tag = 'internal scratch']
  %s0 = inlined_call_operand.vmem [shape: bf16[16,16], index: 0, kind: input, shape index: {}]
  %s1 = inlined_call_operand.vmem [shape: bf16[16,64], index: 1, kind: input, shape index: {}]
  %s2 = inlined_call_operand.vmem [shape: f32[16,1], index: 2, kind: input, shape index: {}]
  %s3 = inlined_call_operand.vmem [shape: f32[16,1], index: 3, kind: input, shape index: {}]
  %s4 = inlined_call_operand.vmem [shape: bf16[16,32], index: 4, kind: input, shape index: {}]
  %s5 = inlined_call_operand.vmem [shape: bf16[64,32], index: 5, kind: input, shape index: {}]
  %s6 = inlined_call_operand.vmem [shape: bf16[64,32], index: 6, kind: input, shape index: {}]
  %s7 = inlined_call_operand.vmem [shape: bf16[64,32], index: 7, kind: input, shape index: {}]
  %s8 = inlined_call_operand.vmem [shape: f32[1,32], index: 8, kind: input, shape index: {}]
  %s9 = inlined_call_operand.vmem [shape: bf16[32,32], index: 9, kind: input, shape index: {}]
  %s10 = inlined_call_operand.vmem [shape: f32[1,32], index: 10, kind: input, shape index: {}]
  %s11 = inlined_call_operand.vmem [shape: f32[16,32], index: 11, kind: output, shape index: {}]
  %s12 = sld [smem:[#allocation0]]
  $region54: #{gcn_forward.47} parent=0
    _
  %s14 = ssub.s32 1, %s12
  %s15 = scalar_select 0, %s14, %s12
  // Predicated region
  $region2: #{gcn_forward.47} parent=0 // pred_check
    _
  $region3: #{gcn_forward.47} parent=0 // pred_check_branch
    %17 = sbr.rel (0) target = $region5
  $region4: #{gcn_forward.47} parent=0 // pred_region
    _
  $region5: #{gcn_forward.47} parent=0 // pred_fallthru
    _
  // Predicated region
  $region6: #{gcn_forward.47} parent=0 // pred_check
    _
  $region7: #{gcn_forward.47} parent=0 // pred_check_branch
    %19 = sbr.rel (0) target = $region9
  $region8: #{gcn_forward.47} parent=0 // pred_region
    _
  $region9: #{gcn_forward.47} parent=0 // pred_fallthru
    _
  // Predicated region
  $region10: #{gcn_forward.47} parent=0 // pred_check
    _
  $region11: #{gcn_forward.47} parent=0 // pred_check_branch
    %21 = sbr.rel (0) target = $region13
  $region12: #{gcn_forward.47} parent=0 // pred_region
    _
  $region13: #{gcn_forward.47} parent=0 // pred_fallthru
    _
  // Predicated region
  $region14: #{gcn_forward.47} parent=0 // pred_check
    _
  $region15: #{gcn_forward.47} parent=0 // pred_check_branch
    %23 = sbr.rel (0) target = $region17
  $region16: #{gcn_forward.47} parent=0 // pred_region
    _
  $region17: #{gcn_forward.47} parent=0 // pred_fallthru
    _
  // Predicated region
  $region18: #{gcn_forward.47} parent=0 // pred_check
    _
  $region19: #{gcn_forward.47} parent=0 // pred_check_branch
    %25 = sbr.rel (0) target = $region21
  $region20: #{gcn_forward.47} parent=0 // pred_region
    _
  $region21: #{gcn_forward.47} parent=0 // pred_fallthru
    _
  // Predicated region
  $region22: #{gcn_forward.47} parent=0 // pred_check
    _
  $region23: #{gcn_forward.47} parent=0 // pred_check_branch
    %27 = sbr.rel (0) target = $region25
  $region24: #{gcn_forward.47} parent=0 // pred_region
    _
  $region25: #{gcn_forward.47} parent=0 // pred_fallthru
    _
  // Predicated region
  $region26: #{gcn_forward.47} parent=0 // pred_check
    _
  $region27: #{gcn_forward.47} parent=0 // pred_check_branch
    %29 = sbr.rel (0) target = $region29
  $region28: #{gcn_forward.47} parent=0 // pred_region
    _
  $region29: #{gcn_forward.47} parent=0 // pred_fallthru
    _
  // Predicated region
  $region30: #{gcn_forward.47} parent=0 // pred_check
    _
  $region31: #{gcn_forward.47} parent=0 // pred_check_branch
    %31 = sbr.rel (0) target = $region33
  $region32: #{gcn_forward.47} parent=0 // pred_region
    _
  $region33: #{gcn_forward.47} parent=0 // pred_fallthru
    _
  // Predicated region
  $region34: #{gcn_forward.47} parent=0 // pred_check
    _
  $region35: #{gcn_forward.47} parent=0 // pred_check_branch
    %33 = sbr.rel (0) target = $region37
  $region36: #{gcn_forward.47} parent=0 // pred_region
    _
  $region37: #{gcn_forward.47} parent=0 // pred_fallthru
    _
  // Predicated region
  $region38: #{gcn_forward.47} parent=0 // pred_check
    _
  $region39: #{gcn_forward.47} parent=0 // pred_check_branch
    %35 = sbr.rel (0) target = $region41
  $region40: #{gcn_forward.47} parent=0 // pred_region
    _
  $region41: #{gcn_forward.47} parent=0 // pred_fallthru
    _
  // Predicated region
  $region42: #{gcn_forward.47} parent=0 // pred_check
    _
  $region43: #{gcn_forward.47} parent=0 // pred_check_branch
    %37 = sbr.rel (0) target = $region45
  $region44: #{gcn_forward.47} parent=0 // pred_region
    _
  $region45: #{gcn_forward.47} parent=0 // pred_fallthru
    _
  %v39 = vld [vmem:[%s1] sm:$0xf]
  %v40 = vld [vmem:[%s1 + $0x4] sm:$0xf]
  %v41 = vld [vmem:[%s0] sm:$0xf]
  %v42 = vld [vmem:[%s0 + $0x4] sm:$0xf]
  %v43 = vld [vmem:[%s4] sm:$0xf]
  %v44 = vld [vmem:[%s4 + $0x4] sm:$0xf]
  %v45 = vld [vmem:[%s5] sm:$0xf]
  %v46 = vld [vmem:[%s5 + $0x4] sm:$0xf]
  %v47 = vld [vmem:[%s5 + $0x8] sm:$0xf]
  %v48 = vld [vmem:[%s5 + $0xc] sm:$0xf]
  %v49 = vld [vmem:[%s5 + $0x10] sm:$0xf]
  %v50 = vld [vmem:[%s5 + $0x14] sm:$0xf]
  %v51 = vld [vmem:[%s5 + $0x18] sm:$0xf]
  %v52 = vld [vmem:[%s5 + $0x1c] sm:$0xf]
  %v55 = vunpack.c.l.b16 %v39
  %v56 = vunpack.c.l.b16 %v40
  %v57 = vpack.c.b16 %v56, %v55
  %v66 = vunpack.c.l.b16 %v45
  %v67 = vunpack.c.l.b16 %v46
  %v68 = vunpack.c.l.b16 %v47
  %v69 = vunpack.c.l.b16 %v48
  %v70 = vunpack.c.l.b16 %v49
  %v71 = vunpack.c.l.b16 %v50
  %v72 = vunpack.c.l.b16 %v51
  %v73 = vunpack.c.l.b16 %v52
  %v74 = vpack.c.b16 %v67, %v66
  %v75 = vpack.c.b16 %v69, %v68
  %v76 = vpack.c.b16 %v71, %v70
  %v77 = vpack.c.b16 %v73, %v72
  %vm82 = vcmask 523264
  %v84 = vsel %vm82, %v57, 0
  %86 = vmatprep.subr.bf16.mxu0 0
  %87 = vmatpush1.bf16.msra.mxu0 %v74
  %88 = vmatprep.subr.bf16.mxu0 0
  %89 = vmatpush1.bf16.msra.mxu0 %v75
  %90 = vmatprep.subr.bf16.mxu0 0
  %91 = vmatpush1.bf16.msra.mxu0 %v76
  %92 = vmatprep.subr.bf16.mxu0 0
  %93 = vmatpush1.bf16.msra.mxu0 %v77
  %94 = vmatprep.subr.bf16.mxu0 0
  %95 = vmatpush1.bf16.msra.mxu0 0
  %96 = vmatprep.subr.bf16.mxu0 0
  %97 = vmatpush1.bf16.msra.mxu0 0
  %98 = vmatprep.subr.bf16.mxu0 0
  %99 = vmatpush1.bf16.msra.mxu0 0
  %100 = vmatprep.subr.bf16.mxu0 0
  %101 = vmatpush1.bf16.msra.mxu0 0
  %102 = vmatprep.subr.bf16.mxu0 0
  %103 = vmatpush1.bf16.msra.mxu0 0
  %104 = vmatprep.subr.bf16.mxu0 0
  %105 = vmatpush1.bf16.msra.mxu0 0
  %106 = vmatprep.subr.bf16.mxu0 0
  %107 = vmatpush1.bf16.msra.mxu0 0
  %108 = vmatprep.subr.bf16.mxu0 0
  %109 = vmatpush1.bf16.msra.mxu0 0
  %110 = vmatprep.subr.bf16.mxu0 0
  %111 = vmatpush1.bf16.msra.mxu0 0
  %112 = vmatprep.subr.bf16.mxu0 0
  %113 = vmatpush1.bf16.msra.mxu0 0
  %114 = vmatprep.subr.bf16.mxu0 0
  %115 = vmatpush1.bf16.msra.mxu0 0
  %116 = vmatprep.subr.bf16.mxu0 0
  %117 = vmatpush1.bf16.msra.mxu0 0
  %118 = vmatprep.mubr.bf16.mxu0 0
  %119 = vmatmul.mubr.bf16.gmra.mrb[0].mxu0 %v84
  %v120 = vpop.f32.mrb[0].mxu0
  %v121 = vadd.f32 0.0, %v120
  %v122 = vpop.f32.mrb[0].mxu0
  %v123 = vpop.f32.mrb[0].mxu0
  %v124 = vadd.f32 0.0, %v123
  %v125 = vpop.f32.mrb[0].mxu0
  %126 = vdwg.mxu0
  %v129 = vunpack.c.l.b16 %v41
  %v130 = vunpack.c.l.b16 %v42
  %v131 = vpack.c.b16 %v130, %v129
  %v134 = vunpack.c.l.b16 %v43
  %v135 = vunpack.c.l.b16 %v44
  %v136 = vpack.c.b16 %v135, %v134
  %vm138 = vcmask 130048
  %v140 = vsel %vm138, %v131, 0
  %142 = vmatprep.subr.bf16.mxu0 0
  %143 = vmatpush1.bf16.msra.mxu0 %v136
  %144 = vmatprep.subr.bf16.mxu0 0
  %145 = vmatpush1.bf16.msra.mxu0 0
  %146 = vmatprep.subr.bf16.mxu0 0
  %147 = vmatpush1.bf16.msra.mxu0 0
  %148 = vmatprep.subr.bf16.mxu0 0
  %149 = vmatpush1.bf16.msra.mxu0 0
  %150 = vmatprep.subr.bf16.mxu0 0
  %151 = vmatpush1.bf16.msra.mxu0 0
  %152 = vmatprep.subr.bf16.mxu0 0
  %153 = vmatpush1.bf16.msra.mxu0 0
  %154 = vmatprep.subr.bf16.mxu0 0
  %155 = vmatpush1.bf16.msra.mxu0 0
  %156 = vmatprep.subr.bf16.mxu0 0
  %157 = vmatpush1.bf16.msra.mxu0 0
  %158 = vmatprep.subr.bf16.mxu0 0
  %159 = vmatpush1.bf16.msra.mxu0 0
  %160 = vmatprep.subr.bf16.mxu0 0
  %161 = vmatpush1.bf16.msra.mxu0 0
  %162 = vmatprep.subr.bf16.mxu0 0
  %163 = vmatpush1.bf16.msra.mxu0 0
  %164 = vmatprep.subr.bf16.mxu0 0
  %165 = vmatpush1.bf16.msra.mxu0 0
  %166 = vmatprep.subr.bf16.mxu0 0
  %167 = vmatpush1.bf16.msra.mxu0 0
  %168 = vmatprep.subr.bf16.mxu0 0
  %169 = vmatpush1.bf16.msra.mxu0 0
  %170 = vmatprep.subr.bf16.mxu0 0
  %171 = vmatpush1.bf16.msra.mxu0 0
  %172 = vmatprep.subr.bf16.mxu0 0
  %173 = vmatpush1.bf16.msra.mxu0 0
  %174 = vmatprep.mubr.bf16.mxu0 0
  %175 = vmatmul.mubr.bf16.gmra.mrb[0].mxu0 %v140
  %v176 = vpop.f32.mrb[0].mxu0
  %v177 = vadd.f32 %v121, %v176
  %v178 = vpop.f32.mrb[0].mxu0
  %v179 = vpop.f32.mrb[0].mxu0
  %v180 = vadd.f32 %v124, %v179
  %v181 = vpop.f32.mrb[0].mxu0
  %182 = vdwg.mxu0
  %v183 = vld [vmem:[%s2] sm:$0xff]
  %v184 = vld [vmem:[%s2 + $0x8] sm:$0xff]
  %v185 = vld [vmem:[%s6] sm:$0xf]
  %v186 = vld [vmem:[%s6 + $0x4] sm:$0xf]
  %v187 = vld [vmem:[%s6 + $0x8] sm:$0xf]
  %v188 = vld [vmem:[%s6 + $0xc] sm:$0xf]
  %v189 = vld [vmem:[%s6 + $0x10] sm:$0xf]
  %v190 = vld [vmem:[%s6 + $0x14] sm:$0xf]
  %v191 = vld [vmem:[%s6 + $0x18] sm:$0xf]
  %v192 = vld [vmem:[%s6 + $0x1c] sm:$0xf]
  %v201 = vunpack.c.l.b16 %v185
  %v202 = vunpack.c.l.b16 %v186
  %v203 = vunpack.c.l.b16 %v187
  %v204 = vunpack.c.l.b16 %v188
  %v205 = vunpack.c.l.b16 %v189
  %v206 = vunpack.c.l.b16 %v190
  %v207 = vunpack.c.l.b16 %v191
  %v208 = vunpack.c.l.b16 %v192
  %v209 = vpack.c.b16 %v202, %v201
  %v210 = vpack.c.b16 %v204, %v203
  %v211 = vpack.c.b16 %v206, %v205
  %v212 = vpack.c.b16 %v208, %v207
  %217 = vmatprep.subr.bf16.mxu0 0
  %218 = vmatpush1.bf16.msra.mxu0 %v209
  %219 = vmatprep.subr.bf16.mxu0 0
  %220 = vmatpush1.bf16.msra.mxu0 %v210
  %221 = vmatprep.subr.bf16.mxu0 0
  %222 = vmatpush1.bf16.msra.mxu0 %v211
  %223 = vmatprep.subr.bf16.mxu0 0
  %224 = vmatpush1.bf16.msra.mxu0 %v212
  %225 = vmatprep.subr.bf16.mxu0 0
  %226 = vmatpush1.bf16.msra.mxu0 0
  %227 = vmatprep.subr.bf16.mxu0 0
  %228 = vmatpush1.bf16.msra.mxu0 0
  %229 = vmatprep.subr.bf16.mxu0 0
  %230 = vmatpush1.bf16.msra.mxu0 0
  %231 = vmatprep.subr.bf16.mxu0 0
  %232 = vmatpush1.bf16.msra.mxu0 0
  %233 = vmatprep.subr.bf16.mxu0 0
  %234 = vmatpush1.bf16.msra.mxu0 0
  %235 = vmatprep.subr.bf16.mxu0 0
  %236 = vmatpush1.bf16.msra.mxu0 0
  %237 = vmatprep.subr.bf16.mxu0 0
  %238 = vmatpush1.bf16.msra.mxu0 0
  %239 = vmatprep.subr.bf16.mxu0 0
  %240 = vmatpush1.bf16.msra.mxu0 0
  %241 = vmatprep.subr.bf16.mxu0 0
  %242 = vmatpush1.bf16.msra.mxu0 0
  %243 = vmatprep.subr.bf16.mxu0 0
  %244 = vmatpush1.bf16.msra.mxu0 0
  %245 = vmatprep.subr.bf16.mxu0 0
  %246 = vmatpush1.bf16.msra.mxu0 0
  %247 = vmatprep.subr.bf16.mxu0 0
  %248 = vmatpush1.bf16.msra.mxu0 0
  %249 = vmatprep.mubr.bf16.mxu0 0
  %250 = vmatmul.mubr.bf16.gmra.mrb[0].mxu0 %v84
  %v251 = vpop.f32.mrb[0].mxu0
  %v252 = vadd.f32 0.0, %v251
  %v253 = vpop.f32.mrb[0].mxu0
  %v254 = vpop.f32.mrb[0].mxu0
  %v255 = vadd.f32 0.0, %v254
  %v256 = vpop.f32.mrb[0].mxu0
  %257 = vdwg.mxu0
  %259 = vset.pattern.permute.xlu0 0
  %260 = vperm.xlu0 %259, %v183
  %v261 = vpop.permute.xlu0 %260
  %264 = vset.pattern.permute.xlu0 0
  %265 = vperm.xlu0 %264, %v184
  %v266 = vpop.permute.xlu0 %265
  %v268 = vmul.f32 %v261, %v252
  %v269 = vmul.f32 %v266, %v255
  %v270 = vadd.f32 %v177, %v268
  %v271 = vadd.f32 %v180, %v269
  %v272 = vld [vmem:[%s3] sm:$0xff]
  %v273 = vld [vmem:[%s3 + $0x8] sm:$0xff]
  %v274 = vld [vmem:[%s7] sm:$0xf]
  %v275 = vld [vmem:[%s7 + $0x4] sm:$0xf]
  %v276 = vld [vmem:[%s7 + $0x8] sm:$0xf]
  %v277 = vld [vmem:[%s7 + $0xc] sm:$0xf]
  %v278 = vld [vmem:[%s7 + $0x10] sm:$0xf]
  %v279 = vld [vmem:[%s7 + $0x14] sm:$0xf]
  %v280 = vld [vmem:[%s7 + $0x18] sm:$0xf]
  %v281 = vld [vmem:[%s7 + $0x1c] sm:$0xf]
  %v290 = vunpack.c.l.b16 %v274
  %v291 = vunpack.c.l.b16 %v275
  %v292 = vunpack.c.l.b16 %v276
  %v293 = vunpack.c.l.b16 %v277
  %v294 = vunpack.c.l.b16 %v278
  %v295 = vunpack.c.l.b16 %v279
  %v296 = vunpack.c.l.b16 %v280
  %v297 = vunpack.c.l.b16 %v281
  %v298 = vpack.c.b16 %v291, %v290
  %v299 = vpack.c.b16 %v293, %v292
  %v300 = vpack.c.b16 %v295, %v294
  %v301 = vpack.c.b16 %v297, %v296
  %306 = vmatprep.subr.bf16.mxu0 0
  %307 = vmatpush1.bf16.msra.mxu0 %v298
  %308 = vmatprep.subr.bf16.mxu0 0
  %309 = vmatpush1.bf16.msra.mxu0 %v299
  %310 = vmatprep.subr.bf16.mxu0 0
  %311 = vmatpush1.bf16.msra.mxu0 %v300
  %312 = vmatprep.subr.bf16.mxu0 0
  %313 = vmatpush1.bf16.msra.mxu0 %v301
  %314 = vmatprep.subr.bf16.mxu0 0
  %315 = vmatpush1.bf16.msra.mxu0 0
  %316 = vmatprep.subr.bf16.mxu0 0
  %317 = vmatpush1.bf16.msra.mxu0 0
  %318 = vmatprep.subr.bf16.mxu0 0
  %319 = vmatpush1.bf16.msra.mxu0 0
  %320 = vmatprep.subr.bf16.mxu0 0
  %321 = vmatpush1.bf16.msra.mxu0 0
  %322 = vmatprep.subr.bf16.mxu0 0
  %323 = vmatpush1.bf16.msra.mxu0 0
  %324 = vmatprep.subr.bf16.mxu0 0
  %325 = vmatpush1.bf16.msra.mxu0 0
  %326 = vmatprep.subr.bf16.mxu0 0
  %327 = vmatpush1.bf16.msra.mxu0 0
  %328 = vmatprep.subr.bf16.mxu0 0
  %329 = vmatpush1.bf16.msra.mxu0 0
  %330 = vmatprep.subr.bf16.mxu0 0
  %331 = vmatpush1.bf16.msra.mxu0 0
  %332 = vmatprep.subr.bf16.mxu0 0
  %333 = vmatpush1.bf16.msra.mxu0 0
  %334 = vmatprep.subr.bf16.mxu0 0
  %335 = vmatpush1.bf16.msra.mxu0 0
  %336 = vmatprep.subr.bf16.mxu0 0
  %337 = vmatpush1.bf16.msra.mxu0 0
  %338 = vmatprep.mubr.bf16.mxu0 0
  %339 = vmatmul.mubr.bf16.gmra.mrb[0].mxu0 %v84
  %v340 = vpop.f32.mrb[0].mxu0
  %v341 = vadd.f32 0.0, %v340
  %v342 = vpop.f32.mrb[0].mxu0
  %v343 = vpop.f32.mrb[0].mxu0
  %v344 = vadd.f32 0.0, %v343
  %v345 = vpop.f32.mrb[0].mxu0
  %346 = vdwg.mxu0
  %348 = vset.pattern.permute.xlu0 0
  %349 = vperm.xlu0 %348, %v272
  %v350 = vpop.permute.xlu0 %349
  %353 = vset.pattern.permute.xlu0 0
  %354 = vperm.xlu0 %353, %v273
  %v355 = vpop.permute.xlu0 %354
  %v357 = vmul.f32 %v350, %v341
  %v358 = vmul.f32 %v355, %v344
  %v359 = vadd.f32 %v270, %v357
  %v360 = vadd.f32 %v271, %v358
  %v361 = vld [vmem:[%s8] sm:$0x1]
  %v363 = vlaneseq
  %v364 = vshrl.u32 %v363, 7
  %v365 = vsub.s32 0, %v364
  %v366 = vrot.slane %v361, %v365
  %v368 = vadd.f32 %v359, %v366
  %v369 = vadd.f32 %v360, %v366
  %v370 = vpack.c.bf16 %v369, %v368
  %v371 = vld [vmem:[%s9] sm:$0xf]
  %v372 = vld [vmem:[%s9 + $0x4] sm:$0xf]
  %v373 = vld [vmem:[%s9 + $0x8] sm:$0xf]
  %v374 = vld [vmem:[%s9 + $0xc] sm:$0xf]
  %v375 = vld [vmem:[%s10] sm:$0x1]
  %v377 = vlaneseq
  %v378 = vshrl.u32 %v377, 7
  %v379 = vsub.s32 0, %v378
  %v380 = vrot.slane %v375, %v379
  %v386 = vunpack.c.l.b16 %v371
  %v387 = vunpack.c.l.b16 %v372
  %v388 = vunpack.c.l.b16 %v373
  %v389 = vunpack.c.l.b16 %v374
  %v390 = vpack.c.b16 %v387, %v386
  %v391 = vpack.c.b16 %v389, %v388
  %vm394 = vcmask 261120
  %v396 = vsel %vm394, %v370, 0
  %398 = vmatprep.subr.bf16.mxu0 0
  %399 = vmatpush1.bf16.msra.mxu0 %v390
  %400 = vmatprep.subr.bf16.mxu0 0
  %401 = vmatpush1.bf16.msra.mxu0 %v391
  %402 = vmatprep.subr.bf16.mxu0 0
  %403 = vmatpush1.bf16.msra.mxu0 0
  %404 = vmatprep.subr.bf16.mxu0 0
  %405 = vmatpush1.bf16.msra.mxu0 0
  %406 = vmatprep.subr.bf16.mxu0 0
  %407 = vmatpush1.bf16.msra.mxu0 0
  %408 = vmatprep.subr.bf16.mxu0 0
  %409 = vmatpush1.bf16.msra.mxu0 0
  %410 = vmatprep.subr.bf16.mxu0 0
  %411 = vmatpush1.bf16.msra.mxu0 0
  %412 = vmatprep.subr.bf16.mxu0 0
  %413 = vmatpush1.bf16.msra.mxu0 0
  %414 = vmatprep.subr.bf16.mxu0 0
  %415 = vmatpush1.bf16.msra.mxu0 0
  %416 = vmatprep.subr.bf16.mxu0 0
  %417 = vmatpush1.bf16.msra.mxu0 0
  %418 = vmatprep.subr.bf16.mxu0 0
  %419 = vmatpush1.bf16.msra.mxu0 0
  %420 = vmatprep.subr.bf16.mxu0 0
  %421 = vmatpush1.bf16.msra.mxu0 0
  %422 = vmatprep.subr.bf16.mxu0 0
  %423 = vmatpush1.bf16.msra.mxu0 0
  %424 = vmatprep.subr.bf16.mxu0 0
  %425 = vmatpush1.bf16.msra.mxu0 0
  %426 = vmatprep.subr.bf16.mxu0 0
  %427 = vmatpush1.bf16.msra.mxu0 0
  %428 = vmatprep.subr.bf16.mxu0 0
  %429 = vmatpush1.bf16.msra.mxu0 0
  %430 = vmatprep.mubr.bf16.mxu0 0
  %431 = vmatmul.mubr.bf16.gmra.mrb[0].mxu0 %v396
  %v432 = vpop.f32.mrb[0].mxu0
  %v433 = vadd.f32 %v380, %v432
  %v434 = vpop.f32.mrb[0].mxu0
  %v435 = vpop.f32.mrb[0].mxu0
  %v436 = vadd.f32 %v380, %v435
  %v437 = vpop.f32.mrb[0].mxu0
  %438 = vdwg.mxu0
  %439 = vst.msk [vmem:[%s11] sm:$0xff] %vm394, %v433
  %440 = vst.msk [vmem:[%s11 + $0x8] sm:$0xff] %vm394, %v436
  // Predicated region
  $region46: #{gcn_forward.47} parent=0 // pred_check
    _
  $region47: #{gcn_forward.47} parent=0 // pred_check_branch
    %442 = sbr.rel (0) target = $region49
  $region48: #{gcn_forward.47} parent=0 // pred_region
    _
  $region49: #{gcn_forward.47} parent=0 // pred_fallthru
    _
  // Predicated region
  $region50: #{gcn_forward.47} parent=0 // pred_check
    _
  $region51: #{gcn_forward.47} parent=0 // pred_check_branch
    %444 = sbr.rel (0) target = $region53
  $region52: #{gcn_forward.47} parent=0 // pred_region
    _
  $region53: #{gcn_forward.47} parent=0 // pred_fallthru
    _

// kernel: gcn_forward.32
$region0: #{gcn_forward.32}
  #allocation0 [shape = 'u32[]', space=smem, size = 0x4, offset = 0x4, fixed_abs, tag = 'smem constant byte address 0x4 - core index']
  #allocation1 [shape = 'u32[144,128]{1,0:T(1,128)}', space=vmem, size = 0x12000, scoped, tag = 'internal scratch']
  #allocation2 [shape = 'f32[1,32]{1,0:T(1,128)}', space=vmem, size = 0x200, scoped, tag = 'scratch operand']
  #allocation3 [shape = 'f32[1,32]{1,0:T(1,128)}', space=vmem, size = 0x200, scoped, tag = 'scratch operand']
  %s0 = inlined_call_operand.vmem [shape: f32[16,32], index: 0, kind: input, shape index: {}]
  %s1 = inlined_call_operand.vmem [shape: f32[1,32], index: 1, kind: output, shape index: {0}]
  %s2 = inlined_call_operand.vmem [shape: f32[1,32], index: 2, kind: output, shape index: {1}]
  %3 = xla_tuple %s1, %s2
  %s4 = sld [smem:[#allocation0]]
  $region30: #{gcn_forward.32} parent=0
    _
  %s6 = ssub.s32 1, %s4
  %s7 = scalar_select 0, %s6, %s4
  // Predicated region
  $region2: #{gcn_forward.32} parent=0 // pred_check
    _
  $region3: #{gcn_forward.32} parent=0 // pred_check_branch
    %9 = sbr.rel (0) target = $region5
  $region4: #{gcn_forward.32} parent=0 // pred_region
    _
  $region5: #{gcn_forward.32} parent=0 // pred_fallthru
    _
  %p10 = scmp.eq.s32.totalorder 0, 0
  // Predicated region
  $region6: #{gcn_forward.32} parent=0 // pred_check
    %p11 = pneg %p10
  $region7: #{gcn_forward.32} parent=0 // pred_check_branch
    %13 = sbr.rel (%p11) target = $region9
  $region8: #{gcn_forward.32} parent=0 // pred_region
    %vm14 = vcmask 253952
    %15 = vst.msk [vmem:[#allocation2] sm:$0x1] %vm14, 0.0
    %16 = vst.msk [vmem:[#allocation3] sm:$0x1] %vm14, 0.0
  $region9: #{gcn_forward.32} parent=0 // pred_fallthru
    _
  %v17 = vld [vmem:[%s0] sm:$0xff]
  %v18 = vld [vmem:[%s0 + $0x8] sm:$0xff]
  %v19 = vld [vmem:[#allocation2] sm:$0x1]
  %vm20 = vcmask 261120
  %v21 = vsel %vm20, %v17, 0.0
  %v22 = vsel %vm20, %v18, 0.0
  %v23 = vadd.f32 %v21, %v22
  %v24 = vrot.slane %v23, 4
  %v25 = vadd.f32 %v23, %v24
  %v26 = vrot.slane %v25, 2
  %v27 = vadd.f32 %v25, %v26
  %v28 = vrot.slane %v27, 1
  %v29 = vadd.f32 %v27, %v28
  %v30 = vadd.f32 %v19, %v29
  %vm31 = vcmask 253952
  %32 = vst.msk [vmem:[#allocation2] sm:$0x1] %vm31, %v30
  %v33 = vld [vmem:[#allocation3] sm:$0x1]
  %v34 = vmul.f32 %v17, %v17
  %v35 = vmul.f32 %v18, %v18
  %v36 = vsel %vm20, %v34, 0.0
  %v37 = vsel %vm20, %v35, 0.0
  %v38 = vadd.f32 %v36, %v37
  %v39 = vrot.slane %v38, 4
  %v40 = vadd.f32 %v38, %v39
  %v41 = vrot.slane %v40, 2
  %v42 = vadd.f32 %v40, %v41
  %v43 = vrot.slane %v42, 1
  %v44 = vadd.f32 %v42, %v43
  %v45 = vadd.f32 %v33, %v44
  %46 = vst.msk [vmem:[#allocation3] sm:$0x1] %vm31, %v45
  // Predicated region
  $region10: #{gcn_forward.32} parent=0 // pred_check
    %p47 = pneg %p10
  $region11: #{gcn_forward.32} parent=0 // pred_check_branch
    %49 = sbr.rel (%p47) target = $region13
  $region12: #{gcn_forward.32} parent=0 // pred_region
    %v50 = vld [vmem:[#allocation2] sm:$0x1]
    %v51 = vmul.f32 %v50, 0.1
    %v52 = vld [vmem:[#allocation3] sm:$0x1]
    %v53 = vmul.f32 %v52, 0.1
    %v54 = vmul.f32 %v51, %v51
    %v55 = vsub.f32 %v53, %v54
    %v56 = vmax.f32 %v55, 0.0
    %57 = vst.msk [vmem:[%s1] sm:$0x1] %vm31, %v51
    %v58 = vadd.f32 %v56, 1e-05
    %v59 = vrsqrt.pop %v58
    %60 = vst.msk [vmem:[%s2] sm:$0x1] %vm31, %v59
  $region13: #{gcn_forward.32} parent=0 // pred_fallthru
    _
  // Predicated region
  $region14: #{gcn_forward.32} parent=0 // pred_check
    _
  $region15: #{gcn_forward.32} parent=0 // pred_check_branch
    %62 = sbr.rel (0) target = $region17
  $region16: #{gcn_forward.32} parent=0 // pred_region
    _
  $region17: #{gcn_forward.32} parent=0 // pred_fallthru
    _
  // Predicated region
  $region18: #{gcn_forward.32} parent=0 // pred_check
    _
  $region19: #{gcn_forward.32} parent=0 // pred_check_branch
    %64 = sbr.rel (0) target = $region21
  $region20: #{gcn_forward.32} parent=0 // pred_region
    _
  $region21: #{gcn_forward.32} parent=0 // pred_fallthru
    _
  // Predicated region
  $region22: #{gcn_forward.32} parent=0 // pred_check
    _
  $region23: #{gcn_forward.32} parent=0 // pred_check_branch
    %66 = sbr.rel (0) target = $region25
  $region24: #{gcn_forward.32} parent=0 // pred_region
    _
  $region25: #{gcn_forward.32} parent=0 // pred_fallthru
    _
  // Predicated region
  $region26: #{gcn_forward.32} parent=0 // pred_check
    _
  $region27: #{gcn_forward.32} parent=0 // pred_check_branch
    %68 = sbr.rel (0) target = $region29
  $region28: #{gcn_forward.32} parent=0 // pred_region
    _
  $region29: #{gcn_forward.32} parent=0 // pred_fallthru
    _

// kernel: gcn_forward.49
$region0: #{gcn_forward.49}
  #allocation0 [shape = 'u32[]', space=smem, size = 0x4, offset = 0x4, fixed_abs, tag = 'smem constant byte address 0x4 - core index']
  #allocation1 [shape = 'u32[144,128]{1,0:T(1,128)}', space=vmem, size = 0x12000, scoped, tag = 'internal scratch']
  %s0 = inlined_call_operand.vmem [shape: f32[16,32], index: 0, kind: input, shape index: {}]
  %s1 = inlined_call_operand.vmem [shape: f32[1,32], index: 1, kind: input, shape index: {}]
  %s2 = inlined_call_operand.vmem [shape: f32[1,32], index: 2, kind: input, shape index: {}]
  %s3 = inlined_call_operand.vmem [shape: f32[16,32], index: 3, kind: output, shape index: {}]
  %s4 = sld [smem:[#allocation0]]
  $region22: #{gcn_forward.49} parent=0
    _
  %s6 = ssub.s32 1, %s4
  %s7 = scalar_select 0, %s6, %s4
  // Predicated region
  $region2: #{gcn_forward.49} parent=0 // pred_check
    _
  $region3: #{gcn_forward.49} parent=0 // pred_check_branch
    %9 = sbr.rel (0) target = $region5
  $region4: #{gcn_forward.49} parent=0 // pred_region
    _
  $region5: #{gcn_forward.49} parent=0 // pred_fallthru
    _
  // Predicated region
  $region6: #{gcn_forward.49} parent=0 // pred_check
    _
  $region7: #{gcn_forward.49} parent=0 // pred_check_branch
    %11 = sbr.rel (0) target = $region9
  $region8: #{gcn_forward.49} parent=0 // pred_region
    _
  $region9: #{gcn_forward.49} parent=0 // pred_fallthru
    _
  // Predicated region
  $region10: #{gcn_forward.49} parent=0 // pred_check
    _
  $region11: #{gcn_forward.49} parent=0 // pred_check_branch
    %13 = sbr.rel (0) target = $region13
  $region12: #{gcn_forward.49} parent=0 // pred_region
    _
  $region13: #{gcn_forward.49} parent=0 // pred_fallthru
    _
  %v14 = vld [vmem:[%s0] sm:$0xff]
  %v15 = vld [vmem:[%s0 + $0x8] sm:$0xff]
  %v16 = vld [vmem:[%s1] sm:$0x1]
  %v18 = vlaneseq
  %v19 = vshrl.u32 %v18, 7
  %v20 = vsub.s32 0, %v19
  %v21 = vrot.slane %v16, %v20
  %v23 = vmul.f32 %v14, %v21
  %v24 = vmul.f32 %v15, %v21
  %v25 = vld [vmem:[%s2] sm:$0x1]
  %v27 = vlaneseq
  %v28 = vshrl.u32 %v27, 7
  %v29 = vsub.s32 0, %v28
  %v30 = vrot.slane %v25, %v29
  %v32 = vadd.f32 %v23, %v30
  %v33 = vadd.f32 %v24, %v30
  %vm34 = vcmp.gt.f32.partialorder %v32, 0.0
  %vm35 = vcmp.gt.f32.partialorder %v33, 0.0
  %v36 = vmul.f32 %v32, 0.01
  %v37 = vmul.f32 %v33, 0.01
  %v38 = vsel %vm34, %v32, %v36
  %v39 = vsel %vm35, %v33, %v37
  %vm40 = vcmask 261120
  %41 = vst.msk [vmem:[%s3] sm:$0xff] %vm40, %v38
  %42 = vst.msk [vmem:[%s3 + $0x8] sm:$0xff] %vm40, %v39
  // Predicated region
  $region14: #{gcn_forward.49} parent=0 // pred_check
    _
  $region15: #{gcn_forward.49} parent=0 // pred_check_branch
    %44 = sbr.rel (0) target = $region17
  $region16: #{gcn_forward.49} parent=0 // pred_region
    _
  $region17: #{gcn_forward.49} parent=0 // pred_fallthru
    _
  // Predicated region
  $region18: #{gcn_forward.49} parent=0 // pred_check
    _
  $region19: #{gcn_forward.49} parent=0 // pred_check_branch
    %46 = sbr.rel (0) target = $region21
  $region20: #{gcn_forward.49} parent=0 // pred_region
    _
  $region21: #{gcn_forward.49} parent=0 // pred_fallthru
    _

// kernel: gcn_forward.50
$region0: #{gcn_forward.50}
  #allocation0 [shape = 'u32[]', space=smem, size = 0x4, offset = 0x4, fixed_abs, tag = 'smem constant byte address 0x4 - core index']
  #allocation1 [shape = 'u32[144,128]{1,0:T(1,128)}', space=vmem, size = 0x12000, scoped, tag = 'internal scratch']
  %s0 = inlined_call_operand.vmem [shape: bf16[32,32], index: 0, kind: input, shape index: {}]
  %s1 = inlined_call_operand.vmem [shape: bf16[32,64], index: 1, kind: input, shape index: {}]
  %s2 = inlined_call_operand.vmem [shape: f32[1,64], index: 2, kind: input, shape index: {}]
  %s3 = inlined_call_operand.vmem [shape: f32[32,64], index: 3, kind: output, shape index: {}]
  %s4 = sld [smem:[#allocation0]]
  $region22: #{gcn_forward.50} parent=0
    _
  %s6 = ssub.s32 1, %s4
  %s7 = scalar_select 0, %s6, %s4
  // Predicated region
  $region2: #{gcn_forward.50} parent=0 // pred_check
    _
  $region3: #{gcn_forward.50} parent=0 // pred_check_branch
    %9 = sbr.rel (0) target = $region5
  $region4: #{gcn_forward.50} parent=0 // pred_region
    _
  $region5: #{gcn_forward.50} parent=0 // pred_fallthru
    _
  // Predicated region
  $region6: #{gcn_forward.50} parent=0 // pred_check
    _
  $region7: #{gcn_forward.50} parent=0 // pred_check_branch
    %11 = sbr.rel (0) target = $region9
  $region8: #{gcn_forward.50} parent=0 // pred_region
    _
  $region9: #{gcn_forward.50} parent=0 // pred_fallthru
    _
  // Predicated region
  $region10: #{gcn_forward.50} parent=0 // pred_check
    _
  $region11: #{gcn_forward.50} parent=0 // pred_check_branch
    %13 = sbr.rel (0) target = $region13
  $region12: #{gcn_forward.50} parent=0 // pred_region
    _
  $region13: #{gcn_forward.50} parent=0 // pred_fallthru
    _
  %v15 = vld [vmem:[%s0] sm:$0xf]
  %v16 = vld [vmem:[%s0 + $0x4] sm:$0xf]
  %v17 = vld [vmem:[%s0 + $0x8] sm:$0xf]
  %v18 = vld [vmem:[%s0 + $0xc] sm:$0xf]
  %v19 = vld [vmem:[%s1] sm:$0xf]
  %v20 = vld [vmem:[%s1 + $0x4] sm:$0xf]
  %v21 = vld [vmem:[%s1 + $0x8] sm:$0xf]
  %v22 = vld [vmem:[%s1 + $0xc] sm:$0xf]
  %v23 = vld [vmem:[%s2] sm:$0x1]
  %v25 = vlaneseq
  %v26 = vshrl.u32 %v25, 7
  %v27 = vsub.s32 0, %v26
  %v28 = vrot.slane %v23, %v27
  %v34 = vunpack.c.l.b16 %v15
  %v35 = vunpack.c.l.b16 %v16
  %v36 = vunpack.c.l.b16 %v17
  %v37 = vunpack.c.l.b16 %v18
  %v38 = vpack.c.b16 %v35, %v34
  %v39 = vpack.c.b16 %v37, %v36
  %v44 = vunpack.c.l.b16 %v19
  %v45 = vunpack.c.l.b16 %v20
  %v46 = vunpack.c.l.b16 %v21
  %v47 = vunpack.c.l.b16 %v22
  %v48 = vpack.c.b16 %v45, %v44
  %v49 = vpack.c.b16 %v47, %v46
  %vm52 = vcmask 261120
  %v54 = vsel %vm52, %v38, 0
  %v57 = vsel %vm52, %v39, 0
  %59 = vmatprep.subr.bf16.mxu0 0
  %60 = vmatpush1.bf16.msra.mxu0 %v48
  %61 = vmatprep.subr.bf16.mxu0 0
  %62 = vmatpush1.bf16.msra.mxu0 %v49
  %63 = vmatprep.subr.bf16.mxu0 0
  %64 = vmatpush1.bf16.msra.mxu0 0
  %65 = vmatprep.subr.bf16.mxu0 0
  %66 = vmatpush1.bf16.msra.mxu0 0
  %67 = vmatprep.subr.bf16.mxu0 0
  %68 = vmatpush1.bf16.msra.mxu0 0
  %69 = vmatprep.subr.bf16.mxu0 0
  %70 = vmatpush1.bf16.msra.mxu0 0
  %71 = vmatprep.subr.bf16.mxu0 0
  %72 = vmatpush1.bf16.msra.mxu0 0
  %73 = vmatprep.subr.bf16.mxu0 0
  %74 = vmatpush1.bf16.msra.mxu0 0
  %75 = vmatprep.subr.bf16.mxu0 0
  %76 = vmatpush1.bf16.msra.mxu0 0
  %77 = vmatprep.subr.bf16.mxu0 0
  %78 = vmatpush1.bf16.msra.mxu0 0
  %79 = vmatprep.subr.bf16.mxu0 0
  %80 = vmatpush1.bf16.msra.mxu0 0
  %81 = vmatprep.subr.bf16.mxu0 0
  %82 = vmatpush1.bf16.msra.mxu0 0
  %83 = vmatprep.subr.bf16.mxu0 0
  %84 = vmatpush1.bf16.msra.mxu0 0
  %85 = vmatprep.subr.bf16.mxu0 0
  %86 = vmatpush1.bf16.msra.mxu0 0
  %87 = vmatprep.subr.bf16.mxu0 0
  %88 = vmatpush1.bf16.msra.mxu0 0
  %89 = vmatprep.subr.bf16.mxu0 0
  %90 = vmatpush1.bf16.msra.mxu0 0
  %91 = vmatprep.mubr.bf16.mxu0 0
  %92 = vmatmul.mubr.bf16.gmra.mrb[0].mxu0 %v54
  %v93 = vpop.f32.mrb[0].mxu0
  %v94 = vadd.f32 %v28, %v93
  %v95 = vpop.f32.mrb[0].mxu0
  %v96 = vpop.f32.mrb[0].mxu0
  %v97 = vadd.f32 %v28, %v96
  %v98 = vpop.f32.mrb[0].mxu0
  %99 = vmatprep.mubr.bf16.mxu0 0
  %100 = vmatmul.mubr.bf16.gmra.mrb[0].mxu0 %v57
  %v101 = vpop.f32.mrb[0].mxu0
  %v102 = vadd.f32 %v28, %v101
  %v103 = vpop.f32.mrb[0].mxu0
  %v104 = vpop.f32.mrb[0].mxu0
  %v105 = vadd.f32 %v28, %v104
  %v106 = vpop.f32.mrb[0].mxu0
  %107 = vdwg.mxu0
  %vm108 = vcmask 523264
  %109 = vst.msk [vmem:[%s3] sm:$0xff] %vm108, %v94
  %110 = vst.msk [vmem:[%s3 + $0x8] sm:$0xff] %vm108, %v97
  %111 = vst.msk [vmem:[%s3 + $0x10] sm:$0xff] %vm108, %v102
  %112 = vst.msk [vmem:[%s3 + $0x18] sm:$0xff] %vm108, %v105
  // Predicated region
  $region14: #{gcn_forward.50} parent=0 // pred_check
    _
  $region15: #{gcn_forward.50} parent=0 // pred_check_branch
    %114 = sbr.rel (0) target = $region17
  $region16: #{gcn_forward.50} parent=0 // pred_region
    _
  $region17: #{gcn_forward.50} parent=0 // pred_fallthru
    _
  // Predicated region
  $region18: #{gcn_forward.50} parent=0 // pred_check
    _
  $region19: #{gcn_forward.50} parent=0 // pred_check_branch
    %116 = sbr.rel (0) target = $region21
  $region20: #{gcn_forward.50} parent=0 // pred_region
    _
  $region21: #{gcn_forward.50} parent=0 // pred_fallthru
    _

// kernel: gcn_forward.51
$region0: #{gcn_forward.51}
  #allocation0 [shape = 'u32[]', space=smem, size = 0x4, offset = 0x4, fixed_abs, tag = 'smem constant byte address 0x4 - core index']
  #allocation1 [shape = 'u32[144,128]{1,0:T(1,128)}', space=vmem, size = 0x12000, scoped, tag = 'internal scratch']
  #allocation2 [shape = 'f32[1,1]{1,0:T(1,128)S(1)}', space=vmem, size = 0x200, scoped, tag = 'scoped memory for gcn_forward.51']
  %s0 = inlined_call_operand.vmem [shape: bf16[16,64], index: 0, kind: input, shape index: {}]
  %s1 = inlined_call_operand.vmem [shape: bf16[64,32], index: 1, kind: input, shape index: {}]
  %s2 = inlined_call_operand.vmem [shape: f32[1,32], index: 2, kind: input, shape index: {}]
  %s3 = inlined_call_operand.vmem [shape: bf16[32,1], index: 3, kind: input, shape index: {}]
  %s4 = inlined_call_operand.<no memory space> [shape: f32[1,1], index: 4, kind: input, shape index: {}]
  %s5 = inlined_call_operand.vmem [shape: f32[16,1], index: 5, kind: output, shape index: {}]
  %s6 = sld [smem:[#allocation0]]
  $region30: #{gcn_forward.51} parent=0
    _
  %s8 = ssub.s32 1, %s6
  %s9 = scalar_select 0, %s8, %s6
  %v10 = vstv %s4
  %11 = vst [vmem:[#allocation2] sm:$0x1] %v10
  // Predicated region
  $region2: #{gcn_forward.51} parent=0 // pred_check
    _
  $region3: #{gcn_forward.51} parent=0 // pred_check_branch
    %13 = sbr.rel (0) target = $region5
  $region4: #{gcn_forward.51} parent=0 // pred_region
    _
  $region5: #{gcn_forward.51} parent=0 // pred_fallthru
    _
  // Predicated region
  $region6: #{gcn_forward.51} parent=0 // pred_check
    _
  $region7: #{gcn_forward.51} parent=0 // pred_check_branch
    %15 = sbr.rel (0) target = $region9
  $region8: #{gcn_forward.51} parent=0 // pred_region
    _
  $region9: #{gcn_forward.51} parent=0 // pred_fallthru
    _
  // Predicated region
  $region10: #{gcn_forward.51} parent=0 // pred_check
    _
  $region11: #{gcn_forward.51} parent=0 // pred_check_branch
    %17 = sbr.rel (0) target = $region13
  $region12: #{gcn_forward.51} parent=0 // pred_region
    _
  $region13: #{gcn_forward.51} parent=0 // pred_fallthru
    _
  // Predicated region
  $region14: #{gcn_forward.51} parent=0 // pred_check
    _
  $region15: #{gcn_forward.51} parent=0 // pred_check_branch
    %19 = sbr.rel (0) target = $region17
  $region16: #{gcn_forward.51} parent=0 // pred_region
    _
  $region17: #{gcn_forward.51} parent=0 // pred_fallthru
    _
  // Predicated region
  $region18: #{gcn_forward.51} parent=0 // pred_check
    _
  $region19: #{gcn_forward.51} parent=0 // pred_check_branch
    %21 = sbr.rel (0) target = $region21
  $region20: #{gcn_forward.51} parent=0 // pred_region
    _
  $region21: #{gcn_forward.51} parent=0 // pred_fallthru
    _
  %v23 = vld [vmem:[%s0] sm:$0xf]
  %v24 = vld [vmem:[%s0 + $0x4] sm:$0xf]
  %v25 = vld [vmem:[%s1] sm:$0xf]
  %v26 = vld [vmem:[%s1 + $0x4] sm:$0xf]
  %v27 = vld [vmem:[%s1 + $0x8] sm:$0xf]
  %v28 = vld [vmem:[%s1 + $0xc] sm:$0xf]
  %v29 = vld [vmem:[%s1 + $0x10] sm:$0xf]
  %v30 = vld [vmem:[%s1 + $0x14] sm:$0xf]
  %v31 = vld [vmem:[%s1 + $0x18] sm:$0xf]
  %v32 = vld [vmem:[%s1 + $0x1c] sm:$0xf]
  %v33 = vld [vmem:[%s2] sm:$0x1]
  %v35 = vlaneseq
  %v36 = vshrl.u32 %v35, 7
  %v37 = vsub.s32 0, %v36
  %v38 = vrot.slane %v33, %v37
  %v42 = vunpack.c.l.b16 %v23
  %v43 = vunpack.c.l.b16 %v24
  %v44 = vpack.c.b16 %v43, %v42
  %v53 = vunpack.c.l.b16 %v25
  %v54 = vunpack.c.l.b16 %v26
  %v55 = vunpack.c.l.b16 %v27
  %v56 = vunpack.c.l.b16 %v28
  %v57 = vunpack.c.l.b16 %v29
  %v58 = vunpack.c.l.b16 %v30
  %v59 = vunpack.c.l.b16 %v31
  %v60 = vunpack.c.l.b16 %v32
  %v61 = vpack.c.b16 %v54, %v53
  %v62 = vpack.c.b16 %v56, %v55
  %v63 = vpack.c.b16 %v58, %v57
  %v64 = vpack.c.b16 %v60, %v59
  %vm69 = vcmask 523264
  %v71 = vsel %vm69, %v44, 0
  %73 = vmatprep.subr.bf16.mxu0 0
  %74 = vmatpush1.bf16.msra.mxu0 %v61
  %75 = vmatprep.subr.bf16.mxu0 0
  %76 = vmatpush1.bf16.msra.mxu0 %v62
  %77 = vmatprep.subr.bf16.mxu0 0
  %78 = vmatpush1.bf16.msra.mxu0 %v63
  %79 = vmatprep.subr.bf16.mxu0 0
  %80 = vmatpush1.bf16.msra.mxu0 %v64
  %81 = vmatprep.subr.bf16.mxu0 0
  %82 = vmatpush1.bf16.msra.mxu0 0
  %83 = vmatprep.subr.bf16.mxu0 0
  %84 = vmatpush1.bf16.msra.mxu0 0
  %85 = vmatprep.subr.bf16.mxu0 0
  %86 = vmatpush1.bf16.msra.mxu0 0
  %87 = vmatprep.subr.bf16.mxu0 0
  %88 = vmatpush1.bf16.msra.mxu0 0
  %89 = vmatprep.subr.bf16.mxu0 0
  %90 = vmatpush1.bf16.msra.mxu0 0
  %91 = vmatprep.subr.bf16.mxu0 0
  %92 = vmatpush1.bf16.msra.mxu0 0
  %93 = vmatprep.subr.bf16.mxu0 0
  %94 = vmatpush1.bf16.msra.mxu0 0
  %95 = vmatprep.subr.bf16.mxu0 0
  %96 = vmatpush1.bf16.msra.mxu0 0
  %97 = vmatprep.subr.bf16.mxu0 0
  %98 = vmatpush1.bf16.msra.mxu0 0
  %99 = vmatprep.subr.bf16.mxu0 0
  %100 = vmatpush1.bf16.msra.mxu0 0
  %101 = vmatprep.subr.bf16.mxu0 0
  %102 = vmatpush1.bf16.msra.mxu0 0
  %103 = vmatprep.subr.bf16.mxu0 0
  %104 = vmatpush1.bf16.msra.mxu0 0
  %105 = vmatprep.mubr.bf16.mxu0 0
  %106 = vmatmul.mubr.bf16.gmra.mrb[0].mxu0 %v71
  %v107 = vpop.f32.mrb[0].mxu0
  %v108 = vadd.f32 %v38, %v107
  %v109 = vpop.f32.mrb[0].mxu0
  %v110 = vpop.f32.mrb[0].mxu0
  %v111 = vadd.f32 %v38, %v110
  %v112 = vpop.f32.mrb[0].mxu0
  %113 = vdwg.mxu0
  %v114 = vmax.f32 %v108, 0.0
  %v115 = vmax.f32 %v111, 0.0
  %v116 = vpack.c.bf16 %v115, %v114
  %v117 = vld [vmem:[%s3] sm:$0xf]
  %v118 = vld [vmem:[%s3 + $0x4] sm:$0xf]
  %v119 = vld [vmem:[%s3 + $0x8] sm:$0xf]
  %v120 = vld [vmem:[%s3 + $0xc] sm:$0xf]
  %v121 = vld [vmem:[#allocation2] sm:$0x1]
  %v123 = vlaneseq
  %v124 = vshrl.u32 %v123, 7
  %v125 = vsub.s32 0, %v124
  %v126 = vrot.slane %v121, %v125
  %v132 = vunpack.c.l.b16 %v117
  %v133 = vunpack.c.l.b16 %v118
  %v134 = vunpack.c.l.b16 %v119
  %v135 = vunpack.c.l.b16 %v120
  %v136 = vpack.c.b16 %v133, %v132
  %v137 = vpack.c.b16 %v135, %v134
  %vm140 = vcmask 261120
  %v142 = vsel %vm140, %v116, 0
  %144 = vmatprep.subr.bf16.mxu0 0
  %145 = vmatpush1.bf16.msra.mxu0 %v136
  %146 = vmatprep.subr.bf16.mxu0 0
  %147 = vmatpush1.bf16.msra.mxu0 %v137
  %148 = vmatprep.subr.bf16.mxu0 0
  %149 = vmatpush1.bf16.msra.mxu0 0
  %150 = vmatprep.subr.bf16.mxu0 0
  %151 = vmatpush1.bf16.msra.mxu0 0
  %152 = vmatprep.subr.bf16.mxu0 0
  %153 = vmatpush1.bf16.msra.mxu0 0
  %154 = vmatprep.subr.bf16.mxu0 0
  %155 = vmatpush1.bf16.msra.mxu0 0
  %156 = vmatprep.subr.bf16.mxu0 0
  %157 = vmatpush1.bf16.msra.mxu0 0
  %158 = vmatprep.subr.bf16.mxu0 0
  %159 = vmatpush1.bf16.msra.mxu0 0
  %160 = vmatprep.subr.bf16.mxu0 0
  %161 = vmatpush1.bf16.msra.mxu0 0
  %162 = vmatprep.subr.bf16.mxu0 0
  %163 = vmatpush1.bf16.msra.mxu0 0
  %164 = vmatprep.subr.bf16.mxu0 0
  %165 = vmatpush1.bf16.msra.mxu0 0
  %166 = vmatprep.subr.bf16.mxu0 0
  %167 = vmatpush1.bf16.msra.mxu0 0
  %168 = vmatprep.subr.bf16.mxu0 0
  %169 = vmatpush1.bf16.msra.mxu0 0
  %170 = vmatprep.subr.bf16.mxu0 0
  %171 = vmatpush1.bf16.msra.mxu0 0
  %172 = vmatprep.subr.bf16.mxu0 0
  %173 = vmatpush1.bf16.msra.mxu0 0
  %174 = vmatprep.subr.bf16.mxu0 0
  %175 = vmatpush1.bf16.msra.mxu0 0
  %176 = vmatprep.mubr.bf16.mxu0 0
  %177 = vmatmul.mubr.bf16.gmra.mrb[0].mxu0 %v142
  %v178 = vpop.f32.mrb[0].mxu0
  %v179 = vadd.f32 %v126, %v178
  %v180 = vpop.f32.mrb[0].mxu0
  %v181 = vpop.f32.mrb[0].mxu0
  %v182 = vadd.f32 %v126, %v181
  %v183 = vpop.f32.mrb[0].mxu0
  %184 = vdwg.mxu0
  %v185 = vxor.u32 %v179, 2147483648
  %v186 = vxor.u32 %v182, 2147483648
  %v187 = vmul.f32 %v185, 1.442695
  %v188 = vpow.pop %v187
  %v189 = vmul.f32 %v186, 1.442695
  %v190 = vpow.pop %v189
  %v191 = vadd.f32 %v188, 1.0
  %v192 = vadd.f32 %v190, 1.0
  %v193 = vrcp.pop %v191
  %v194 = vmul.f32 1.0, %v193
  %v195 = vrcp.pop %v192
  %v196 = vmul.f32 1.0, %v195
  %vm197 = vcmask 7168
  %198 = vst.msk [vmem:[%s5] sm:$0xff] %vm197, %v194
  %199 = vst.msk [vmem:[%s5 + $0x8] sm:$0xff] %vm197, %v196
  // Predicated region
  $region22: #{gcn_forward.51} parent=0 // pred_check
    _
  $region23: #{gcn_forward.51} parent=0 // pred_check_branch
    %201 = sbr.rel (0) target = $region25
  $region24: #{gcn_forward.51} parent=0 // pred_region
    _
  $region25: #{gcn_forward.51} parent=0 // pred_fallthru
    _
  // Predicated region
  $region26: #{gcn_forward.51} parent=0 // pred_check
    _
  $region27: #{gcn_forward.51} parent=0 // pred_check_branch
    %203 = sbr.rel (0) target = $region29
  $region28: #{gcn_forward.51} parent=0 // pred_region
    _
  $region29: #{gcn_forward.51} parent=0 // pred_fallthru
    _

</llo_original>
